<compile_context>
chip_gen: v7x
topology: tpu7x:2x2x1
jax: 0.10.0
libtpu: 0.0.40
codegen_flags: <defaults>
</compile_context>

<pallas_src>
import jax
import jax.numpy as jnp
from jax import lax
from jax.experimental import pallas as pl
from jax.experimental.pallas import tpu as pltpu


def _layernorm_f32(x, gamma, beta, eps=1e-5):
    # LayerNorm always computed in float32 (matches CLIP's custom LayerNorm).
    xf = x.astype(jnp.float32)
    mu = jnp.mean(xf, axis=-1, keepdims=True)
    var = jnp.mean((xf - mu) ** 2, axis=-1, keepdims=True)
    return (xf - mu) * lax.rsqrt(var + eps) * gamma + beta


def _residual_block_kernel(x_ref,
                           ln1_g_ref, ln1_b_ref,
                           wqkv_ref, bqkv_ref,
                           wo_ref, bo_ref,
                           ln2_g_ref, ln2_b_ref,
                           wfc_ref, bfc_ref,
                           wproj_ref, bproj_ref,
                           o_ref):
    x = x_ref[...].astype(jnp.float32)                     # (L, D)
    L, D = x.shape
    H, Dh = wo_ref.shape[0], wo_ref.shape[1]

    # ---- ln_1 (f32 element-wise math) ----
    h_bf = _layernorm_f32(x, ln1_g_ref[0], ln1_b_ref[0]).astype(jnp.bfloat16)

    # ---- fused QKV projection: one wide (L, D) @ (D, 3D) MXU matmul ----
    # 1/sqrt(Dh) is already folded into the Q columns / Q bias by the wrapper.
    qkv = jnp.dot(h_bf, wqkv_ref[...],
                  preferred_element_type=jnp.float32) + bqkv_ref[0]     # (L, 3D) f32

    # ---- per-head attention; output projection accumulated into (L, D) f32 ----
    acc = jnp.zeros((L, D), jnp.float32)
    for hd in range(H):                                    # H is small & static
        q_h = qkv[:, hd * Dh:(hd + 1) * Dh].astype(jnp.bfloat16)            # (L, Dh)
        k_h = qkv[:, D + hd * Dh:D + (hd + 1) * Dh].astype(jnp.bfloat16)
        v_h = qkv[:, 2 * D + hd * Dh:2 * D + (hd + 1) * Dh].astype(jnp.bfloat16)

        # scores (NT matmul, f32 accumulation)
        s = lax.dot_general(q_h, k_h, (((1,), (1,)), ((), ())),
                            preferred_element_type=jnp.float32)             # (L, L)
        s = s - jnp.max(s, axis=-1, keepdims=True)
        p = jnp.exp(s)                                                       # unnormalized
        denom = jnp.sum(p, axis=-1, keepdims=True)                           # (L, 1) f32

        ctx = jnp.dot(p.astype(jnp.bfloat16), v_h,
                      preferred_element_type=jnp.float32)                    # (L, Dh)
        # deferred softmax normalization on the small (L, Dh) tensor; exact
        # reciprocal (off the critical EUP path).
        ctx = ctx * pl.reciprocal(denom, approx=False)

        acc = acc + jnp.dot(ctx.astype(jnp.bfloat16), wo_ref[hd],
                            preferred_element_type=jnp.float32)              # (L, D)

    x1 = x + acc + bo_ref[0]                               # residual 1

    # ---- ln_2 + MLP (c_fc -> QuickGELU -> c_proj) ----
    h2 = _layernorm_f32(x1, ln2_g_ref[0], ln2_b_ref[0]).astype(jnp.bfloat16)
    fc = jnp.dot(h2, wfc_ref[...], preferred_element_type=jnp.float32) + bfc_ref[0]
    sig = pl.reciprocal(1.0 + jnp.exp(-1.702 * fc), approx=True)   # QuickGELU sigmoid
    gelu = (fc * sig).astype(jnp.bfloat16)
    mlp = jnp.dot(gelu, wproj_ref[...], preferred_element_type=jnp.float32) + bproj_ref[0]

    o_ref[...] = (x1 + mlp).astype(o_ref.dtype)            # residual 2


def residual_attention_block(x_lnd, params, n_head):
    """x_lnd: (L, N, D). params: dict of PyTorch-shaped weights. Returns (L, N, D)."""
    L, N, D = x_lnd.shape
    Dh = D // n_head
    scale = 1.0 / float(Dh) ** 0.5
    wdt = jnp.bfloat16                                      # MXU operand dtype

    x = jnp.transpose(x_lnd, (1, 0, 2))                     # (N, L, D)

    def row(v):                                             # 1-D param -> (1, dim) f32
        return v.reshape(1, -1).astype(jnp.float32)

    # ---- wrapper-side weight staging (pre-transpose, QKV fuse, scale fold) ----
    in_w = params["in_proj_w"]                              # (3D, D)
    in_b = params["in_proj_b"]                              # (3D,)
    col_scale = jnp.concatenate([jnp.full((D,), scale, jnp.float32),
                                 jnp.ones((2 * D,), jnp.float32)])
    wqkv = (in_w.T * col_scale).astype(wdt)                 # (D, 3D), Q columns scaled
    bqkv = (in_b * col_scale).reshape(1, 3 * D).astype(jnp.float32)

    wo_h = params["out_proj_w"].T.reshape(n_head, Dh, D).astype(wdt)   # (H, Dh, D)
    wfc_t = params["fc_w"].T.astype(wdt)                               # (D, 4D)
    wproj_t = params["proj_w"].T.astype(wdt)                           # (4D, D)

    args = (
        x,
        row(params["ln1_g"]), row(params["ln1_b"]),
        wqkv, bqkv,
        wo_h, row(params["out_proj_b"]),
        row(params["ln2_g"]), row(params["ln2_b"]),
        wfc_t, row(params["fc_b"]),
        wproj_t, row(params["proj_b"]),
    )

    # advisory cost estimate: QKV/out-proj/MLP + attention matmuls
    matmul_flops = 24 * N * L * D * D + 4 * N * L * L * D
    transcendentals = N * (n_head * L * L + L * 4 * D)
    bytes_accessed = int(sum(int(a.size) * a.dtype.itemsize for a in args)
                         + int(x.size) * x.dtype.itemsize)

    def build(single_buffer_weights):
        pm = pl.Buffered(1) if single_buffer_weights else None

        def const_spec(a):
            # full-array block, constant index map (same block every grid step)
            return pl.BlockSpec(a.shape, lambda n: (0,) * a.ndim, pipeline_mode=pm)

        in_specs = ([pl.BlockSpec((None, L, D), lambda n: (n, 0, 0))]
                    + [const_spec(a) for a in args[1:]])
        out_spec = pl.BlockSpec((None, L, D), lambda n: (n, 0, 0))

        return pl.pallas_call(
            _residual_block_kernel,
            out_shape=jax.ShapeDtypeStruct((N, L, D), x.dtype),
            grid=(N,),
            in_specs=in_specs,
            out_specs=out_spec,
            compiler_params=pltpu.CompilerParams(
                dimension_semantics=("parallel",),
                # leave headroom on v7x (64 MiB physical VMEM per TC)
                vmem_limit_bytes=56 * 1024 * 1024),
            cost_estimate=pl.CostEstimate(flops=int(matmul_flops),
                                          transcendentals=int(transcendentals),
                                          bytes_accessed=bytes_accessed),
        )

    try:
        out = jax.block_until_ready(build(True)(*args))
    except Exception:
        # Fallback: if this JAX build rejects single-buffered invariant operands,
        # keep default double-buffering (correct, just a larger VMEM footprint).
        out = build(False)(*args)

    return jnp.transpose(out, (1, 0, 2))                    # back to (L, N, D)


def _reference(x_lnd, params, n_head):
    """Plain-JAX f32 reference matching PyTorch semantics (for verification)."""
    L, N, D = x_lnd.shape
    Dh = D // n_head
    scale = 1.0 / float(Dh) ** 0.5

    def ln(x, g, b):
        xf = x.astype(jnp.float32)
        mu = xf.mean(-1, keepdims=True)
        var = ((xf - mu) ** 2).mean(-1, keepdims=True)
        return (xf - mu) * lax.rsqrt(var + 1e-5) * g + b

    x = jnp.transpose(x_lnd, (1, 0, 2))  # (N, L, D)
    h = ln(x, params["ln1_g"], params["ln1_b"])
    qkv = h @ params["in_proj_w"].T + params["in_proj_b"]
    q, k, v = jnp.split(qkv, 3, axis=-1)
    q = (q * scale).reshape(N, L, n_head, Dh).transpose(0, 2, 1, 3)
    k = k.reshape(N, L, n_head, Dh).transpose(0, 2, 1, 3)
    v = v.reshape(N, L, n_head, Dh).transpose(0, 2, 1, 3)
    s = jnp.einsum("nhqd,nhkd->nhqk", q, k)
    p = jax.nn.softmax(s, axis=-1)
    a = jnp.einsum("nhqk,nhkd->nhqd", p, v).transpose(0, 2, 1, 3).reshape(N, L, D)
    a = a @ params["out_proj_w"].T + params["out_proj_b"]
    x1 = x + a
    h2 = ln(x1, params["ln2_g"], params["ln2_b"])
    fc = h2 @ params["fc_w"].T + params["fc_b"]
    gelu = fc * jax.nn.sigmoid(1.702 * fc)
    mlp = gelu @ params["proj_w"].T + params["proj_b"]
    return jnp.transpose(x1 + mlp, (1, 0, 2))


def _init_params(key, d_model, n_head):
    ks = jax.random.split(key, 12)
    s = 0.05
    D = d_model
    return {
        "ln1_g": 1.0 + s * jax.random.normal(ks[0], (D,), jnp.float32),
        "ln1_b": s * jax.random.normal(ks[1], (D,), jnp.float32),
        "in_proj_w": s * jax.random.normal(ks[2], (3 * D, D), jnp.float32),
        "in_proj_b": s * jax.random.normal(ks[3], (3 * D,), jnp.float32),
        "out_proj_w": s * jax.random.normal(ks[4], (D, D), jnp.float32),
        "out_proj_b": s * jax.random.normal(ks[5], (D,), jnp.float32),
        "ln2_g": 1.0 + s * jax.random.normal(ks[6], (D,), jnp.float32),
        "ln2_b": s * jax.random.normal(ks[7], (D,), jnp.float32),
        "fc_w": s * jax.random.normal(ks[8], (4 * D, D), jnp.float32),
        "fc_b": s * jax.random.normal(ks[9], (4 * D,), jnp.float32),
        "proj_w": s * jax.random.normal(ks[10], (D, 4 * D), jnp.float32),
        "proj_b": s * jax.random.normal(ks[11], (D,), jnp.float32),
    }


if __name__ == "__main__":
    L, N, D, H = 8, 2, 32, 4   # seq, batch, d_model, n_head
    key = jax.random.PRNGKey(0)
    kx, kp = jax.random.split(key)
    x = jax.random.normal(kx, (L, N, D), jnp.float32)
    params = _init_params(kp, D, H)

    out = residual_attention_block(x, params, H)
    out = jax.block_until_ready(out)

    ref = _reference(x, params, H)
    assert out.shape == (L, N, D)
    # bf16 MXU operands + approx QuickGELU reciprocal => looser tolerance vs f32 ref
    assert jnp.allclose(out, ref, atol=3e-2, rtol=3e-2), "mismatch vs reference"

    print("KERNEL_OK")
</pallas_src>

<mosaic_0001>
module attributes {stable_mosaic.version = 11 : i64} {
  func.func @_residual_block_kernel(%arg0: i32, %arg1: memref<1x8x32xf32, #tpu.memory_space<vmem>>, %arg2: memref<1x32xf32, #tpu.memory_space<vmem>>, %arg3: memref<1x32xf32, #tpu.memory_space<vmem>>, %arg4: memref<32x96xbf16, #tpu.memory_space<vmem>>, %arg5: memref<1x96xf32, #tpu.memory_space<vmem>>, %arg6: memref<4x8x32xbf16, #tpu.memory_space<vmem>>, %arg7: memref<1x32xf32, #tpu.memory_space<vmem>>, %arg8: memref<1x32xf32, #tpu.memory_space<vmem>>, %arg9: memref<1x32xf32, #tpu.memory_space<vmem>>, %arg10: memref<32x128xbf16, #tpu.memory_space<vmem>>, %arg11: memref<1x128xf32, #tpu.memory_space<vmem>>, %arg12: memref<128x32xbf16, #tpu.memory_space<vmem>>, %arg13: memref<1x32xf32, #tpu.memory_space<vmem>>, %arg14: memref<1x8x32xf32, #tpu.memory_space<vmem>>) attributes {dimension_semantics = [#tpu.dimension_semantics<parallel>], iteration_bounds = array<i64: 2>, scalar_prefetch = 0 : i64, scratch_operands = 0 : i64, tpu.core_type = #tpu.core_type<tc>, window_params = [{transform_indices = @transform_0, window_bounds = array<i64: 1, 8, 32>}, {pipeline_mode = #tpu.pipeline_mode<synchronous>, transform_indices = @transform_1, window_bounds = array<i64: 1, 32>}, {pipeline_mode = #tpu.pipeline_mode<synchronous>, transform_indices = @transform_2, window_bounds = array<i64: 1, 32>}, {pipeline_mode = #tpu.pipeline_mode<synchronous>, transform_indices = @transform_3, window_bounds = array<i64: 32, 96>}, {pipeline_mode = #tpu.pipeline_mode<synchronous>, transform_indices = @transform_4, window_bounds = array<i64: 1, 96>}, {pipeline_mode = #tpu.pipeline_mode<synchronous>, transform_indices = @transform_5, window_bounds = array<i64: 4, 8, 32>}, {pipeline_mode = #tpu.pipeline_mode<synchronous>, transform_indices = @transform_6, window_bounds = array<i64: 1, 32>}, {pipeline_mode = #tpu.pipeline_mode<synchronous>, transform_indices = @transform_7, window_bounds = array<i64: 1, 32>}, {pipeline_mode = #tpu.pipeline_mode<synchronous>, transform_indices = @transform_8, window_bounds = array<i64: 1, 32>}, {pipeline_mode = #tpu.pipeline_mode<synchronous>, transform_indices = @transform_9, window_bounds = array<i64: 32, 128>}, {pipeline_mode = #tpu.pipeline_mode<synchronous>, transform_indices = @transform_10, window_bounds = array<i64: 1, 128>}, {pipeline_mode = #tpu.pipeline_mode<synchronous>, transform_indices = @transform_11, window_bounds = array<i64: 128, 32>}, {pipeline_mode = #tpu.pipeline_mode<synchronous>, transform_indices = @transform_12, window_bounds = array<i64: 1, 32>}, {transform_indices = @transform_13, window_bounds = array<i64: 1, 8, 32>}]} {
    %c0 = arith.constant 0 : index
    %c0_0 = arith.constant 0 : index
    %c0_1 = arith.constant 0 : index
    %0 = vector.load %arg1[%c0, %c0_0, %c0_1] : memref<1x8x32xf32, #tpu.memory_space<vmem>>, vector<1x8x32xf32>
    %1 = vector.shape_cast %0 : vector<1x8x32xf32> to vector<8x32xf32>
    %c0_2 = arith.constant 0 : index
    %c0_3 = arith.constant 0 : index
    %2 = vector.load %arg2[%c0_2, %c0_3] : memref<1x32xf32, #tpu.memory_space<vmem>>, vector<1x32xf32>
    %3 = vector.shape_cast %2 : vector<1x32xf32> to vector<32xf32>
    %c0_4 = arith.constant 0 : index
    %c0_5 = arith.constant 0 : index
    %4 = vector.load %arg3[%c0_4, %c0_5] : memref<1x32xf32, #tpu.memory_space<vmem>>, vector<1x32xf32>
    %5 = vector.shape_cast %4 : vector<1x32xf32> to vector<32xf32>
    %cst = arith.constant dense<0.000000e+00> : vector<8xf32>
    %6 = vector.multi_reduction <add>, %1, %cst [1] : vector<8x32xf32> to vector<8xf32>
    %7 = vector.shape_cast %6 : vector<8xf32> to vector<8x1xf32>
    %cst_6 = arith.constant 3.200000e+01 : f32
    %8 = vector.broadcast %cst_6 : f32 to vector<8x1xf32>
    %9 = arith.divf %7, %8 : vector<8x1xf32>
    %10 = vector.broadcast %9 : vector<8x1xf32> to vector<8x32xf32>
    %11 = arith.subf %1, %10 : vector<8x32xf32>
    %12 = arith.mulf %11, %11 : vector<8x32xf32>
    %cst_7 = arith.constant dense<0.000000e+00> : vector<8xf32>
    %13 = vector.multi_reduction <add>, %12, %cst_7 [1] : vector<8x32xf32> to vector<8xf32>
    %14 = vector.shape_cast %13 : vector<8xf32> to vector<8x1xf32>
    %cst_8 = arith.constant 3.200000e+01 : f32
    %15 = vector.broadcast %cst_8 : f32 to vector<8x1xf32>
    %16 = arith.divf %14, %15 : vector<8x1xf32>
    %17 = vector.broadcast %9 : vector<8x1xf32> to vector<8x32xf32>
    %18 = arith.subf %1, %17 : vector<8x32xf32>
    %cst_9 = arith.constant 9.99999974E-6 : f32
    %19 = vector.broadcast %cst_9 : f32 to vector<8x1xf32>
    %20 = arith.addf %16, %19 : vector<8x1xf32>
    %21 = math.rsqrt %20 : vector<8x1xf32>
    %22 = vector.broadcast %21 : vector<8x1xf32> to vector<8x32xf32>
    %23 = arith.mulf %18, %22 : vector<8x32xf32>
    %24 = vector.shape_cast %3 : vector<32xf32> to vector<1x32xf32>
    %25 = vector.broadcast %24 : vector<1x32xf32> to vector<8x32xf32>
    %26 = arith.mulf %23, %25 : vector<8x32xf32>
    %27 = vector.shape_cast %5 : vector<32xf32> to vector<1x32xf32>
    %28 = vector.broadcast %27 : vector<1x32xf32> to vector<8x32xf32>
    %29 = arith.addf %26, %28 : vector<8x32xf32>
    %30 = arith.truncf %29 : vector<8x32xf32> to vector<8x32xbf16>
    %c0_10 = arith.constant 0 : index
    %c0_11 = arith.constant 0 : index
    %31 = vector.load %arg4[%c0_10, %c0_11] : memref<32x96xbf16, #tpu.memory_space<vmem>>, vector<32x96xbf16>
    %cst_12 = arith.constant dense<0.000000e+00> : vector<8x96xf32>
    %32 = tpu.matmul %30, %31, %cst_12 {dimension_numbers = #tpu.dot_dimension_numbers<[1], [0], [0], [1], [0, 0, 1, 1], [], []>} : vector<8x32xbf16>, vector<32x96xbf16>, vector<8x96xf32> -> vector<8x96xf32>
    %c0_13 = arith.constant 0 : index
    %c0_14 = arith.constant 0 : index
    %33 = vector.load %arg5[%c0_13, %c0_14] : memref<1x96xf32, #tpu.memory_space<vmem>>, vector<1x96xf32>
    %34 = vector.shape_cast %33 : vector<1x96xf32> to vector<96xf32>
    %35 = vector.shape_cast %34 : vector<96xf32> to vector<1x96xf32>
    %36 = vector.broadcast %35 : vector<1x96xf32> to vector<8x96xf32>
    %37 = arith.addf %32, %36 : vector<8x96xf32>
    %cst_15 = arith.constant 0.000000e+00 : f32
    %38 = vector.broadcast %cst_15 : f32 to vector<8x32xf32>
    %39 = vector.extract_strided_slice %37 {offsets = [0, 0], sizes = [8, 8], strides = [1, 1]} : vector<8x96xf32> to vector<8x8xf32>
    %40 = arith.truncf %39 : vector<8x8xf32> to vector<8x8xbf16>
    %41 = vector.extract_strided_slice %37 {offsets = [0, 32], sizes = [8, 8], strides = [1, 1]} : vector<8x96xf32> to vector<8x8xf32>
    %42 = arith.truncf %41 : vector<8x8xf32> to vector<8x8xbf16>
    %43 = vector.extract_strided_slice %37 {offsets = [0, 64], sizes = [8, 8], strides = [1, 1]} : vector<8x96xf32> to vector<8x8xf32>
    %44 = arith.truncf %43 : vector<8x8xf32> to vector<8x8xbf16>
    %cst_16 = arith.constant dense<0.000000e+00> : vector<8x8xf32>
    %45 = tpu.matmul %40, %42, %cst_16 {dimension_numbers = #tpu.dot_dimension_numbers<[1], [1], [0], [0], [0, 0, 1, 0], [], []>} : vector<8x8xbf16>, vector<8x8xbf16>, vector<8x8xf32> -> vector<8x8xf32>
    %cst_17 = arith.constant dense<0xFF800000> : vector<8xf32>
    %46 = vector.multi_reduction <maximumf>, %45, %cst_17 [1] : vector<8x8xf32> to vector<8xf32>
    %47 = vector.shape_cast %46 : vector<8xf32> to vector<8x1xf32>
    %48 = vector.broadcast %47 : vector<8x1xf32> to vector<8x8xf32>
    %49 = arith.subf %45, %48 : vector<8x8xf32>
    %50 = math.exp %49 : vector<8x8xf32>
    %cst_18 = arith.constant dense<0.000000e+00> : vector<8xf32>
    %51 = vector.multi_reduction <add>, %50, %cst_18 [1] : vector<8x8xf32> to vector<8xf32>
    %52 = vector.shape_cast %51 : vector<8xf32> to vector<8x1xf32>
    %53 = arith.truncf %50 : vector<8x8xf32> to vector<8x8xbf16>
    %cst_19 = arith.constant dense<0.000000e+00> : vector<8x8xf32>
    %54 = tpu.matmul %53, %44, %cst_19 {dimension_numbers = #tpu.dot_dimension_numbers<[1], [0], [0], [1], [0, 0, 1, 1], [], []>} : vector<8x8xbf16>, vector<8x8xbf16>, vector<8x8xf32> -> vector<8x8xf32>
    %55 = tpu.reciprocal %52 : vector<8x1xf32> -> vector<8x1xf32>
    %56 = vector.broadcast %55 : vector<8x1xf32> to vector<8x8xf32>
    %57 = arith.mulf %54, %56 : vector<8x8xf32>
    %58 = arith.truncf %57 : vector<8x8xf32> to vector<8x8xbf16>
    %c0_20 = arith.constant 0 : index
    %c0_21 = arith.constant 0 : index
    %c0_22 = arith.constant 0 : index
    %59 = vector.load %arg6[%c0_20, %c0_21, %c0_22] : memref<4x8x32xbf16, #tpu.memory_space<vmem>>, vector<1x8x32xbf16>
    %60 = vector.shape_cast %59 : vector<1x8x32xbf16> to vector<8x32xbf16>
    %cst_23 = arith.constant dense<0.000000e+00> : vector<8x32xf32>
    %61 = tpu.matmul %58, %60, %cst_23 {dimension_numbers = #tpu.dot_dimension_numbers<[1], [0], [0], [1], [0, 0, 1, 1], [], []>} : vector<8x8xbf16>, vector<8x32xbf16>, vector<8x32xf32> -> vector<8x32xf32>
    %62 = arith.addf %38, %61 : vector<8x32xf32>
    %63 = vector.extract_strided_slice %37 {offsets = [0, 8], sizes = [8, 8], strides = [1, 1]} : vector<8x96xf32> to vector<8x8xf32>
    %64 = arith.truncf %63 : vector<8x8xf32> to vector<8x8xbf16>
    %65 = vector.extract_strided_slice %37 {offsets = [0, 40], sizes = [8, 8], strides = [1, 1]} : vector<8x96xf32> to vector<8x8xf32>
    %66 = arith.truncf %65 : vector<8x8xf32> to vector<8x8xbf16>
    %67 = vector.extract_strided_slice %37 {offsets = [0, 72], sizes = [8, 8], strides = [1, 1]} : vector<8x96xf32> to vector<8x8xf32>
    %68 = arith.truncf %67 : vector<8x8xf32> to vector<8x8xbf16>
    %cst_24 = arith.constant dense<0.000000e+00> : vector<8x8xf32>
    %69 = tpu.matmul %64, %66, %cst_24 {dimension_numbers = #tpu.dot_dimension_numbers<[1], [1], [0], [0], [0, 0, 1, 0], [], []>} : vector<8x8xbf16>, vector<8x8xbf16>, vector<8x8xf32> -> vector<8x8xf32>
    %cst_25 = arith.constant dense<0xFF800000> : vector<8xf32>
    %70 = vector.multi_reduction <maximumf>, %69, %cst_25 [1] : vector<8x8xf32> to vector<8xf32>
    %71 = vector.shape_cast %70 : vector<8xf32> to vector<8x1xf32>
    %72 = vector.broadcast %71 : vector<8x1xf32> to vector<8x8xf32>
    %73 = arith.subf %69, %72 : vector<8x8xf32>
    %74 = math.exp %73 : vector<8x8xf32>
    %cst_26 = arith.constant dense<0.000000e+00> : vector<8xf32>
    %75 = vector.multi_reduction <add>, %74, %cst_26 [1] : vector<8x8xf32> to vector<8xf32>
    %76 = vector.shape_cast %75 : vector<8xf32> to vector<8x1xf32>
    %77 = arith.truncf %74 : vector<8x8xf32> to vector<8x8xbf16>
    %cst_27 = arith.constant dense<0.000000e+00> : vector<8x8xf32>
    %78 = tpu.matmul %77, %68, %cst_27 {dimension_numbers = #tpu.dot_dimension_numbers<[1], [0], [0], [1], [0, 0, 1, 1], [], []>} : vector<8x8xbf16>, vector<8x8xbf16>, vector<8x8xf32> -> vector<8x8xf32>
    %79 = tpu.reciprocal %76 : vector<8x1xf32> -> vector<8x1xf32>
    %80 = vector.broadcast %79 : vector<8x1xf32> to vector<8x8xf32>
    %81 = arith.mulf %78, %80 : vector<8x8xf32>
    %82 = arith.truncf %81 : vector<8x8xf32> to vector<8x8xbf16>
    %c1 = arith.constant 1 : index
    %c0_28 = arith.constant 0 : index
    %c0_29 = arith.constant 0 : index
    %83 = vector.load %arg6[%c1, %c0_28, %c0_29] : memref<4x8x32xbf16, #tpu.memory_space<vmem>>, vector<1x8x32xbf16>
    %84 = vector.shape_cast %83 : vector<1x8x32xbf16> to vector<8x32xbf16>
    %cst_30 = arith.constant dense<0.000000e+00> : vector<8x32xf32>
    %85 = tpu.matmul %82, %84, %cst_30 {dimension_numbers = #tpu.dot_dimension_numbers<[1], [0], [0], [1], [0, 0, 1, 1], [], []>} : vector<8x8xbf16>, vector<8x32xbf16>, vector<8x32xf32> -> vector<8x32xf32>
    %86 = arith.addf %62, %85 : vector<8x32xf32>
    %87 = vector.extract_strided_slice %37 {offsets = [0, 16], sizes = [8, 8], strides = [1, 1]} : vector<8x96xf32> to vector<8x8xf32>
    %88 = arith.truncf %87 : vector<8x8xf32> to vector<8x8xbf16>
    %89 = vector.extract_strided_slice %37 {offsets = [0, 48], sizes = [8, 8], strides = [1, 1]} : vector<8x96xf32> to vector<8x8xf32>
    %90 = arith.truncf %89 : vector<8x8xf32> to vector<8x8xbf16>
    %91 = vector.extract_strided_slice %37 {offsets = [0, 80], sizes = [8, 8], strides = [1, 1]} : vector<8x96xf32> to vector<8x8xf32>
    %92 = arith.truncf %91 : vector<8x8xf32> to vector<8x8xbf16>
    %cst_31 = arith.constant dense<0.000000e+00> : vector<8x8xf32>
    %93 = tpu.matmul %88, %90, %cst_31 {dimension_numbers = #tpu.dot_dimension_numbers<[1], [1], [0], [0], [0, 0, 1, 0], [], []>} : vector<8x8xbf16>, vector<8x8xbf16>, vector<8x8xf32> -> vector<8x8xf32>
    %cst_32 = arith.constant dense<0xFF800000> : vector<8xf32>
    %94 = vector.multi_reduction <maximumf>, %93, %cst_32 [1] : vector<8x8xf32> to vector<8xf32>
    %95 = vector.shape_cast %94 : vector<8xf32> to vector<8x1xf32>
    %96 = vector.broadcast %95 : vector<8x1xf32> to vector<8x8xf32>
    %97 = arith.subf %93, %96 : vector<8x8xf32>
    %98 = math.exp %97 : vector<8x8xf32>
    %cst_33 = arith.constant dense<0.000000e+00> : vector<8xf32>
    %99 = vector.multi_reduction <add>, %98, %cst_33 [1] : vector<8x8xf32> to vector<8xf32>
    %100 = vector.shape_cast %99 : vector<8xf32> to vector<8x1xf32>
    %101 = arith.truncf %98 : vector<8x8xf32> to vector<8x8xbf16>
    %cst_34 = arith.constant dense<0.000000e+00> : vector<8x8xf32>
    %102 = tpu.matmul %101, %92, %cst_34 {dimension_numbers = #tpu.dot_dimension_numbers<[1], [0], [0], [1], [0, 0, 1, 1], [], []>} : vector<8x8xbf16>, vector<8x8xbf16>, vector<8x8xf32> -> vector<8x8xf32>
    %103 = tpu.reciprocal %100 : vector<8x1xf32> -> vector<8x1xf32>
    %104 = vector.broadcast %103 : vector<8x1xf32> to vector<8x8xf32>
    %105 = arith.mulf %102, %104 : vector<8x8xf32>
    %106 = arith.truncf %105 : vector<8x8xf32> to vector<8x8xbf16>
    %c2 = arith.constant 2 : index
    %c0_35 = arith.constant 0 : index
    %c0_36 = arith.constant 0 : index
    %107 = vector.load %arg6[%c2, %c0_35, %c0_36] : memref<4x8x32xbf16, #tpu.memory_space<vmem>>, vector<1x8x32xbf16>
    %108 = vector.shape_cast %107 : vector<1x8x32xbf16> to vector<8x32xbf16>
    %cst_37 = arith.constant dense<0.000000e+00> : vector<8x32xf32>
    %109 = tpu.matmul %106, %108, %cst_37 {dimension_numbers = #tpu.dot_dimension_numbers<[1], [0], [0], [1], [0, 0, 1, 1], [], []>} : vector<8x8xbf16>, vector<8x32xbf16>, vector<8x32xf32> -> vector<8x32xf32>
    %110 = arith.addf %86, %109 : vector<8x32xf32>
    %111 = vector.extract_strided_slice %37 {offsets = [0, 24], sizes = [8, 8], strides = [1, 1]} : vector<8x96xf32> to vector<8x8xf32>
    %112 = arith.truncf %111 : vector<8x8xf32> to vector<8x8xbf16>
    %113 = vector.extract_strided_slice %37 {offsets = [0, 56], sizes = [8, 8], strides = [1, 1]} : vector<8x96xf32> to vector<8x8xf32>
    %114 = arith.truncf %113 : vector<8x8xf32> to vector<8x8xbf16>
    %115 = vector.extract_strided_slice %37 {offsets = [0, 88], sizes = [8, 8], strides = [1, 1]} : vector<8x96xf32> to vector<8x8xf32>
    %116 = arith.truncf %115 : vector<8x8xf32> to vector<8x8xbf16>
    %cst_38 = arith.constant dense<0.000000e+00> : vector<8x8xf32>
    %117 = tpu.matmul %112, %114, %cst_38 {dimension_numbers = #tpu.dot_dimension_numbers<[1], [1], [0], [0], [0, 0, 1, 0], [], []>} : vector<8x8xbf16>, vector<8x8xbf16>, vector<8x8xf32> -> vector<8x8xf32>
    %cst_39 = arith.constant dense<0xFF800000> : vector<8xf32>
    %118 = vector.multi_reduction <maximumf>, %117, %cst_39 [1] : vector<8x8xf32> to vector<8xf32>
    %119 = vector.shape_cast %118 : vector<8xf32> to vector<8x1xf32>
    %120 = vector.broadcast %119 : vector<8x1xf32> to vector<8x8xf32>
    %121 = arith.subf %117, %120 : vector<8x8xf32>
    %122 = math.exp %121 : vector<8x8xf32>
    %cst_40 = arith.constant dense<0.000000e+00> : vector<8xf32>
    %123 = vector.multi_reduction <add>, %122, %cst_40 [1] : vector<8x8xf32> to vector<8xf32>
    %124 = vector.shape_cast %123 : vector<8xf32> to vector<8x1xf32>
    %125 = arith.truncf %122 : vector<8x8xf32> to vector<8x8xbf16>
    %cst_41 = arith.constant dense<0.000000e+00> : vector<8x8xf32>
    %126 = tpu.matmul %125, %116, %cst_41 {dimension_numbers = #tpu.dot_dimension_numbers<[1], [0], [0], [1], [0, 0, 1, 1], [], []>} : vector<8x8xbf16>, vector<8x8xbf16>, vector<8x8xf32> -> vector<8x8xf32>
    %127 = tpu.reciprocal %124 : vector<8x1xf32> -> vector<8x1xf32>
    %128 = vector.broadcast %127 : vector<8x1xf32> to vector<8x8xf32>
    %129 = arith.mulf %126, %128 : vector<8x8xf32>
    %130 = arith.truncf %129 : vector<8x8xf32> to vector<8x8xbf16>
    %c3 = arith.constant 3 : index
    %c0_42 = arith.constant 0 : index
    %c0_43 = arith.constant 0 : index
    %131 = vector.load %arg6[%c3, %c0_42, %c0_43] : memref<4x8x32xbf16, #tpu.memory_space<vmem>>, vector<1x8x32xbf16>
    %132 = vector.shape_cast %131 : vector<1x8x32xbf16> to vector<8x32xbf16>
    %cst_44 = arith.constant dense<0.000000e+00> : vector<8x32xf32>
    %133 = tpu.matmul %130, %132, %cst_44 {dimension_numbers = #tpu.dot_dimension_numbers<[1], [0], [0], [1], [0, 0, 1, 1], [], []>} : vector<8x8xbf16>, vector<8x32xbf16>, vector<8x32xf32> -> vector<8x32xf32>
    %134 = arith.addf %110, %133 : vector<8x32xf32>
    %135 = arith.addf %1, %134 : vector<8x32xf32>
    %c0_45 = arith.constant 0 : index
    %c0_46 = arith.constant 0 : index
    %136 = vector.load %arg7[%c0_45, %c0_46] : memref<1x32xf32, #tpu.memory_space<vmem>>, vector<1x32xf32>
    %137 = vector.shape_cast %136 : vector<1x32xf32> to vector<32xf32>
    %138 = vector.shape_cast %137 : vector<32xf32> to vector<1x32xf32>
    %139 = vector.broadcast %138 : vector<1x32xf32> to vector<8x32xf32>
    %140 = arith.addf %135, %139 : vector<8x32xf32>
    %c0_47 = arith.constant 0 : index
    %c0_48 = arith.constant 0 : index
    %141 = vector.load %arg8[%c0_47, %c0_48] : memref<1x32xf32, #tpu.memory_space<vmem>>, vector<1x32xf32>
    %142 = vector.shape_cast %141 : vector<1x32xf32> to vector<32xf32>
    %c0_49 = arith.constant 0 : index
    %c0_50 = arith.constant 0 : index
    %143 = vector.load %arg9[%c0_49, %c0_50] : memref<1x32xf32, #tpu.memory_space<vmem>>, vector<1x32xf32>
    %144 = vector.shape_cast %143 : vector<1x32xf32> to vector<32xf32>
    %cst_51 = arith.constant dense<0.000000e+00> : vector<8xf32>
    %145 = vector.multi_reduction <add>, %140, %cst_51 [1] : vector<8x32xf32> to vector<8xf32>
    %146 = vector.shape_cast %145 : vector<8xf32> to vector<8x1xf32>
    %cst_52 = arith.constant 3.200000e+01 : f32
    %147 = vector.broadcast %cst_52 : f32 to vector<8x1xf32>
    %148 = arith.divf %146, %147 : vector<8x1xf32>
    %149 = vector.broadcast %148 : vector<8x1xf32> to vector<8x32xf32>
    %150 = arith.subf %140, %149 : vector<8x32xf32>
    %151 = arith.mulf %150, %150 : vector<8x32xf32>
    %cst_53 = arith.constant dense<0.000000e+00> : vector<8xf32>
    %152 = vector.multi_reduction <add>, %151, %cst_53 [1] : vector<8x32xf32> to vector<8xf32>
    %153 = vector.shape_cast %152 : vector<8xf32> to vector<8x1xf32>
    %cst_54 = arith.constant 3.200000e+01 : f32
    %154 = vector.broadcast %cst_54 : f32 to vector<8x1xf32>
    %155 = arith.divf %153, %154 : vector<8x1xf32>
    %156 = vector.broadcast %148 : vector<8x1xf32> to vector<8x32xf32>
    %157 = arith.subf %140, %156 : vector<8x32xf32>
    %cst_55 = arith.constant 9.99999974E-6 : f32
    %158 = vector.broadcast %cst_55 : f32 to vector<8x1xf32>
    %159 = arith.addf %155, %158 : vector<8x1xf32>
    %160 = math.rsqrt %159 : vector<8x1xf32>
    %161 = vector.broadcast %160 : vector<8x1xf32> to vector<8x32xf32>
    %162 = arith.mulf %157, %161 : vector<8x32xf32>
    %163 = vector.shape_cast %142 : vector<32xf32> to vector<1x32xf32>
    %164 = vector.broadcast %163 : vector<1x32xf32> to vector<8x32xf32>
    %165 = arith.mulf %162, %164 : vector<8x32xf32>
    %166 = vector.shape_cast %144 : vector<32xf32> to vector<1x32xf32>
    %167 = vector.broadcast %166 : vector<1x32xf32> to vector<8x32xf32>
    %168 = arith.addf %165, %167 : vector<8x32xf32>
    %169 = arith.truncf %168 : vector<8x32xf32> to vector<8x32xbf16>
    %c0_56 = arith.constant 0 : index
    %c0_57 = arith.constant 0 : index
    %170 = vector.load %arg10[%c0_56, %c0_57] : memref<32x128xbf16, #tpu.memory_space<vmem>>, vector<32x128xbf16>
    %cst_58 = arith.constant dense<0.000000e+00> : vector<8x128xf32>
    %171 = tpu.matmul %169, %170, %cst_58 {dimension_numbers = #tpu.dot_dimension_numbers<[1], [0], [0], [1], [0, 0, 1, 1], [], []>} : vector<8x32xbf16>, vector<32x128xbf16>, vector<8x128xf32> -> vector<8x128xf32>
    %c0_59 = arith.constant 0 : index
    %c0_60 = arith.constant 0 : index
    %172 = vector.load %arg11[%c0_59, %c0_60] : memref<1x128xf32, #tpu.memory_space<vmem>>, vector<1x128xf32>
    %173 = vector.shape_cast %172 : vector<1x128xf32> to vector<128xf32>
    %174 = vector.shape_cast %173 : vector<128xf32> to vector<1x128xf32>
    %175 = vector.broadcast %174 : vector<1x128xf32> to vector<8x128xf32>
    %176 = arith.addf %171, %175 : vector<8x128xf32>
    %cst_61 = arith.constant -1.702000e+00 : f32
    %177 = vector.broadcast %cst_61 : f32 to vector<8x128xf32>
    %178 = arith.mulf %177, %176 : vector<8x128xf32>
    %179 = math.exp %178 : vector<8x128xf32>
    %cst_62 = arith.constant 1.000000e+00 : f32
    %180 = vector.broadcast %cst_62 : f32 to vector<8x128xf32>
    %181 = arith.addf %180, %179 : vector<8x128xf32>
    %182 = tpu.reciprocal %181 {approx = true} : vector<8x128xf32> -> vector<8x128xf32>
    %183 = arith.mulf %176, %182 : vector<8x128xf32>
    %184 = arith.truncf %183 : vector<8x128xf32> to vector<8x128xbf16>
    %c0_63 = arith.constant 0 : index
    %c0_64 = arith.constant 0 : index
    %185 = vector.load %arg12[%c0_63, %c0_64] : memref<128x32xbf16, #tpu.memory_space<vmem>>, vector<128x32xbf16>
    %cst_65 = arith.constant dense<0.000000e+00> : vector<8x32xf32>
    %186 = tpu.matmul %184, %185, %cst_65 {dimension_numbers = #tpu.dot_dimension_numbers<[1], [0], [0], [1], [0, 0, 1, 1], [], []>} : vector<8x128xbf16>, vector<128x32xbf16>, vector<8x32xf32> -> vector<8x32xf32>
    %c0_66 = arith.constant 0 : index
    %c0_67 = arith.constant 0 : index
    %187 = vector.load %arg13[%c0_66, %c0_67] : memref<1x32xf32, #tpu.memory_space<vmem>>, vector<1x32xf32>
    %188 = vector.shape_cast %187 : vector<1x32xf32> to vector<32xf32>
    %189 = vector.shape_cast %188 : vector<32xf32> to vector<1x32xf32>
    %190 = vector.broadcast %189 : vector<1x32xf32> to vector<8x32xf32>
    %191 = arith.addf %186, %190 : vector<8x32xf32>
    %192 = arith.addf %140, %191 : vector<8x32xf32>
    %c0_68 = arith.constant 0 : index
    %c0_69 = arith.constant 0 : index
    %c0_70 = arith.constant 0 : index
    %193 = vector.load %arg14[%c0_68, %c0_69, %c0_70] : memref<1x8x32xf32, #tpu.memory_space<vmem>>, vector<1x8x32xf32>
    %194 = vector.shape_cast %193 : vector<1x8x32xf32> to vector<8x32xf32>
    %195 = vector.shape_cast %192 : vector<8x32xf32> to vector<1x8x32xf32>
    tpu.vector_store %arg14[%c0_68, %c0_69, %c0_70], %195 {strides = array<i32>} : memref<1x8x32xf32, #tpu.memory_space<vmem>>, vector<1x8x32xf32>,
    return
  }
  func.func @transform_0(%arg0: i32) -> (i32, i32, i32) {
    %c0_i32 = arith.constant 0 : i32
    %c0_i32_0 = arith.constant 0 : i32
    %c0_i32_1 = arith.constant 0 : i32
    return %arg0, %c0_i32, %c0_i32_0 : i32, i32, i32
  }
  func.func @transform_1(%arg0: i32) -> (i32, i32) {
    %c0_i32 = arith.constant 0 : i32
    %c0_i32_0 = arith.constant 0 : i32
    %c0_i32_1 = arith.constant 0 : i32
    return %c0_i32, %c0_i32_0 : i32, i32
  }
  func.func @transform_2(%arg0: i32) -> (i32, i32) {
    %c0_i32 = arith.constant 0 : i32
    %c0_i32_0 = arith.constant 0 : i32
    %c0_i32_1 = arith.constant 0 : i32
    return %c0_i32, %c0_i32_0 : i32, i32
  }
  func.func @transform_3(%arg0: i32) -> (i32, i32) {
    %c0_i32 = arith.constant 0 : i32
    %c0_i32_0 = arith.constant 0 : i32
    %c0_i32_1 = arith.constant 0 : i32
    return %c0_i32, %c0_i32_0 : i32, i32
  }
  func.func @transform_4(%arg0: i32) -> (i32, i32) {
    %c0_i32 = arith.constant 0 : i32
    %c0_i32_0 = arith.constant 0 : i32
    %c0_i32_1 = arith.constant 0 : i32
    return %c0_i32, %c0_i32_0 : i32, i32
  }
  func.func @transform_5(%arg0: i32) -> (i32, i32, i32) {
    %c0_i32 = arith.constant 0 : i32
    %c0_i32_0 = arith.constant 0 : i32
    %c0_i32_1 = arith.constant 0 : i32
    %c0_i32_2 = arith.constant 0 : i32
    return %c0_i32, %c0_i32_0, %c0_i32_1 : i32, i32, i32
  }
  func.func @transform_6(%arg0: i32) -> (i32, i32) {
    %c0_i32 = arith.constant 0 : i32
    %c0_i32_0 = arith.constant 0 : i32
    %c0_i32_1 = arith.constant 0 : i32
    return %c0_i32, %c0_i32_0 : i32, i32
  }
  func.func @transform_7(%arg0: i32) -> (i32, i32) {
    %c0_i32 = arith.constant 0 : i32
    %c0_i32_0 = arith.constant 0 : i32
    %c0_i32_1 = arith.constant 0 : i32
    return %c0_i32, %c0_i32_0 : i32, i32
  }
  func.func @transform_8(%arg0: i32) -> (i32, i32) {
    %c0_i32 = arith.constant 0 : i32
    %c0_i32_0 = arith.constant 0 : i32
    %c0_i32_1 = arith.constant 0 : i32
    return %c0_i32, %c0_i32_0 : i32, i32
  }
  func.func @transform_9(%arg0: i32) -> (i32, i32) {
    %c0_i32 = arith.constant 0 : i32
    %c0_i32_0 = arith.constant 0 : i32
    %c0_i32_1 = arith.constant 0 : i32
    return %c0_i32, %c0_i32_0 : i32, i32
  }
  func.func @transform_10(%arg0: i32) -> (i32, i32) {
    %c0_i32 = arith.constant 0 : i32
    %c0_i32_0 = arith.constant 0 : i32
    %c0_i32_1 = arith.constant 0 : i32
    return %c0_i32, %c0_i32_0 : i32, i32
  }
  func.func @transform_11(%arg0: i32) -> (i32, i32) {
    %c0_i32 = arith.constant 0 : i32
    %c0_i32_0 = arith.constant 0 : i32
    %c0_i32_1 = arith.constant 0 : i32
    return %c0_i32, %c0_i32_0 : i32, i32
  }
  func.func @transform_12(%arg0: i32) -> (i32, i32) {
    %c0_i32 = arith.constant 0 : i32
    %c0_i32_0 = arith.constant 0 : i32
    %c0_i32_1 = arith.constant 0 : i32
    return %c0_i32, %c0_i32_0 : i32, i32
  }
  func.func @transform_13(%arg0: i32) -> (i32, i32, i32) {
    %c0_i32 = arith.constant 0 : i32
    %c0_i32_0 = arith.constant 0 : i32
    %c0_i32_1 = arith.constant 0 : i32
    return %arg0, %c0_i32, %c0_i32_0 : i32, i32, i32
  }
}

module attributes {stable_mosaic.version = 11 : i64} {
  func.func @_residual_block_kernel(%arg0: i32, %arg1: memref<1x8x32xf32, #tpu.memory_space<vmem>>, %arg2: memref<1x32xf32, #tpu.memory_space<vmem>>, %arg3: memref<1x32xf32, #tpu.memory_space<vmem>>, %arg4: memref<32x96xbf16, #tpu.memory_space<vmem>>, %arg5: memref<1x96xf32, #tpu.memory_space<vmem>>, %arg6: memref<4x8x32xbf16, #tpu.memory_space<vmem>>, %arg7: memref<1x32xf32, #tpu.memory_space<vmem>>, %arg8: memref<1x32xf32, #tpu.memory_space<vmem>>, %arg9: memref<1x32xf32, #tpu.memory_space<vmem>>, %arg10: memref<32x128xbf16, #tpu.memory_space<vmem>>, %arg11: memref<1x128xf32, #tpu.memory_space<vmem>>, %arg12: memref<128x32xbf16, #tpu.memory_space<vmem>>, %arg13: memref<1x32xf32, #tpu.memory_space<vmem>>, %arg14: memref<1x8x32xf32, #tpu.memory_space<vmem>>) attributes {dimension_semantics = [#tpu.dimension_semantics<parallel>], iteration_bounds = array<i64: 2>, scalar_prefetch = 0 : i64, scratch_operands = 0 : i64, tpu.core_type = #tpu.core_type<tc>, window_params = [{transform_indices = @transform_0, window_bounds = array<i64: 1, 8, 32>}, {pipeline_mode = #tpu.pipeline_mode<synchronous>, transform_indices = @transform_1, window_bounds = array<i64: 1, 32>}, {pipeline_mode = #tpu.pipeline_mode<synchronous>, transform_indices = @transform_2, window_bounds = array<i64: 1, 32>}, {pipeline_mode = #tpu.pipeline_mode<synchronous>, transform_indices = @transform_3, window_bounds = array<i64: 32, 96>}, {pipeline_mode = #tpu.pipeline_mode<synchronous>, transform_indices = @transform_4, window_bounds = array<i64: 1, 96>}, {pipeline_mode = #tpu.pipeline_mode<synchronous>, transform_indices = @transform_5, window_bounds = array<i64: 4, 8, 32>}, {pipeline_mode = #tpu.pipeline_mode<synchronous>, transform_indices = @transform_6, window_bounds = array<i64: 1, 32>}, {pipeline_mode = #tpu.pipeline_mode<synchronous>, transform_indices = @transform_7, window_bounds = array<i64: 1, 32>}, {pipeline_mode = #tpu.pipeline_mode<synchronous>, transform_indices = @transform_8, window_bounds = array<i64: 1, 32>}, {pipeline_mode = #tpu.pipeline_mode<synchronous>, transform_indices = @transform_9, window_bounds = array<i64: 32, 128>}, {pipeline_mode = #tpu.pipeline_mode<synchronous>, transform_indices = @transform_10, window_bounds = array<i64: 1, 128>}, {pipeline_mode = #tpu.pipeline_mode<synchronous>, transform_indices = @transform_11, window_bounds = array<i64: 128, 32>}, {pipeline_mode = #tpu.pipeline_mode<synchronous>, transform_indices = @transform_12, window_bounds = array<i64: 1, 32>}, {transform_indices = @transform_13, window_bounds = array<i64: 1, 8, 32>}]} {
    %c0 = arith.constant 0 : index
    %c0_0 = arith.constant 0 : index
    %c0_1 = arith.constant 0 : index
    %0 = vector.load %arg1[%c0, %c0_0, %c0_1] : memref<1x8x32xf32, #tpu.memory_space<vmem>>, vector<1x8x32xf32>
    %1 = vector.shape_cast %0 : vector<1x8x32xf32> to vector<8x32xf32>
    %c0_2 = arith.constant 0 : index
    %c0_3 = arith.constant 0 : index
    %2 = vector.load %arg2[%c0_2, %c0_3] : memref<1x32xf32, #tpu.memory_space<vmem>>, vector<1x32xf32>
    %3 = vector.shape_cast %2 : vector<1x32xf32> to vector<32xf32>
    %c0_4 = arith.constant 0 : index
    %c0_5 = arith.constant 0 : index
    %4 = vector.load %arg3[%c0_4, %c0_5] : memref<1x32xf32, #tpu.memory_space<vmem>>, vector<1x32xf32>
    %5 = vector.shape_cast %4 : vector<1x32xf32> to vector<32xf32>
    %cst = arith.constant dense<0.000000e+00> : vector<8xf32>
    %6 = vector.multi_reduction <add>, %1, %cst [1] : vector<8x32xf32> to vector<8xf32>
    %7 = vector.shape_cast %6 : vector<8xf32> to vector<8x1xf32>
    %cst_6 = arith.constant 3.200000e+01 : f32
    %8 = vector.broadcast %cst_6 : f32 to vector<8x1xf32>
    %9 = arith.divf %7, %8 : vector<8x1xf32>
    %10 = vector.broadcast %9 : vector<8x1xf32> to vector<8x32xf32>
    %11 = arith.subf %1, %10 : vector<8x32xf32>
    %12 = arith.mulf %11, %11 : vector<8x32xf32>
    %cst_7 = arith.constant dense<0.000000e+00> : vector<8xf32>
    %13 = vector.multi_reduction <add>, %12, %cst_7 [1] : vector<8x32xf32> to vector<8xf32>
    %14 = vector.shape_cast %13 : vector<8xf32> to vector<8x1xf32>
    %cst_8 = arith.constant 3.200000e+01 : f32
    %15 = vector.broadcast %cst_8 : f32 to vector<8x1xf32>
    %16 = arith.divf %14, %15 : vector<8x1xf32>
    %17 = vector.broadcast %9 : vector<8x1xf32> to vector<8x32xf32>
    %18 = arith.subf %1, %17 : vector<8x32xf32>
    %cst_9 = arith.constant 9.99999974E-6 : f32
    %19 = vector.broadcast %cst_9 : f32 to vector<8x1xf32>
    %20 = arith.addf %16, %19 : vector<8x1xf32>
    %21 = math.rsqrt %20 : vector<8x1xf32>
    %22 = vector.broadcast %21 : vector<8x1xf32> to vector<8x32xf32>
    %23 = arith.mulf %18, %22 : vector<8x32xf32>
    %24 = vector.shape_cast %3 : vector<32xf32> to vector<1x32xf32>
    %25 = vector.broadcast %24 : vector<1x32xf32> to vector<8x32xf32>
    %26 = arith.mulf %23, %25 : vector<8x32xf32>
    %27 = vector.shape_cast %5 : vector<32xf32> to vector<1x32xf32>
    %28 = vector.broadcast %27 : vector<1x32xf32> to vector<8x32xf32>
    %29 = arith.addf %26, %28 : vector<8x32xf32>
    %30 = arith.truncf %29 : vector<8x32xf32> to vector<8x32xbf16>
    %c0_10 = arith.constant 0 : index
    %c0_11 = arith.constant 0 : index
    %31 = vector.load %arg4[%c0_10, %c0_11] : memref<32x96xbf16, #tpu.memory_space<vmem>>, vector<32x96xbf16>
    %cst_12 = arith.constant dense<0.000000e+00> : vector<8x96xf32>
    %32 = tpu.matmul %30, %31, %cst_12 {dimension_numbers = #tpu.dot_dimension_numbers<[1], [0], [0], [1], [0, 0, 1, 1], [], []>} : vector<8x32xbf16>, vector<32x96xbf16>, vector<8x96xf32> -> vector<8x96xf32>
    %c0_13 = arith.constant 0 : index
    %c0_14 = arith.constant 0 : index
    %33 = vector.load %arg5[%c0_13, %c0_14] : memref<1x96xf32, #tpu.memory_space<vmem>>, vector<1x96xf32>
    %34 = vector.shape_cast %33 : vector<1x96xf32> to vector<96xf32>
    %35 = vector.shape_cast %34 : vector<96xf32> to vector<1x96xf32>
    %36 = vector.broadcast %35 : vector<1x96xf32> to vector<8x96xf32>
    %37 = arith.addf %32, %36 : vector<8x96xf32>
    %cst_15 = arith.constant 0.000000e+00 : f32
    %38 = vector.broadcast %cst_15 : f32 to vector<8x32xf32>
    %39 = vector.extract_strided_slice %37 {offsets = [0, 0], sizes = [8, 8], strides = [1, 1]} : vector<8x96xf32> to vector<8x8xf32>
    %40 = arith.truncf %39 : vector<8x8xf32> to vector<8x8xbf16>
    %41 = vector.extract_strided_slice %37 {offsets = [0, 32], sizes = [8, 8], strides = [1, 1]} : vector<8x96xf32> to vector<8x8xf32>
    %42 = arith.truncf %41 : vector<8x8xf32> to vector<8x8xbf16>
    %43 = vector.extract_strided_slice %37 {offsets = [0, 64], sizes = [8, 8], strides = [1, 1]} : vector<8x96xf32> to vector<8x8xf32>
    %44 = arith.truncf %43 : vector<8x8xf32> to vector<8x8xbf16>
    %cst_16 = arith.constant dense<0.000000e+00> : vector<8x8xf32>
    %45 = tpu.matmul %40, %42, %cst_16 {dimension_numbers = #tpu.dot_dimension_numbers<[1], [1], [0], [0], [0, 0, 1, 0], [], []>} : vector<8x8xbf16>, vector<8x8xbf16>, vector<8x8xf32> -> vector<8x8xf32>
    %cst_17 = arith.constant dense<0xFF800000> : vector<8xf32>
    %46 = vector.multi_reduction <maximumf>, %45, %cst_17 [1] : vector<8x8xf32> to vector<8xf32>
    %47 = vector.shape_cast %46 : vector<8xf32> to vector<8x1xf32>
    %48 = vector.broadcast %47 : vector<8x1xf32> to vector<8x8xf32>
    %49 = arith.subf %45, %48 : vector<8x8xf32>
    %50 = math.exp %49 : vector<8x8xf32>
    %cst_18 = arith.constant dense<0.000000e+00> : vector<8xf32>
    %51 = vector.multi_reduction <add>, %50, %cst_18 [1] : vector<8x8xf32> to vector<8xf32>
    %52 = vector.shape_cast %51 : vector<8xf32> to vector<8x1xf32>
    %53 = arith.truncf %50 : vector<8x8xf32> to vector<8x8xbf16>
    %cst_19 = arith.constant dense<0.000000e+00> : vector<8x8xf32>
    %54 = tpu.matmul %53, %44, %cst_19 {dimension_numbers = #tpu.dot_dimension_numbers<[1], [0], [0], [1], [0, 0, 1, 1], [], []>} : vector<8x8xbf16>, vector<8x8xbf16>, vector<8x8xf32> -> vector<8x8xf32>
    %55 = tpu.reciprocal %52 : vector<8x1xf32> -> vector<8x1xf32>
    %56 = vector.broadcast %55 : vector<8x1xf32> to vector<8x8xf32>
    %57 = arith.mulf %54, %56 : vector<8x8xf32>
    %58 = arith.truncf %57 : vector<8x8xf32> to vector<8x8xbf16>
    %c0_20 = arith.constant 0 : index
    %c0_21 = arith.constant 0 : index
    %c0_22 = arith.constant 0 : index
    %59 = vector.load %arg6[%c0_20, %c0_21, %c0_22] : memref<4x8x32xbf16, #tpu.memory_space<vmem>>, vector<1x8x32xbf16>
    %60 = vector.shape_cast %59 : vector<1x8x32xbf16> to vector<8x32xbf16>
    %cst_23 = arith.constant dense<0.000000e+00> : vector<8x32xf32>
    %61 = tpu.matmul %58, %60, %cst_23 {dimension_numbers = #tpu.dot_dimension_numbers<[1], [0], [0], [1], [0, 0, 1, 1], [], []>} : vector<8x8xbf16>, vector<8x32xbf16>, vector<8x32xf32> -> vector<8x32xf32>
    %62 = arith.addf %38, %61 : vector<8x32xf32>
    %63 = vector.extract_strided_slice %37 {offsets = [0, 8], sizes = [8, 8], strides = [1, 1]} : vector<8x96xf32> to vector<8x8xf32>
    %64 = arith.truncf %63 : vector<8x8xf32> to vector<8x8xbf16>
    %65 = vector.extract_strided_slice %37 {offsets = [0, 40], sizes = [8, 8], strides = [1, 1]} : vector<8x96xf32> to vector<8x8xf32>
    %66 = arith.truncf %65 : vector<8x8xf32> to vector<8x8xbf16>
    %67 = vector.extract_strided_slice %37 {offsets = [0, 72], sizes = [8, 8], strides = [1, 1]} : vector<8x96xf32> to vector<8x8xf32>
    %68 = arith.truncf %67 : vector<8x8xf32> to vector<8x8xbf16>
    %cst_24 = arith.constant dense<0.000000e+00> : vector<8x8xf32>
    %69 = tpu.matmul %64, %66, %cst_24 {dimension_numbers = #tpu.dot_dimension_numbers<[1], [1], [0], [0], [0, 0, 1, 0], [], []>} : vector<8x8xbf16>, vector<8x8xbf16>, vector<8x8xf32> -> vector<8x8xf32>
    %cst_25 = arith.constant dense<0xFF800000> : vector<8xf32>
    %70 = vector.multi_reduction <maximumf>, %69, %cst_25 [1] : vector<8x8xf32> to vector<8xf32>
    %71 = vector.shape_cast %70 : vector<8xf32> to vector<8x1xf32>
    %72 = vector.broadcast %71 : vector<8x1xf32> to vector<8x8xf32>
    %73 = arith.subf %69, %72 : vector<8x8xf32>
    %74 = math.exp %73 : vector<8x8xf32>
    %cst_26 = arith.constant dense<0.000000e+00> : vector<8xf32>
    %75 = vector.multi_reduction <add>, %74, %cst_26 [1] : vector<8x8xf32> to vector<8xf32>
    %76 = vector.shape_cast %75 : vector<8xf32> to vector<8x1xf32>
    %77 = arith.truncf %74 : vector<8x8xf32> to vector<8x8xbf16>
    %cst_27 = arith.constant dense<0.000000e+00> : vector<8x8xf32>
    %78 = tpu.matmul %77, %68, %cst_27 {dimension_numbers = #tpu.dot_dimension_numbers<[1], [0], [0], [1], [0, 0, 1, 1], [], []>} : vector<8x8xbf16>, vector<8x8xbf16>, vector<8x8xf32> -> vector<8x8xf32>
    %79 = tpu.reciprocal %76 : vector<8x1xf32> -> vector<8x1xf32>
    %80 = vector.broadcast %79 : vector<8x1xf32> to vector<8x8xf32>
    %81 = arith.mulf %78, %80 : vector<8x8xf32>
    %82 = arith.truncf %81 : vector<8x8xf32> to vector<8x8xbf16>
    %c1 = arith.constant 1 : index
    %c0_28 = arith.constant 0 : index
    %c0_29 = arith.constant 0 : index
    %83 = vector.load %arg6[%c1, %c0_28, %c0_29] : memref<4x8x32xbf16, #tpu.memory_space<vmem>>, vector<1x8x32xbf16>
    %84 = vector.shape_cast %83 : vector<1x8x32xbf16> to vector<8x32xbf16>
    %cst_30 = arith.constant dense<0.000000e+00> : vector<8x32xf32>
    %85 = tpu.matmul %82, %84, %cst_30 {dimension_numbers = #tpu.dot_dimension_numbers<[1], [0], [0], [1], [0, 0, 1, 1], [], []>} : vector<8x8xbf16>, vector<8x32xbf16>, vector<8x32xf32> -> vector<8x32xf32>
    %86 = arith.addf %62, %85 : vector<8x32xf32>
    %87 = vector.extract_strided_slice %37 {offsets = [0, 16], sizes = [8, 8], strides = [1, 1]} : vector<8x96xf32> to vector<8x8xf32>
    %88 = arith.truncf %87 : vector<8x8xf32> to vector<8x8xbf16>
    %89 = vector.extract_strided_slice %37 {offsets = [0, 48], sizes = [8, 8], strides = [1, 1]} : vector<8x96xf32> to vector<8x8xf32>
    %90 = arith.truncf %89 : vector<8x8xf32> to vector<8x8xbf16>
    %91 = vector.extract_strided_slice %37 {offsets = [0, 80], sizes = [8, 8], strides = [1, 1]} : vector<8x96xf32> to vector<8x8xf32>
    %92 = arith.truncf %91 : vector<8x8xf32> to vector<8x8xbf16>
    %cst_31 = arith.constant dense<0.000000e+00> : vector<8x8xf32>
    %93 = tpu.matmul %88, %90, %cst_31 {dimension_numbers = #tpu.dot_dimension_numbers<[1], [1], [0], [0], [0, 0, 1, 0], [], []>} : vector<8x8xbf16>, vector<8x8xbf16>, vector<8x8xf32> -> vector<8x8xf32>
    %cst_32 = arith.constant dense<0xFF800000> : vector<8xf32>
    %94 = vector.multi_reduction <maximumf>, %93, %cst_32 [1] : vector<8x8xf32> to vector<8xf32>
    %95 = vector.shape_cast %94 : vector<8xf32> to vector<8x1xf32>
    %96 = vector.broadcast %95 : vector<8x1xf32> to vector<8x8xf32>
    %97 = arith.subf %93, %96 : vector<8x8xf32>
    %98 = math.exp %97 : vector<8x8xf32>
    %cst_33 = arith.constant dense<0.000000e+00> : vector<8xf32>
    %99 = vector.multi_reduction <add>, %98, %cst_33 [1] : vector<8x8xf32> to vector<8xf32>
    %100 = vector.shape_cast %99 : vector<8xf32> to vector<8x1xf32>
    %101 = arith.truncf %98 : vector<8x8xf32> to vector<8x8xbf16>
    %cst_34 = arith.constant dense<0.000000e+00> : vector<8x8xf32>
    %102 = tpu.matmul %101, %92, %cst_34 {dimension_numbers = #tpu.dot_dimension_numbers<[1], [0], [0], [1], [0, 0, 1, 1], [], []>} : vector<8x8xbf16>, vector<8x8xbf16>, vector<8x8xf32> -> vector<8x8xf32>
    %103 = tpu.reciprocal %100 : vector<8x1xf32> -> vector<8x1xf32>
    %104 = vector.broadcast %103 : vector<8x1xf32> to vector<8x8xf32>
    %105 = arith.mulf %102, %104 : vector<8x8xf32>
    %106 = arith.truncf %105 : vector<8x8xf32> to vector<8x8xbf16>
    %c2 = arith.constant 2 : index
    %c0_35 = arith.constant 0 : index
    %c0_36 = arith.constant 0 : index
    %107 = vector.load %arg6[%c2, %c0_35, %c0_36] : memref<4x8x32xbf16, #tpu.memory_space<vmem>>, vector<1x8x32xbf16>
    %108 = vector.shape_cast %107 : vector<1x8x32xbf16> to vector<8x32xbf16>
    %cst_37 = arith.constant dense<0.000000e+00> : vector<8x32xf32>
    %109 = tpu.matmul %106, %108, %cst_37 {dimension_numbers = #tpu.dot_dimension_numbers<[1], [0], [0], [1], [0, 0, 1, 1], [], []>} : vector<8x8xbf16>, vector<8x32xbf16>, vector<8x32xf32> -> vector<8x32xf32>
    %110 = arith.addf %86, %109 : vector<8x32xf32>
    %111 = vector.extract_strided_slice %37 {offsets = [0, 24], sizes = [8, 8], strides = [1, 1]} : vector<8x96xf32> to vector<8x8xf32>
    %112 = arith.truncf %111 : vector<8x8xf32> to vector<8x8xbf16>
    %113 = vector.extract_strided_slice %37 {offsets = [0, 56], sizes = [8, 8], strides = [1, 1]} : vector<8x96xf32> to vector<8x8xf32>
    %114 = arith.truncf %113 : vector<8x8xf32> to vector<8x8xbf16>
    %115 = vector.extract_strided_slice %37 {offsets = [0, 88], sizes = [8, 8], strides = [1, 1]} : vector<8x96xf32> to vector<8x8xf32>
    %116 = arith.truncf %115 : vector<8x8xf32> to vector<8x8xbf16>
    %cst_38 = arith.constant dense<0.000000e+00> : vector<8x8xf32>
    %117 = tpu.matmul %112, %114, %cst_38 {dimension_numbers = #tpu.dot_dimension_numbers<[1], [1], [0], [0], [0, 0, 1, 0], [], []>} : vector<8x8xbf16>, vector<8x8xbf16>, vector<8x8xf32> -> vector<8x8xf32>
    %cst_39 = arith.constant dense<0xFF800000> : vector<8xf32>
    %118 = vector.multi_reduction <maximumf>, %117, %cst_39 [1] : vector<8x8xf32> to vector<8xf32>
    %119 = vector.shape_cast %118 : vector<8xf32> to vector<8x1xf32>
    %120 = vector.broadcast %119 : vector<8x1xf32> to vector<8x8xf32>
    %121 = arith.subf %117, %120 : vector<8x8xf32>
    %122 = math.exp %121 : vector<8x8xf32>
    %cst_40 = arith.constant dense<0.000000e+00> : vector<8xf32>
    %123 = vector.multi_reduction <add>, %122, %cst_40 [1] : vector<8x8xf32> to vector<8xf32>
    %124 = vector.shape_cast %123 : vector<8xf32> to vector<8x1xf32>
    %125 = arith.truncf %122 : vector<8x8xf32> to vector<8x8xbf16>
    %cst_41 = arith.constant dense<0.000000e+00> : vector<8x8xf32>
    %126 = tpu.matmul %125, %116, %cst_41 {dimension_numbers = #tpu.dot_dimension_numbers<[1], [0], [0], [1], [0, 0, 1, 1], [], []>} : vector<8x8xbf16>, vector<8x8xbf16>, vector<8x8xf32> -> vector<8x8xf32>
    %127 = tpu.reciprocal %124 : vector<8x1xf32> -> vector<8x1xf32>
    %128 = vector.broadcast %127 : vector<8x1xf32> to vector<8x8xf32>
    %129 = arith.mulf %126, %128 : vector<8x8xf32>
    %130 = arith.truncf %129 : vector<8x8xf32> to vector<8x8xbf16>
    %c3 = arith.constant 3 : index
    %c0_42 = arith.constant 0 : index
    %c0_43 = arith.constant 0 : index
    %131 = vector.load %arg6[%c3, %c0_42, %c0_43] : memref<4x8x32xbf16, #tpu.memory_space<vmem>>, vector<1x8x32xbf16>
    %132 = vector.shape_cast %131 : vector<1x8x32xbf16> to vector<8x32xbf16>
    %cst_44 = arith.constant dense<0.000000e+00> : vector<8x32xf32>
    %133 = tpu.matmul %130, %132, %cst_44 {dimension_numbers = #tpu.dot_dimension_numbers<[1], [0], [0], [1], [0, 0, 1, 1], [], []>} : vector<8x8xbf16>, vector<8x32xbf16>, vector<8x32xf32> -> vector<8x32xf32>
    %134 = arith.addf %110, %133 : vector<8x32xf32>
    %135 = arith.addf %1, %134 : vector<8x32xf32>
    %c0_45 = arith.constant 0 : index
    %c0_46 = arith.constant 0 : index
    %136 = vector.load %arg7[%c0_45, %c0_46] : memref<1x32xf32, #tpu.memory_space<vmem>>, vector<1x32xf32>
    %137 = vector.shape_cast %136 : vector<1x32xf32> to vector<32xf32>
    %138 = vector.shape_cast %137 : vector<32xf32> to vector<1x32xf32>
    %139 = vector.broadcast %138 : vector<1x32xf32> to vector<8x32xf32>
    %140 = arith.addf %135, %139 : vector<8x32xf32>
    %c0_47 = arith.constant 0 : index
    %c0_48 = arith.constant 0 : index
    %141 = vector.load %arg8[%c0_47, %c0_48] : memref<1x32xf32, #tpu.memory_space<vmem>>, vector<1x32xf32>
    %142 = vector.shape_cast %141 : vector<1x32xf32> to vector<32xf32>
    %c0_49 = arith.constant 0 : index
    %c0_50 = arith.constant 0 : index
    %143 = vector.load %arg9[%c0_49, %c0_50] : memref<1x32xf32, #tpu.memory_space<vmem>>, vector<1x32xf32>
    %144 = vector.shape_cast %143 : vector<1x32xf32> to vector<32xf32>
    %cst_51 = arith.constant dense<0.000000e+00> : vector<8xf32>
    %145 = vector.multi_reduction <add>, %140, %cst_51 [1] : vector<8x32xf32> to vector<8xf32>
    %146 = vector.shape_cast %145 : vector<8xf32> to vector<8x1xf32>
    %cst_52 = arith.constant 3.200000e+01 : f32
    %147 = vector.broadcast %cst_52 : f32 to vector<8x1xf32>
    %148 = arith.divf %146, %147 : vector<8x1xf32>
    %149 = vector.broadcast %148 : vector<8x1xf32> to vector<8x32xf32>
    %150 = arith.subf %140, %149 : vector<8x32xf32>
    %151 = arith.mulf %150, %150 : vector<8x32xf32>
    %cst_53 = arith.constant dense<0.000000e+00> : vector<8xf32>
    %152 = vector.multi_reduction <add>, %151, %cst_53 [1] : vector<8x32xf32> to vector<8xf32>
    %153 = vector.shape_cast %152 : vector<8xf32> to vector<8x1xf32>
    %cst_54 = arith.constant 3.200000e+01 : f32
    %154 = vector.broadcast %cst_54 : f32 to vector<8x1xf32>
    %155 = arith.divf %153, %154 : vector<8x1xf32>
    %156 = vector.broadcast %148 : vector<8x1xf32> to vector<8x32xf32>
    %157 = arith.subf %140, %156 : vector<8x32xf32>
    %cst_55 = arith.constant 9.99999974E-6 : f32
    %158 = vector.broadcast %cst_55 : f32 to vector<8x1xf32>
    %159 = arith.addf %155, %158 : vector<8x1xf32>
    %160 = math.rsqrt %159 : vector<8x1xf32>
    %161 = vector.broadcast %160 : vector<8x1xf32> to vector<8x32xf32>
    %162 = arith.mulf %157, %161 : vector<8x32xf32>
    %163 = vector.shape_cast %142 : vector<32xf32> to vector<1x32xf32>
    %164 = vector.broadcast %163 : vector<1x32xf32> to vector<8x32xf32>
    %165 = arith.mulf %162, %164 : vector<8x32xf32>
    %166 = vector.shape_cast %144 : vector<32xf32> to vector<1x32xf32>
    %167 = vector.broadcast %166 : vector<1x32xf32> to vector<8x32xf32>
    %168 = arith.addf %165, %167 : vector<8x32xf32>
    %169 = arith.truncf %168 : vector<8x32xf32> to vector<8x32xbf16>
    %c0_56 = arith.constant 0 : index
    %c0_57 = arith.constant 0 : index
    %170 = vector.load %arg10[%c0_56, %c0_57] : memref<32x128xbf16, #tpu.memory_space<vmem>>, vector<32x128xbf16>
    %cst_58 = arith.constant dense<0.000000e+00> : vector<8x128xf32>
    %171 = tpu.matmul %169, %170, %cst_58 {dimension_numbers = #tpu.dot_dimension_numbers<[1], [0], [0], [1], [0, 0, 1, 1], [], []>} : vector<8x32xbf16>, vector<32x128xbf16>, vector<8x128xf32> -> vector<8x128xf32>
    %c0_59 = arith.constant 0 : index
    %c0_60 = arith.constant 0 : index
    %172 = vector.load %arg11[%c0_59, %c0_60] : memref<1x128xf32, #tpu.memory_space<vmem>>, vector<1x128xf32>
    %173 = vector.shape_cast %172 : vector<1x128xf32> to vector<128xf32>
    %174 = vector.shape_cast %173 : vector<128xf32> to vector<1x128xf32>
    %175 = vector.broadcast %174 : vector<1x128xf32> to vector<8x128xf32>
    %176 = arith.addf %171, %175 : vector<8x128xf32>
    %cst_61 = arith.constant -1.702000e+00 : f32
    %177 = vector.broadcast %cst_61 : f32 to vector<8x128xf32>
    %178 = arith.mulf %177, %176 : vector<8x128xf32>
    %179 = math.exp %178 : vector<8x128xf32>
    %cst_62 = arith.constant 1.000000e+00 : f32
    %180 = vector.broadcast %cst_62 : f32 to vector<8x128xf32>
    %181 = arith.addf %180, %179 : vector<8x128xf32>
    %182 = tpu.reciprocal %181 {approx = true} : vector<8x128xf32> -> vector<8x128xf32>
    %183 = arith.mulf %176, %182 : vector<8x128xf32>
    %184 = arith.truncf %183 : vector<8x128xf32> to vector<8x128xbf16>
    %c0_63 = arith.constant 0 : index
    %c0_64 = arith.constant 0 : index
    %185 = vector.load %arg12[%c0_63, %c0_64] : memref<128x32xbf16, #tpu.memory_space<vmem>>, vector<128x32xbf16>
    %cst_65 = arith.constant dense<0.000000e+00> : vector<8x32xf32>
    %186 = tpu.matmul %184, %185, %cst_65 {dimension_numbers = #tpu.dot_dimension_numbers<[1], [0], [0], [1], [0, 0, 1, 1], [], []>} : vector<8x128xbf16>, vector<128x32xbf16>, vector<8x32xf32> -> vector<8x32xf32>
    %c0_66 = arith.constant 0 : index
    %c0_67 = arith.constant 0 : index
    %187 = vector.load %arg13[%c0_66, %c0_67] : memref<1x32xf32, #tpu.memory_space<vmem>>, vector<1x32xf32>
    %188 = vector.shape_cast %187 : vector<1x32xf32> to vector<32xf32>
    %189 = vector.shape_cast %188 : vector<32xf32> to vector<1x32xf32>
    %190 = vector.broadcast %189 : vector<1x32xf32> to vector<8x32xf32>
    %191 = arith.addf %186, %190 : vector<8x32xf32>
    %192 = arith.addf %140, %191 : vector<8x32xf32>
    %c0_68 = arith.constant 0 : index
    %c0_69 = arith.constant 0 : index
    %c0_70 = arith.constant 0 : index
    %193 = vector.load %arg14[%c0_68, %c0_69, %c0_70] : memref<1x8x32xf32, #tpu.memory_space<vmem>>, vector<1x8x32xf32>
    %194 = vector.shape_cast %193 : vector<1x8x32xf32> to vector<8x32xf32>
    %195 = vector.shape_cast %192 : vector<8x32xf32> to vector<1x8x32xf32>
    tpu.vector_store %arg14[%c0_68, %c0_69, %c0_70], %195 {strides = array<i32>} : memref<1x8x32xf32, #tpu.memory_space<vmem>>, vector<1x8x32xf32>,
    return
  }
  func.func @transform_0(%arg0: i32) -> (i32, i32, i32) {
    %c0_i32 = arith.constant 0 : i32
    %c0_i32_0 = arith.constant 0 : i32
    %c0_i32_1 = arith.constant 0 : i32
    return %arg0, %c0_i32, %c0_i32_0 : i32, i32, i32
  }
  func.func @transform_1(%arg0: i32) -> (i32, i32) {
    %c0_i32 = arith.constant 0 : i32
    %c0_i32_0 = arith.constant 0 : i32
    %c0_i32_1 = arith.constant 0 : i32
    return %c0_i32, %c0_i32_0 : i32, i32
  }
  func.func @transform_2(%arg0: i32) -> (i32, i32) {
    %c0_i32 = arith.constant 0 : i32
    %c0_i32_0 = arith.constant 0 : i32
    %c0_i32_1 = arith.constant 0 : i32
    return %c0_i32, %c0_i32_0 : i32, i32
  }
  func.func @transform_3(%arg0: i32) -> (i32, i32) {
    %c0_i32 = arith.constant 0 : i32
    %c0_i32_0 = arith.constant 0 : i32
    %c0_i32_1 = arith.constant 0 : i32
    return %c0_i32, %c0_i32_0 : i32, i32
  }
  func.func @transform_4(%arg0: i32) -> (i32, i32) {
    %c0_i32 = arith.constant 0 : i32
    %c0_i32_0 = arith.constant 0 : i32
    %c0_i32_1 = arith.constant 0 : i32
    return %c0_i32, %c0_i32_0 : i32, i32
  }
  func.func @transform_5(%arg0: i32) -> (i32, i32, i32) {
    %c0_i32 = arith.constant 0 : i32
    %c0_i32_0 = arith.constant 0 : i32
    %c0_i32_1 = arith.constant 0 : i32
    %c0_i32_2 = arith.constant 0 : i32
    return %c0_i32, %c0_i32_0, %c0_i32_1 : i32, i32, i32
  }
  func.func @transform_6(%arg0: i32) -> (i32, i32) {
    %c0_i32 = arith.constant 0 : i32
    %c0_i32_0 = arith.constant 0 : i32
    %c0_i32_1 = arith.constant 0 : i32
    return %c0_i32, %c0_i32_0 : i32, i32
  }
  func.func @transform_7(%arg0: i32) -> (i32, i32) {
    %c0_i32 = arith.constant 0 : i32
    %c0_i32_0 = arith.constant 0 : i32
    %c0_i32_1 = arith.constant 0 : i32
    return %c0_i32, %c0_i32_0 : i32, i32
  }
  func.func @transform_8(%arg0: i32) -> (i32, i32) {
    %c0_i32 = arith.constant 0 : i32
    %c0_i32_0 = arith.constant 0 : i32
    %c0_i32_1 = arith.constant 0 : i32
    return %c0_i32, %c0_i32_0 : i32, i32
  }
  func.func @transform_9(%arg0: i32) -> (i32, i32) {
    %c0_i32 = arith.constant 0 : i32
    %c0_i32_0 = arith.constant 0 : i32
    %c0_i32_1 = arith.constant 0 : i32
    return %c0_i32, %c0_i32_0 : i32, i32
  }
  func.func @transform_10(%arg0: i32) -> (i32, i32) {
    %c0_i32 = arith.constant 0 : i32
    %c0_i32_0 = arith.constant 0 : i32
    %c0_i32_1 = arith.constant 0 : i32
    return %c0_i32, %c0_i32_0 : i32, i32
  }
  func.func @transform_11(%arg0: i32) -> (i32, i32) {
    %c0_i32 = arith.constant 0 : i32
    %c0_i32_0 = arith.constant 0 : i32
    %c0_i32_1 = arith.constant 0 : i32
    return %c0_i32, %c0_i32_0 : i32, i32
  }
  func.func @transform_12(%arg0: i32) -> (i32, i32) {
    %c0_i32 = arith.constant 0 : i32
    %c0_i32_0 = arith.constant 0 : i32
    %c0_i32_1 = arith.constant 0 : i32
    return %c0_i32, %c0_i32_0 : i32, i32
  }
  func.func @transform_13(%arg0: i32) -> (i32, i32, i32) {
    %c0_i32 = arith.constant 0 : i32
    %c0_i32_0 = arith.constant 0 : i32
    %c0_i32_1 = arith.constant 0 : i32
    return %arg0, %c0_i32, %c0_i32_0 : i32, i32, i32
  }
}

</mosaic_0001>

<llo_original>
// kernel: tpu_custom_call.1
$region0: #{tpu_custom_call.1}
  #allocation0 [shape = 'u32[]', space=smem, size = 0x4, offset = 0x4, fixed_abs, tag = 'smem constant byte address 0x4 - core index']
  #allocation1 [shape = 'u32[144,128]{1,0:T(1,128)}', space=vmem, size = 0x12000, scoped, tag = 'internal scratch']
  %s0 = inlined_call_operand.vmem [shape: f32[2,8,32], index: 0, kind: input, shape index: {}]
  %s1 = inlined_call_operand.vmem [shape: f32[1,32], index: 1, kind: input, shape index: {}]
  %s2 = inlined_call_operand.vmem [shape: f32[1,32], index: 2, kind: input, shape index: {}]
  %s3 = inlined_call_operand.vmem [shape: bf16[32,96], index: 3, kind: input, shape index: {}]
  %s4 = inlined_call_operand.vmem [shape: f32[1,96], index: 4, kind: input, shape index: {}]
  %s5 = inlined_call_operand.vmem [shape: bf16[4,8,32], index: 5, kind: input, shape index: {}]
  %s6 = inlined_call_operand.vmem [shape: f32[1,32], index: 6, kind: input, shape index: {}]
  %s7 = inlined_call_operand.vmem [shape: f32[1,32], index: 7, kind: input, shape index: {}]
  %s8 = inlined_call_operand.vmem [shape: f32[1,32], index: 8, kind: input, shape index: {}]
  %s9 = inlined_call_operand.vmem [shape: bf16[32,128], index: 9, kind: input, shape index: {}]
  %s10 = inlined_call_operand.vmem [shape: f32[1,128], index: 10, kind: input, shape index: {}]
  %s11 = inlined_call_operand.vmem [shape: bf16[128,32], index: 11, kind: input, shape index: {}]
  %s12 = inlined_call_operand.vmem [shape: f32[1,32], index: 12, kind: input, shape index: {}]
  %s13 = inlined_call_operand.hbm [shape: f32[2,8,32], index: 13, kind: output, shape index: {}]
  %s14 = sld [smem:[#allocation0]]
  $region85: #{tpu_custom_call.1} parent=0
    _
  %s16 = ssub.s32 1, %s14
  %s17 = scalar_select 0, %s16, %s14
  $region1: #{tpu_custom_call.1} parent=0
    #allocation2 [shape = 'u8[8192]{0}', space=vmem, size = 0x2000, scoped, tag = 'output window, operand 0']
    #allocation3 [shape = 's32[2]{0}', space=sflag, size = 0x8, scoped, tag = 'scoped memory for tpu_custom_call.1']
    %18 = vsyncpa [#allocation3], 0
    %s19 = scalar_lea.sflag [#allocation3], 1
    %20 = vsyncpa %s19, 0
    loop: start=0, step=1, limit=4
    $region2: #{tpu_custom_call.1} parent=1 // loop_pre_header
      _
    $region3: #{tpu_custom_call.1} parent=1 // loop_header
      %s22 = sphi 0, %s26
      %p23 = scmp.ge.s32.totalorder %s22, 4
      %s32 = sphi 0, %s34
      %s35 = sphi 0, %s32
      %s36 = sphi 0, %s35
      %s52 = sphi 0, %s36
      %s56 = sphi 0, %s56
      %s58 = sphi 0, %s56
      %s59 = sphi 0, %s58
      %s73 = sphi 0, %s59
      %s77 = sphi 0, %s77
      %s79 = sphi 0, %s77
      %s80 = sphi 0, %s79
      %s94 = sphi 0, %s80
      %s98 = sphi 0, %s98
      %s100 = sphi 0, %s98
      %s101 = sphi 0, %s100
      %s115 = sphi 0, %s101
      %s119 = sphi 0, %s119
      %s121 = sphi 0, %s119
      %s122 = sphi 0, %s121
      %s136 = sphi 0, %s122
      %s140 = sphi 0, %s140
      %s142 = sphi 0, %s140
      %s143 = sphi 0, %s142
      %s157 = sphi 0, %s143
      %s161 = sphi 0, %s161
      %s163 = sphi 0, %s161
      %s164 = sphi 0, %s163
      %s178 = sphi 0, %s164
      %s182 = sphi 0, %s182
      %s184 = sphi 0, %s182
      %s185 = sphi 0, %s184
      %s199 = sphi 0, %s185
      %s203 = sphi 0, %s203
      %s205 = sphi 0, %s203
      %s206 = sphi 0, %s205
      %s220 = sphi 0, %s206
      %s224 = sphi 0, %s224
      %s226 = sphi 0, %s224
      %s227 = sphi 0, %s226
      %s241 = sphi 0, %s227
      %s245 = sphi 0, %s245
      %s247 = sphi 0, %s245
      %s248 = sphi 0, %s247
      %s262 = sphi 0, %s248
      %s266 = sphi 0, %s266
      %s268 = sphi 0, %s266
      %s269 = sphi 0, %s268
      %s283 = sphi 0, %s269
      %s287 = sphi 0, %s287
      %s289 = sphi 0, %s287
      %s290 = sphi 0, %s289
      %s304 = sphi 0, %s290
      %s310 = sphi 0, %s312
      %s313 = sphi 0, %s310
      %s314 = sphi 0, %s313
      %s330 = sphi 0, %s314
    $region4: #{tpu_custom_call.1} parent=1 // loop_header_branch
      %25 = sbr.rel (%p23) target = $region8
    $region5: #{tpu_custom_call.1} parent=1 // loop_body
      %s27 = ssub.s32 %s22, 1
      %s28 = ssub.s32 %s22, 2
      %s29 = sadd.s32 %s22, 1
      %s30 = ssub.s32 %s22, %s29
      %p31 = scmp.eq.s32.totalorder %s30, 0
      %s33 = sadd.s32 %s32, 1
      %s34 = scalar_select %p31, %s32, %s33
      %p37 = pneg %p31
      %p38 = scmp.eq.s32.totalorder %s22, 1
      %p39 = por %p37, %p38
      %p40 = scmp.ne.s32.totalorder %s32, %s35
      %p41 = scmp.eq.s32.totalorder %s22, 0
      %p42 = por %p40, %p41
      %p43 = scmp.ne.s32.totalorder %s32, %s35
      %p44 = scmp.eq.s32.totalorder %s27, 1
      %p45 = por %p43, %p44
      %p46 = scmp.ne.s32.totalorder %s35, %s36
      %p47 = scmp.eq.s32.totalorder %s27, 0
      %p48 = por %p46, %p47
      %p49 = scmp.ne.s32.totalorder %s35, %s36
      %p50 = scmp.eq.s32.totalorder %s28, 1
      %p51 = por %p49, %p50
      %p53 = scmp.ne.s32.totalorder %s36, %s52
      %p54 = scmp.eq.s32.totalorder %s28, 0
      %p55 = por %p53, %p54
      %s57 = sadd.s32 %s56, 1
      %p60 = scmp.eq.s32.totalorder %s22, 1
      %p61 = scmp.ne.s32.totalorder %s56, %s58
      %p62 = scmp.eq.s32.totalorder %s22, 0
      %p63 = por %p61, %p62
      %p64 = scmp.ne.s32.totalorder %s56, %s58
      %p65 = scmp.eq.s32.totalorder %s27, 1
      %p66 = por %p64, %p65
      %p67 = scmp.ne.s32.totalorder %s58, %s59
      %p68 = scmp.eq.s32.totalorder %s27, 0
      %p69 = por %p67, %p68
      %p70 = scmp.ne.s32.totalorder %s58, %s59
      %p71 = scmp.eq.s32.totalorder %s28, 1
      %p72 = por %p70, %p71
      %p74 = scmp.ne.s32.totalorder %s59, %s73
      %p75 = scmp.eq.s32.totalorder %s28, 0
      %p76 = por %p74, %p75
      %s78 = sadd.s32 %s77, 1
      %p81 = scmp.eq.s32.totalorder %s22, 1
      %p82 = scmp.ne.s32.totalorder %s77, %s79
      %p83 = scmp.eq.s32.totalorder %s22, 0
      %p84 = por %p82, %p83
      %p85 = scmp.ne.s32.totalorder %s77, %s79
      %p86 = scmp.eq.s32.totalorder %s27, 1
      %p87 = por %p85, %p86
      %p88 = scmp.ne.s32.totalorder %s79, %s80
      %p89 = scmp.eq.s32.totalorder %s27, 0
      %p90 = por %p88, %p89
      %p91 = scmp.ne.s32.totalorder %s79, %s80
      %p92 = scmp.eq.s32.totalorder %s28, 1
      %p93 = por %p91, %p92
      %p95 = scmp.ne.s32.totalorder %s80, %s94
      %p96 = scmp.eq.s32.totalorder %s28, 0
      %p97 = por %p95, %p96
      %s99 = sadd.s32 %s98, 1
      %p102 = scmp.eq.s32.totalorder %s22, 1
      %p103 = scmp.ne.s32.totalorder %s98, %s100
      %p104 = scmp.eq.s32.totalorder %s22, 0
      %p105 = por %p103, %p104
      %p106 = scmp.ne.s32.totalorder %s98, %s100
      %p107 = scmp.eq.s32.totalorder %s27, 1
      %p108 = por %p106, %p107
      %p109 = scmp.ne.s32.totalorder %s100, %s101
      %p110 = scmp.eq.s32.totalorder %s27, 0
      %p111 = por %p109, %p110
      %p112 = scmp.ne.s32.totalorder %s100, %s101
      %p113 = scmp.eq.s32.totalorder %s28, 1
      %p114 = por %p112, %p113
      %p116 = scmp.ne.s32.totalorder %s101, %s115
      %p117 = scmp.eq.s32.totalorder %s28, 0
      %p118 = por %p116, %p117
      %s120 = sadd.s32 %s119, 1
      %p123 = scmp.eq.s32.totalorder %s22, 1
      %p124 = scmp.ne.s32.totalorder %s119, %s121
      %p125 = scmp.eq.s32.totalorder %s22, 0
      %p126 = por %p124, %p125
      %p127 = scmp.ne.s32.totalorder %s119, %s121
      %p128 = scmp.eq.s32.totalorder %s27, 1
      %p129 = por %p127, %p128
      %p130 = scmp.ne.s32.totalorder %s121, %s122
      %p131 = scmp.eq.s32.totalorder %s27, 0
      %p132 = por %p130, %p131
      %p133 = scmp.ne.s32.totalorder %s121, %s122
      %p134 = scmp.eq.s32.totalorder %s28, 1
      %p135 = por %p133, %p134
      %p137 = scmp.ne.s32.totalorder %s122, %s136
      %p138 = scmp.eq.s32.totalorder %s28, 0
      %p139 = por %p137, %p138
      %s141 = sadd.s32 %s140, 1
      %p144 = scmp.eq.s32.totalorder %s22, 1
      %p145 = scmp.ne.s32.totalorder %s140, %s142
      %p146 = scmp.eq.s32.totalorder %s22, 0
      %p147 = por %p145, %p146
      %p148 = scmp.ne.s32.totalorder %s140, %s142
      %p149 = scmp.eq.s32.totalorder %s27, 1
      %p150 = por %p148, %p149
      %p151 = scmp.ne.s32.totalorder %s142, %s143
      %p152 = scmp.eq.s32.totalorder %s27, 0
      %p153 = por %p151, %p152
      %p154 = scmp.ne.s32.totalorder %s142, %s143
      %p155 = scmp.eq.s32.totalorder %s28, 1
      %p156 = por %p154, %p155
      %p158 = scmp.ne.s32.totalorder %s143, %s157
      %p159 = scmp.eq.s32.totalorder %s28, 0
      %p160 = por %p158, %p159
      %s162 = sadd.s32 %s161, 1
      %p165 = scmp.eq.s32.totalorder %s22, 1
      %p166 = scmp.ne.s32.totalorder %s161, %s163
      %p167 = scmp.eq.s32.totalorder %s22, 0
      %p168 = por %p166, %p167
      %p169 = scmp.ne.s32.totalorder %s161, %s163
      %p170 = scmp.eq.s32.totalorder %s27, 1
      %p171 = por %p169, %p170
      %p172 = scmp.ne.s32.totalorder %s163, %s164
      %p173 = scmp.eq.s32.totalorder %s27, 0
      %p174 = por %p172, %p173
      %p175 = scmp.ne.s32.totalorder %s163, %s164
      %p176 = scmp.eq.s32.totalorder %s28, 1
      %p177 = por %p175, %p176
      %p179 = scmp.ne.s32.totalorder %s164, %s178
      %p180 = scmp.eq.s32.totalorder %s28, 0
      %p181 = por %p179, %p180
      %s183 = sadd.s32 %s182, 1
      %p186 = scmp.eq.s32.totalorder %s22, 1
      %p187 = scmp.ne.s32.totalorder %s182, %s184
      %p188 = scmp.eq.s32.totalorder %s22, 0
      %p189 = por %p187, %p188
      %p190 = scmp.ne.s32.totalorder %s182, %s184
      %p191 = scmp.eq.s32.totalorder %s27, 1
      %p192 = por %p190, %p191
      %p193 = scmp.ne.s32.totalorder %s184, %s185
      %p194 = scmp.eq.s32.totalorder %s27, 0
      %p195 = por %p193, %p194
      %p196 = scmp.ne.s32.totalorder %s184, %s185
      %p197 = scmp.eq.s32.totalorder %s28, 1
      %p198 = por %p196, %p197
      %p200 = scmp.ne.s32.totalorder %s185, %s199
      %p201 = scmp.eq.s32.totalorder %s28, 0
      %p202 = por %p200, %p201
      %s204 = sadd.s32 %s203, 1
      %p207 = scmp.eq.s32.totalorder %s22, 1
      %p208 = scmp.ne.s32.totalorder %s203, %s205
      %p209 = scmp.eq.s32.totalorder %s22, 0
      %p210 = por %p208, %p209
      %p211 = scmp.ne.s32.totalorder %s203, %s205
      %p212 = scmp.eq.s32.totalorder %s27, 1
      %p213 = por %p211, %p212
      %p214 = scmp.ne.s32.totalorder %s205, %s206
      %p215 = scmp.eq.s32.totalorder %s27, 0
      %p216 = por %p214, %p215
      %p217 = scmp.ne.s32.totalorder %s205, %s206
      %p218 = scmp.eq.s32.totalorder %s28, 1
      %p219 = por %p217, %p218
      %p221 = scmp.ne.s32.totalorder %s206, %s220
      %p222 = scmp.eq.s32.totalorder %s28, 0
      %p223 = por %p221, %p222
      %s225 = sadd.s32 %s224, 1
      %p228 = scmp.eq.s32.totalorder %s22, 1
      %p229 = scmp.ne.s32.totalorder %s224, %s226
      %p230 = scmp.eq.s32.totalorder %s22, 0
      %p231 = por %p229, %p230
      %p232 = scmp.ne.s32.totalorder %s224, %s226
      %p233 = scmp.eq.s32.totalorder %s27, 1
      %p234 = por %p232, %p233
      %p235 = scmp.ne.s32.totalorder %s226, %s227
      %p236 = scmp.eq.s32.totalorder %s27, 0
      %p237 = por %p235, %p236
      %p238 = scmp.ne.s32.totalorder %s226, %s227
      %p239 = scmp.eq.s32.totalorder %s28, 1
      %p240 = por %p238, %p239
      %p242 = scmp.ne.s32.totalorder %s227, %s241
      %p243 = scmp.eq.s32.totalorder %s28, 0
      %p244 = por %p242, %p243
      %s246 = sadd.s32 %s245, 1
      %p249 = scmp.eq.s32.totalorder %s22, 1
      %p250 = scmp.ne.s32.totalorder %s245, %s247
      %p251 = scmp.eq.s32.totalorder %s22, 0
      %p252 = por %p250, %p251
      %p253 = scmp.ne.s32.totalorder %s245, %s247
      %p254 = scmp.eq.s32.totalorder %s27, 1
      %p255 = por %p253, %p254
      %p256 = scmp.ne.s32.totalorder %s247, %s248
      %p257 = scmp.eq.s32.totalorder %s27, 0
      %p258 = por %p256, %p257
      %p259 = scmp.ne.s32.totalorder %s247, %s248
      %p260 = scmp.eq.s32.totalorder %s28, 1
      %p261 = por %p259, %p260
      %p263 = scmp.ne.s32.totalorder %s248, %s262
      %p264 = scmp.eq.s32.totalorder %s28, 0
      %p265 = por %p263, %p264
      %s267 = sadd.s32 %s266, 1
      %p270 = scmp.eq.s32.totalorder %s22, 1
      %p271 = scmp.ne.s32.totalorder %s266, %s268
      %p272 = scmp.eq.s32.totalorder %s22, 0
      %p273 = por %p271, %p272
      %p274 = scmp.ne.s32.totalorder %s266, %s268
      %p275 = scmp.eq.s32.totalorder %s27, 1
      %p276 = por %p274, %p275
      %p277 = scmp.ne.s32.totalorder %s268, %s269
      %p278 = scmp.eq.s32.totalorder %s27, 0
      %p279 = por %p277, %p278
      %p280 = scmp.ne.s32.totalorder %s268, %s269
      %p281 = scmp.eq.s32.totalorder %s28, 1
      %p282 = por %p280, %p281
      %p284 = scmp.ne.s32.totalorder %s269, %s283
      %p285 = scmp.eq.s32.totalorder %s28, 0
      %p286 = por %p284, %p285
      %s288 = sadd.s32 %s287, 1
      %p291 = scmp.eq.s32.totalorder %s22, 1
      %p292 = scmp.ne.s32.totalorder %s287, %s289
      %p293 = scmp.eq.s32.totalorder %s22, 0
      %p294 = por %p292, %p293
      %p295 = scmp.ne.s32.totalorder %s287, %s289
      %p296 = scmp.eq.s32.totalorder %s27, 1
      %p297 = por %p295, %p296
      %p298 = scmp.ne.s32.totalorder %s289, %s290
      %p299 = scmp.eq.s32.totalorder %s27, 0
      %p300 = por %p298, %p299
      %p301 = scmp.ne.s32.totalorder %s289, %s290
      %p302 = scmp.eq.s32.totalorder %s28, 1
      %p303 = por %p301, %p302
      %p305 = scmp.ne.s32.totalorder %s290, %s304
      %p306 = scmp.eq.s32.totalorder %s28, 0
      %p307 = por %p305, %p306
      %s308 = ssub.s32 %s22, %s29
      %p309 = scmp.eq.s32.totalorder %s308, 0
      %s311 = sadd.s32 %s310, 1
      %s312 = scalar_select %p309, %s310, %s311
      %p315 = pneg %p309
      %p316 = scmp.eq.s32.totalorder %s22, 1
      %p317 = por %p315, %p316
      %p318 = scmp.ne.s32.totalorder %s310, %s313
      %p319 = scmp.eq.s32.totalorder %s22, 0
      %p320 = por %p318, %p319
      %p321 = scmp.ne.s32.totalorder %s310, %s313
      %p322 = scmp.eq.s32.totalorder %s27, 1
      %p323 = por %p321, %p322
      %p324 = scmp.ne.s32.totalorder %s313, %s314
      %p325 = scmp.eq.s32.totalorder %s27, 0
      %p326 = por %p324, %p325
      %p327 = scmp.ne.s32.totalorder %s313, %s314
      %p328 = scmp.eq.s32.totalorder %s28, 1
      %p329 = por %p327, %p328
      %p331 = scmp.ne.s32.totalorder %s314, %s330
      %p332 = scmp.eq.s32.totalorder %s28, 0
      %p333 = por %p331, %p332
      %p334 = scmp.le.s32.totalorder 1, %s22
      %p335 = scmp.lt.s32.totalorder %s22, 3
      %p336 = pnand %p334, %p335
      %p337 = pneg %p336
      // Predicated region
      $region9: #{tpu_custom_call.1} parent=5 // pred_check
        _
      $region10: #{tpu_custom_call.1} parent=5 // pred_check_branch
        %339 = sbr.rel (%p336) target = $region12
      $region11: #{tpu_custom_call.1} parent=5 // pred_region
        %s340 = ssub.s32 %s22, 1
        // Predicated region
        $region13: #{tpu_custom_call.1} parent=11 // pred_check
          %p341 = pneg %p69
        $region14: #{tpu_custom_call.1} parent=11 // pred_check_branch
          %343 = sbr.rel (%p341) target = $region16
        $region15: #{tpu_custom_call.1} parent=11 // pred_region
          _
        $region16: #{tpu_custom_call.1} parent=11 // pred_fallthru
          _
        // Predicated region
        $region17: #{tpu_custom_call.1} parent=11 // pred_check
          %p344 = pneg %p90
        $region18: #{tpu_custom_call.1} parent=11 // pred_check_branch
          %346 = sbr.rel (%p344) target = $region20
        $region19: #{tpu_custom_call.1} parent=11 // pred_region
          _
        $region20: #{tpu_custom_call.1} parent=11 // pred_fallthru
          _
        // Predicated region
        $region21: #{tpu_custom_call.1} parent=11 // pred_check
          %p347 = pneg %p111
        $region22: #{tpu_custom_call.1} parent=11 // pred_check_branch
          %349 = sbr.rel (%p347) target = $region24
        $region23: #{tpu_custom_call.1} parent=11 // pred_region
          _
        $region24: #{tpu_custom_call.1} parent=11 // pred_fallthru
          _
        // Predicated region
        $region25: #{tpu_custom_call.1} parent=11 // pred_check
          %p350 = pneg %p132
        $region26: #{tpu_custom_call.1} parent=11 // pred_check_branch
          %352 = sbr.rel (%p350) target = $region28
        $region27: #{tpu_custom_call.1} parent=11 // pred_region
          _
        $region28: #{tpu_custom_call.1} parent=11 // pred_fallthru
          _
        // Predicated region
        $region29: #{tpu_custom_call.1} parent=11 // pred_check
          %p353 = pneg %p153
        $region30: #{tpu_custom_call.1} parent=11 // pred_check_branch
          %355 = sbr.rel (%p353) target = $region32
        $region31: #{tpu_custom_call.1} parent=11 // pred_region
          _
        $region32: #{tpu_custom_call.1} parent=11 // pred_fallthru
          _
        // Predicated region
        $region33: #{tpu_custom_call.1} parent=11 // pred_check
          %p356 = pneg %p174
        $region34: #{tpu_custom_call.1} parent=11 // pred_check_branch
          %358 = sbr.rel (%p356) target = $region36
        $region35: #{tpu_custom_call.1} parent=11 // pred_region
          _
        $region36: #{tpu_custom_call.1} parent=11 // pred_fallthru
          _
        // Predicated region
        $region37: #{tpu_custom_call.1} parent=11 // pred_check
          %p359 = pneg %p195
        $region38: #{tpu_custom_call.1} parent=11 // pred_check_branch
          %361 = sbr.rel (%p359) target = $region40
        $region39: #{tpu_custom_call.1} parent=11 // pred_region
          _
        $region40: #{tpu_custom_call.1} parent=11 // pred_fallthru
          _
        // Predicated region
        $region41: #{tpu_custom_call.1} parent=11 // pred_check
          %p362 = pneg %p216
        $region42: #{tpu_custom_call.1} parent=11 // pred_check_branch
          %364 = sbr.rel (%p362) target = $region44
        $region43: #{tpu_custom_call.1} parent=11 // pred_region
          _
        $region44: #{tpu_custom_call.1} parent=11 // pred_fallthru
          _
        // Predicated region
        $region45: #{tpu_custom_call.1} parent=11 // pred_check
          %p365 = pneg %p237
        $region46: #{tpu_custom_call.1} parent=11 // pred_check_branch
          %367 = sbr.rel (%p365) target = $region48
        $region47: #{tpu_custom_call.1} parent=11 // pred_region
          _
        $region48: #{tpu_custom_call.1} parent=11 // pred_fallthru
          _
        // Predicated region
        $region49: #{tpu_custom_call.1} parent=11 // pred_check
          %p368 = pneg %p258
        $region50: #{tpu_custom_call.1} parent=11 // pred_check_branch
          %370 = sbr.rel (%p368) target = $region52
        $region51: #{tpu_custom_call.1} parent=11 // pred_region
          _
        $region52: #{tpu_custom_call.1} parent=11 // pred_fallthru
          _
        // Predicated region
        $region53: #{tpu_custom_call.1} parent=11 // pred_check
          %p371 = pneg %p279
        $region54: #{tpu_custom_call.1} parent=11 // pred_check_branch
          %373 = sbr.rel (%p371) target = $region56
        $region55: #{tpu_custom_call.1} parent=11 // pred_region
          _
        $region56: #{tpu_custom_call.1} parent=11 // pred_fallthru
          _
        // Predicated region
        $region57: #{tpu_custom_call.1} parent=11 // pred_check
          %p374 = pneg %p300
        $region58: #{tpu_custom_call.1} parent=11 // pred_check_branch
          %376 = sbr.rel (%p374) target = $region60
        $region59: #{tpu_custom_call.1} parent=11 // pred_region
          _
        $region60: #{tpu_custom_call.1} parent=11 // pred_fallthru
          _
      $region12: #{tpu_custom_call.1} parent=5 // pred_fallthru
        _
      %p377 = scmp.lt.s32.totalorder %s22, 2
      // Predicated region
      $region61: #{tpu_custom_call.1} parent=5 // pred_check
        %p378 = pneg %p377
      $region62: #{tpu_custom_call.1} parent=5 // pred_check_branch
        %380 = sbr.rel (%p378) target = $region64
      $region63: #{tpu_custom_call.1} parent=5 // pred_region
        // Predicated region
        $region65: #{tpu_custom_call.1} parent=63 // pred_check
          %p381 = pneg %p42
        $region66: #{tpu_custom_call.1} parent=63 // pred_check_branch
          %383 = sbr.rel (%p381) target = $region68
        $region67: #{tpu_custom_call.1} parent=63 // pred_region
          %p384 = scmp.lt.s32.totalorder %s22, 1
          %s385 = scalar_select %p384, %s22, 1
          %s386 = smul.addr %s385, 8
          %s387 = scalar_lea.vmem %s0, %s386
        $region68: #{tpu_custom_call.1} parent=63 // pred_fallthru
          _
      $region64: #{tpu_custom_call.1} parent=5 // pred_fallthru
        _
      %p388 = scmp.le.s32.totalorder 1, %s22
      %p389 = scmp.lt.s32.totalorder %s22, 3
      %p390 = pnand %p388, %p389
      %p391 = pneg %p390
      // Predicated region
      $region69: #{tpu_custom_call.1} parent=5 // pred_check
        _
      $region70: #{tpu_custom_call.1} parent=5 // pred_check_branch
        %393 = sbr.rel (%p390) target = $region72
      $region71: #{tpu_custom_call.1} parent=5 // pred_region
        %s394 = ssub.s32 %s22, 1
        %p395 = scmp.lt.s32.totalorder %s27, 1
        %s396 = scalar_select %p395, %s27, 1
        %s397 = smul.addr %s396, 8
        %s398 = scalar_lea.vmem %s0, %s397
        %p399 = pneg %p48
        %p400 = pneg %p45
        %p401 = pneg %p69
        %p402 = pneg %p66
        %p403 = pneg %p90
        %p404 = pneg %p87
        %p405 = pneg %p111
        %p406 = pneg %p108
        %p407 = pneg %p132
        %p408 = pneg %p129
        %p409 = pneg %p153
        %p410 = pneg %p150
        %p411 = pneg %p174
        %p412 = pneg %p171
        %p413 = pneg %p195
        %p414 = pneg %p192
        %p415 = pneg %p216
        %p416 = pneg %p213
        %p417 = pneg %p237
        %p418 = pneg %p234
        %p419 = pneg %p258
        %p420 = pneg %p255
        %p421 = pneg %p279
        %p422 = pneg %p276
        %p423 = pneg %p300
        %p424 = pneg %p297
        %p425 = pneg %p326
        %p426 = pneg %p323
        %s427 = sand.u32 %s313, 1
        %s428 = scalar_lea.sflag [#allocation3], %s427
        %s429 = sand.u32 %s313, 1
        %s430 = smul.addr %s429, 8
        %s431 = scalar_lea.vmem [#allocation2], %s430
        %p432 = scmp.lt.s32.totalorder %s27, 1
        %s433 = scalar_select %p432, %s27, 1
        %s434 = smul.addr %s433, 8
        %s435 = scalar_lea.vmem %s0, %s434
        %v437 = vld [vmem:[%s435] sm:$0xff]
        %v438 = vld [vmem:[%s1] sm:$0x1]
        %v439 = vld [vmem:[%s2] sm:$0x1]
        %vm440 = vcmask 261120
        %v441 = vsel %vm440, %v437, 0.0
        %442 = vadd.xlane.f32.xlu0 %v441
        %v443 = vpop.xlane.xlu0 %442
        %v444 = vrcp.pop 32.0
        %v445 = vmul.f32 %v443, %v444
        %v446 = vsub.f32 %v437, %v445
        %v447 = vmul.f32 %v446, %v446
        %v448 = vsel %vm440, %v447, 0.0
        %449 = vadd.xlane.f32.xlu0 %v448
        %v450 = vpop.xlane.xlu0 %449
        %v451 = vmul.f32 %v450, %v444
        %v452 = vadd.f32 %v451, 1e-05
        %v453 = vrsqrt.pop %v452
        %v454 = vmul.f32 %v446, %v453
        %v456 = vlaneseq
        %v457 = vshrl.u32 %v456, 7
        %v458 = vsub.s32 0, %v457
        %v459 = vrot.slane %v438, %v458
        %v461 = vmul.f32 %v454, %v459
        %v463 = vlaneseq
        %v464 = vshrl.u32 %v463, 7
        %v465 = vsub.s32 0, %v464
        %v466 = vrot.slane %v439, %v465
        %v468 = vadd.f32 %v461, %v466
        %v469 = vpack.c.bf16 %v468, %v468
        %v470 = vld [vmem:[%s3] sm:$0xf]
        %v471 = vld [vmem:[%s3 + $0x4] sm:$0xf]
        %v472 = vld [vmem:[%s3 + $0x8] sm:$0xf]
        %v473 = vld [vmem:[%s3 + $0xc] sm:$0xf]
        %v474 = vld [vmem:[%s4] sm:$0x1]
        %v476 = vlaneseq
        %v477 = vshrl.u32 %v476, 7
        %v478 = vsub.s32 0, %v477
        %v479 = vrot.slane %v474, %v478
        %v485 = vunpack.c.l.b16 %v470
        %v486 = vunpack.c.l.b16 %v471
        %v487 = vunpack.c.l.b16 %v472
        %v488 = vunpack.c.l.b16 %v473
        %v489 = vpack.c.b16 %v486, %v485
        %v490 = vpack.c.b16 %v488, %v487
        %v494 = vsel %vm440, %v469, 0
        %496 = vmatprep.subr.bf16.mxu0 0
        %497 = vmatpush1.bf16.msra.mxu0 %v489
        %498 = vmatprep.subr.bf16.mxu0 0
        %499 = vmatpush1.bf16.msra.mxu0 %v490
        %500 = vmatprep.subr.bf16.mxu0 0
        %501 = vmatpush1.bf16.msra.mxu0 0
        %502 = vmatprep.subr.bf16.mxu0 0
        %503 = vmatpush1.bf16.msra.mxu0 0
        %504 = vmatprep.subr.bf16.mxu0 0
        %505 = vmatpush1.bf16.msra.mxu0 0
        %506 = vmatprep.subr.bf16.mxu0 0
        %507 = vmatpush1.bf16.msra.mxu0 0
        %508 = vmatprep.subr.bf16.mxu0 0
        %509 = vmatpush1.bf16.msra.mxu0 0
        %510 = vmatprep.subr.bf16.mxu0 0
        %511 = vmatpush1.bf16.msra.mxu0 0
        %512 = vmatprep.subr.bf16.mxu0 0
        %513 = vmatpush1.bf16.msra.mxu0 0
        %514 = vmatprep.subr.bf16.mxu0 0
        %515 = vmatpush1.bf16.msra.mxu0 0
        %516 = vmatprep.subr.bf16.mxu0 0
        %517 = vmatpush1.bf16.msra.mxu0 0
        %518 = vmatprep.subr.bf16.mxu0 0
        %519 = vmatpush1.bf16.msra.mxu0 0
        %520 = vmatprep.subr.bf16.mxu0 0
        %521 = vmatpush1.bf16.msra.mxu0 0
        %522 = vmatprep.subr.bf16.mxu0 0
        %523 = vmatpush1.bf16.msra.mxu0 0
        %524 = vmatprep.subr.bf16.mxu0 0
        %525 = vmatpush1.bf16.msra.mxu0 0
        %526 = vmatprep.subr.bf16.mxu0 0
        %527 = vmatpush1.bf16.msra.mxu0 0
        %528 = vmatprep.mubr.bf16.mxu0 0
        %529 = vmatmul.mubr.bf16.gmra.mrb[0].mxu0 %v494
        %v530 = vpop.f32.mrb[0].mxu0
        %v531 = vadd.f32 %v479, %v530
        %v532 = vpop.f32.mrb[0].mxu0
        %v533 = vpop.f32.mrb[0].mxu0
        %v534 = vpop.f32.mrb[0].mxu0
        %535 = vdwg.mxu0
        %v536 = vpack.c.bf16 %v531, %v531
        %538 = vrot.lane.b32.xlu0 %v536, 96
        %v539 = vpop.permute.xlu0 %538
        %vm540 = vcmask 64512
        %v542 = vsel %vm540, %v536, 0
        %v545 = vsel %vm540, %v539, 0
        %547 = vmatprep.subr.bf16.mxu0 0
        %548 = vmatpush1.bf16.xpose.msra.mxu0 %v545
        %549 = vmatprep.subr.bf16.mxu0 0
        %550 = vmatpush1.bf16.xpose.msra.mxu0 0
        %551 = vmatprep.subr.bf16.mxu0 0
        %552 = vmatpush1.bf16.xpose.msra.mxu0 0
        %553 = vmatprep.subr.bf16.mxu0 0
        %554 = vmatpush1.bf16.xpose.msra.mxu0 0
        %555 = vmatprep.subr.bf16.mxu0 0
        %556 = vmatpush1.bf16.xpose.msra.mxu0 0
        %557 = vmatprep.subr.bf16.mxu0 0
        %558 = vmatpush1.bf16.xpose.msra.mxu0 0
        %559 = vmatprep.subr.bf16.mxu0 0
        %560 = vmatpush1.bf16.xpose.msra.mxu0 0
        %561 = vmatprep.subr.bf16.mxu0 0
        %562 = vmatpush1.bf16.xpose.msra.mxu0 0
        %563 = vmatprep.subr.bf16.mxu0 0
        %564 = vmatpush1.bf16.xpose.msra.mxu0 0
        %565 = vmatprep.subr.bf16.mxu0 0
        %566 = vmatpush1.bf16.xpose.msra.mxu0 0
        %567 = vmatprep.subr.bf16.mxu0 0
        %568 = vmatpush1.bf16.xpose.msra.mxu0 0
        %569 = vmatprep.subr.bf16.mxu0 0
        %570 = vmatpush1.bf16.xpose.msra.mxu0 0
        %571 = vmatprep.subr.bf16.mxu0 0
        %572 = vmatpush1.bf16.xpose.msra.mxu0 0
        %573 = vmatprep.subr.bf16.mxu0 0
        %574 = vmatpush1.bf16.xpose.msra.mxu0 0
        %575 = vmatprep.subr.bf16.mxu0 0
        %576 = vmatpush1.bf16.xpose.msra.mxu0 0
        %577 = vmatprep.subr.bf16.mxu0 0
        %578 = vmatpush1.bf16.xpose.msra.mxu0 0
        %579 = vmatprep.mubr.bf16.mxu0 0
        %580 = vmatmul.mubr.bf16.gmra.mrb[0].mxu0 %v542
        %v581 = vpop.f32.mrb[0].mxu0
        %v582 = vadd.f32 0.0, %v581
        %v583 = vpop.f32.mrb[0].mxu0
        %v584 = vpop.f32.mrb[0].mxu0
        %v585 = vpop.f32.mrb[0].mxu0
        %586 = vdwg.mxu0
        %v587 = vsel %vm540, %v582, -inf
        %588 = vmax.xlane.f32.xlu0 %v587
        %v589 = vpop.xlane.xlu0 %588
        %v590 = vsub.f32 %v582, %v589
        %v591 = vmul.f32 %v590, 1.442695
        %v592 = vpow.pop %v591
        %v593 = vsel %vm540, %v592, 0.0
        %594 = vadd.xlane.f32.xlu0 %v593
        %v595 = vpop.xlane.xlu0 %594
        %v596 = vpack.c.bf16 %v592, %v592
        %597 = vrot.lane.b32.xlu0 %v536, 64
        %v598 = vpop.permute.xlu0 %597
        %v600 = vsel %vm540, %v596, 0
        %vm602 = vcmask 1043456
        %v604 = vsel %vm602, %v598, 0
        %606 = vmatprep.subr.bf16.mxu0 0
        %607 = vmatpush1.bf16.msra.mxu0 %v604
        %608 = vmatprep.subr.bf16.mxu0 0
        %609 = vmatpush1.bf16.msra.mxu0 0
        %610 = vmatprep.subr.bf16.mxu0 0
        %611 = vmatpush1.bf16.msra.mxu0 0
        %612 = vmatprep.subr.bf16.mxu0 0
        %613 = vmatpush1.bf16.msra.mxu0 0
        %614 = vmatprep.subr.bf16.mxu0 0
        %615 = vmatpush1.bf16.msra.mxu0 0
        %616 = vmatprep.subr.bf16.mxu0 0
        %617 = vmatpush1.bf16.msra.mxu0 0
        %618 = vmatprep.subr.bf16.mxu0 0
        %619 = vmatpush1.bf16.msra.mxu0 0
        %620 = vmatprep.subr.bf16.mxu0 0
        %621 = vmatpush1.bf16.msra.mxu0 0
        %622 = vmatprep.subr.bf16.mxu0 0
        %623 = vmatpush1.bf16.msra.mxu0 0
        %624 = vmatprep.subr.bf16.mxu0 0
        %625 = vmatpush1.bf16.msra.mxu0 0
        %626 = vmatprep.subr.bf16.mxu0 0
        %627 = vmatpush1.bf16.msra.mxu0 0
        %628 = vmatprep.subr.bf16.mxu0 0
        %629 = vmatpush1.bf16.msra.mxu0 0
        %630 = vmatprep.subr.bf16.mxu0 0
        %631 = vmatpush1.bf16.msra.mxu0 0
        %632 = vmatprep.subr.bf16.mxu0 0
        %633 = vmatpush1.bf16.msra.mxu0 0
        %634 = vmatprep.subr.bf16.mxu0 0
        %635 = vmatpush1.bf16.msra.mxu0 0
        %636 = vmatprep.subr.bf16.mxu0 0
        %637 = vmatpush1.bf16.msra.mxu0 0
        %638 = vmatprep.mubr.bf16.mxu0 0
        %639 = vmatmul.mubr.bf16.gmra.mrb[0].mxu0 %v600
        %v640 = vpop.f32.mrb[0].mxu0
        %v641 = vadd.f32 0.0, %v640
        %v642 = vpop.f32.mrb[0].mxu0
        %v643 = vpop.f32.mrb[0].mxu0
        %v644 = vpop.f32.mrb[0].mxu0
        %645 = vdwg.mxu0
        %v646 = vrcp.pop %v595
        %v647 = vmul.f32 %v641, %v646
        %v648 = vpack.c.bf16 %v647, %v647
        %v649 = vld [vmem:[%s5] sm:$0xf]
        %650 = vrot.lane.b32.xlu0 %v536, 120
        %v651 = vpop.permute.xlu0 %650
        %652 = vrot.lane.b32.xlu0 %v536, 88
        %v653 = vpop.permute.xlu0 %652
        %v655 = vsel %vm540, %v651, 0
        %v658 = vsel %vm540, %v653, 0
        %660 = vmatprep.subr.bf16.mxu0 0
        %661 = vmatpush1.bf16.xpose.msra.mxu0 %v658
        %662 = vmatprep.subr.bf16.mxu0 0
        %663 = vmatpush1.bf16.xpose.msra.mxu0 0
        %664 = vmatprep.subr.bf16.mxu0 0
        %665 = vmatpush1.bf16.xpose.msra.mxu0 0
        %666 = vmatprep.subr.bf16.mxu0 0
        %667 = vmatpush1.bf16.xpose.msra.mxu0 0
        %668 = vmatprep.subr.bf16.mxu0 0
        %669 = vmatpush1.bf16.xpose.msra.mxu0 0
        %670 = vmatprep.subr.bf16.mxu0 0
        %671 = vmatpush1.bf16.xpose.msra.mxu0 0
        %672 = vmatprep.subr.bf16.mxu0 0
        %673 = vmatpush1.bf16.xpose.msra.mxu0 0
        %674 = vmatprep.subr.bf16.mxu0 0
        %675 = vmatpush1.bf16.xpose.msra.mxu0 0
        %676 = vmatprep.subr.bf16.mxu0 0
        %677 = vmatpush1.bf16.xpose.msra.mxu0 0
        %678 = vmatprep.subr.bf16.mxu0 0
        %679 = vmatpush1.bf16.xpose.msra.mxu0 0
        %680 = vmatprep.subr.bf16.mxu0 0
        %681 = vmatpush1.bf16.xpose.msra.mxu0 0
        %682 = vmatprep.subr.bf16.mxu0 0
        %683 = vmatpush1.bf16.xpose.msra.mxu0 0
        %684 = vmatprep.subr.bf16.mxu0 0
        %685 = vmatpush1.bf16.xpose.msra.mxu0 0
        %686 = vmatprep.subr.bf16.mxu0 0
        %687 = vmatpush1.bf16.xpose.msra.mxu0 0
        %688 = vmatprep.subr.bf16.mxu0 0
        %689 = vmatpush1.bf16.xpose.msra.mxu0 0
        %690 = vmatprep.subr.bf16.mxu0 0
        %691 = vmatpush1.bf16.xpose.msra.mxu0 0
        %692 = vmatprep.mubr.bf16.mxu0 0
        %693 = vmatmul.mubr.bf16.gmra.mrb[0].mxu0 %v655
        %v694 = vpop.f32.mrb[0].mxu0
        %v695 = vadd.f32 0.0, %v694
        %v696 = vpop.f32.mrb[0].mxu0
        %v697 = vpop.f32.mrb[0].mxu0
        %v698 = vpop.f32.mrb[0].mxu0
        %699 = vdwg.mxu0
        %v700 = vsel %vm540, %v695, -inf
        %701 = vmax.xlane.f32.xlu0 %v700
        %v702 = vpop.xlane.xlu0 %701
        %v703 = vsub.f32 %v695, %v702
        %v704 = vmul.f32 %v703, 1.442695
        %v705 = vpow.pop %v704
        %v706 = vsel %vm540, %v705, 0.0
        %707 = vadd.xlane.f32.xlu0 %v706
        %v708 = vpop.xlane.xlu0 %707
        %v709 = vpack.c.bf16 %v705, %v705
        %710 = vrot.lane.b32.xlu0 %v536, 56
        %v711 = vpop.permute.xlu0 %710
        %v713 = vsel %vm540, %v709, 0
        %v716 = vsel %vm602, %v711, 0
        %718 = vmatprep.subr.bf16.mxu0 0
        %719 = vmatpush1.bf16.msra.mxu0 %v716
        %720 = vmatprep.subr.bf16.mxu0 0
        %721 = vmatpush1.bf16.msra.mxu0 0
        %722 = vmatprep.subr.bf16.mxu0 0
        %723 = vmatpush1.bf16.msra.mxu0 0
        %724 = vmatprep.subr.bf16.mxu0 0
        %725 = vmatpush1.bf16.msra.mxu0 0
        %726 = vmatprep.subr.bf16.mxu0 0
        %727 = vmatpush1.bf16.msra.mxu0 0
        %728 = vmatprep.subr.bf16.mxu0 0
        %729 = vmatpush1.bf16.msra.mxu0 0
        %730 = vmatprep.subr.bf16.mxu0 0
        %731 = vmatpush1.bf16.msra.mxu0 0
        %732 = vmatprep.subr.bf16.mxu0 0
        %733 = vmatpush1.bf16.msra.mxu0 0
        %734 = vmatprep.subr.bf16.mxu0 0
        %735 = vmatpush1.bf16.msra.mxu0 0
        %736 = vmatprep.subr.bf16.mxu0 0
        %737 = vmatpush1.bf16.msra.mxu0 0
        %738 = vmatprep.subr.bf16.mxu0 0
        %739 = vmatpush1.bf16.msra.mxu0 0
        %740 = vmatprep.subr.bf16.mxu0 0
        %741 = vmatpush1.bf16.msra.mxu0 0
        %742 = vmatprep.subr.bf16.mxu0 0
        %743 = vmatpush1.bf16.msra.mxu0 0
        %744 = vmatprep.subr.bf16.mxu0 0
        %745 = vmatpush1.bf16.msra.mxu0 0
        %746 = vmatprep.subr.bf16.mxu0 0
        %747 = vmatpush1.bf16.msra.mxu0 0
        %748 = vmatprep.subr.bf16.mxu0 0
        %749 = vmatpush1.bf16.msra.mxu0 0
        %750 = vmatprep.mubr.bf16.mxu0 0
        %751 = vmatmul.mubr.bf16.gmra.mrb[0].mxu0 %v713
        %v752 = vpop.f32.mrb[0].mxu0
        %v753 = vadd.f32 0.0, %v752
        %v754 = vpop.f32.mrb[0].mxu0
        %v755 = vpop.f32.mrb[0].mxu0
        %v756 = vpop.f32.mrb[0].mxu0
        %757 = vdwg.mxu0
        %v758 = vrcp.pop %v708
        %v759 = vmul.f32 %v753, %v758
        %v760 = vpack.c.bf16 %v759, %v759
        %s761 = scalar_lea.vmem %s5, 4
        %v762 = vld [vmem:[%s761] sm:$0xf]
        %v764 = vsel %vm540, %v760, 0
        %v767 = vsel %vm602, %v762, 0
        %769 = vmatprep.subr.bf16.mxu0 0
        %770 = vmatpush1.bf16.msra.mxu0 %v767
        %771 = vmatprep.subr.bf16.mxu0 0
        %772 = vmatpush1.bf16.msra.mxu0 0
        %773 = vmatprep.subr.bf16.mxu0 0
        %774 = vmatpush1.bf16.msra.mxu0 0
        %775 = vmatprep.subr.bf16.mxu0 0
        %776 = vmatpush1.bf16.msra.mxu0 0
        %777 = vmatprep.subr.bf16.mxu0 0
        %778 = vmatpush1.bf16.msra.mxu0 0
        %779 = vmatprep.subr.bf16.mxu0 0
        %780 = vmatpush1.bf16.msra.mxu0 0
        %781 = vmatprep.subr.bf16.mxu0 0
        %782 = vmatpush1.bf16.msra.mxu0 0
        %783 = vmatprep.subr.bf16.mxu0 0
        %784 = vmatpush1.bf16.msra.mxu0 0
        %785 = vmatprep.subr.bf16.mxu0 0
        %786 = vmatpush1.bf16.msra.mxu0 0
        %787 = vmatprep.subr.bf16.mxu0 0
        %788 = vmatpush1.bf16.msra.mxu0 0
        %789 = vmatprep.subr.bf16.mxu0 0
        %790 = vmatpush1.bf16.msra.mxu0 0
        %791 = vmatprep.subr.bf16.mxu0 0
        %792 = vmatpush1.bf16.msra.mxu0 0
        %793 = vmatprep.subr.bf16.mxu0 0
        %794 = vmatpush1.bf16.msra.mxu0 0
        %795 = vmatprep.subr.bf16.mxu0 0
        %796 = vmatpush1.bf16.msra.mxu0 0
        %797 = vmatprep.subr.bf16.mxu0 0
        %798 = vmatpush1.bf16.msra.mxu0 0
        %799 = vmatprep.subr.bf16.mxu0 0
        %800 = vmatpush1.bf16.msra.mxu0 0
        %801 = vmatprep.mubr.bf16.mxu0 0
        %802 = vmatmul.mubr.bf16.gmra.mrb[0].mxu0 %v764
        %v803 = vpop.f32.mrb[0].mxu0
        %v804 = vadd.f32 0.0, %v803
        %v805 = vpop.f32.mrb[0].mxu0
        %v806 = vpop.f32.mrb[0].mxu0
        %v807 = vpop.f32.mrb[0].mxu0
        %808 = vdwg.mxu0
        %v810 = vsel %vm540, %v648, 0
        %v813 = vsel %vm602, %v649, 0
        %815 = vmatprep.subr.bf16.mxu0 0
        %816 = vmatpush1.bf16.msra.mxu0 %v813
        %817 = vmatprep.subr.bf16.mxu0 0
        %818 = vmatpush1.bf16.msra.mxu0 0
        %819 = vmatprep.subr.bf16.mxu0 0
        %820 = vmatpush1.bf16.msra.mxu0 0
        %821 = vmatprep.subr.bf16.mxu0 0
        %822 = vmatpush1.bf16.msra.mxu0 0
        %823 = vmatprep.subr.bf16.mxu0 0
        %824 = vmatpush1.bf16.msra.mxu0 0
        %825 = vmatprep.subr.bf16.mxu0 0
        %826 = vmatpush1.bf16.msra.mxu0 0
        %827 = vmatprep.subr.bf16.mxu0 0
        %828 = vmatpush1.bf16.msra.mxu0 0
        %829 = vmatprep.subr.bf16.mxu0 0
        %830 = vmatpush1.bf16.msra.mxu0 0
        %831 = vmatprep.subr.bf16.mxu0 0
        %832 = vmatpush1.bf16.msra.mxu0 0
        %833 = vmatprep.subr.bf16.mxu0 0
        %834 = vmatpush1.bf16.msra.mxu0 0
        %835 = vmatprep.subr.bf16.mxu0 0
        %836 = vmatpush1.bf16.msra.mxu0 0
        %837 = vmatprep.subr.bf16.mxu0 0
        %838 = vmatpush1.bf16.msra.mxu0 0
        %839 = vmatprep.subr.bf16.mxu0 0
        %840 = vmatpush1.bf16.msra.mxu0 0
        %841 = vmatprep.subr.bf16.mxu0 0
        %842 = vmatpush1.bf16.msra.mxu0 0
        %843 = vmatprep.subr.bf16.mxu0 0
        %844 = vmatpush1.bf16.msra.mxu0 0
        %845 = vmatprep.subr.bf16.mxu0 0
        %846 = vmatpush1.bf16.msra.mxu0 0
        %847 = vmatprep.mubr.bf16.mxu0 0
        %848 = vmatmul.mubr.bf16.gmra.mrb[0].mxu0 %v810
        %v849 = vpop.f32.mrb[0].mxu0
        %v850 = vadd.f32 %v804, %v849
        %v851 = vpop.f32.mrb[0].mxu0
        %v852 = vpop.f32.mrb[0].mxu0
        %v853 = vpop.f32.mrb[0].mxu0
        %854 = vdwg.mxu0
        %855 = vrot.lane.b32.xlu0 %v536, 112
        %v856 = vpop.permute.xlu0 %855
        %857 = vrot.lane.b32.xlu0 %v536, 80
        %v858 = vpop.permute.xlu0 %857
        %v860 = vsel %vm540, %v856, 0
        %v863 = vsel %vm540, %v858, 0
        %865 = vmatprep.subr.bf16.mxu0 0
        %866 = vmatpush1.bf16.xpose.msra.mxu0 %v863
        %867 = vmatprep.subr.bf16.mxu0 0
        %868 = vmatpush1.bf16.xpose.msra.mxu0 0
        %869 = vmatprep.subr.bf16.mxu0 0
        %870 = vmatpush1.bf16.xpose.msra.mxu0 0
        %871 = vmatprep.subr.bf16.mxu0 0
        %872 = vmatpush1.bf16.xpose.msra.mxu0 0
        %873 = vmatprep.subr.bf16.mxu0 0
        %874 = vmatpush1.bf16.xpose.msra.mxu0 0
        %875 = vmatprep.subr.bf16.mxu0 0
        %876 = vmatpush1.bf16.xpose.msra.mxu0 0
        %877 = vmatprep.subr.bf16.mxu0 0
        %878 = vmatpush1.bf16.xpose.msra.mxu0 0
        %879 = vmatprep.subr.bf16.mxu0 0
        %880 = vmatpush1.bf16.xpose.msra.mxu0 0
        %881 = vmatprep.subr.bf16.mxu0 0
        %882 = vmatpush1.bf16.xpose.msra.mxu0 0
        %883 = vmatprep.subr.bf16.mxu0 0
        %884 = vmatpush1.bf16.xpose.msra.mxu0 0
        %885 = vmatprep.subr.bf16.mxu0 0
        %886 = vmatpush1.bf16.xpose.msra.mxu0 0
        %887 = vmatprep.subr.bf16.mxu0 0
        %888 = vmatpush1.bf16.xpose.msra.mxu0 0
        %889 = vmatprep.subr.bf16.mxu0 0
        %890 = vmatpush1.bf16.xpose.msra.mxu0 0
        %891 = vmatprep.subr.bf16.mxu0 0
        %892 = vmatpush1.bf16.xpose.msra.mxu0 0
        %893 = vmatprep.subr.bf16.mxu0 0
        %894 = vmatpush1.bf16.xpose.msra.mxu0 0
        %895 = vmatprep.subr.bf16.mxu0 0
        %896 = vmatpush1.bf16.xpose.msra.mxu0 0
        %897 = vmatprep.mubr.bf16.mxu0 0
        %898 = vmatmul.mubr.bf16.gmra.mrb[0].mxu0 %v860
        %v899 = vpop.f32.mrb[0].mxu0
        %v900 = vadd.f32 0.0, %v899
        %v901 = vpop.f32.mrb[0].mxu0
        %v902 = vpop.f32.mrb[0].mxu0
        %v903 = vpop.f32.mrb[0].mxu0
        %904 = vdwg.mxu0
        %v905 = vsel %vm540, %v900, -inf
        %906 = vmax.xlane.f32.xlu0 %v905
        %v907 = vpop.xlane.xlu0 %906
        %v908 = vsub.f32 %v900, %v907
        %v909 = vmul.f32 %v908, 1.442695
        %v910 = vpow.pop %v909
        %v911 = vsel %vm540, %v910, 0.0
        %912 = vadd.xlane.f32.xlu0 %v911
        %v913 = vpop.xlane.xlu0 %912
        %v914 = vpack.c.bf16 %v910, %v910
        %915 = vrot.lane.b32.xlu0 %v536, 48
        %v916 = vpop.permute.xlu0 %915
        %v918 = vsel %vm540, %v914, 0
        %v921 = vsel %vm602, %v916, 0
        %923 = vmatprep.subr.bf16.mxu0 0
        %924 = vmatpush1.bf16.msra.mxu0 %v921
        %925 = vmatprep.subr.bf16.mxu0 0
        %926 = vmatpush1.bf16.msra.mxu0 0
        %927 = vmatprep.subr.bf16.mxu0 0
        %928 = vmatpush1.bf16.msra.mxu0 0
        %929 = vmatprep.subr.bf16.mxu0 0
        %930 = vmatpush1.bf16.msra.mxu0 0
        %931 = vmatprep.subr.bf16.mxu0 0
        %932 = vmatpush1.bf16.msra.mxu0 0
        %933 = vmatprep.subr.bf16.mxu0 0
        %934 = vmatpush1.bf16.msra.mxu0 0
        %935 = vmatprep.subr.bf16.mxu0 0
        %936 = vmatpush1.bf16.msra.mxu0 0
        %937 = vmatprep.subr.bf16.mxu0 0
        %938 = vmatpush1.bf16.msra.mxu0 0
        %939 = vmatprep.subr.bf16.mxu0 0
        %940 = vmatpush1.bf16.msra.mxu0 0
        %941 = vmatprep.subr.bf16.mxu0 0
        %942 = vmatpush1.bf16.msra.mxu0 0
        %943 = vmatprep.subr.bf16.mxu0 0
        %944 = vmatpush1.bf16.msra.mxu0 0
        %945 = vmatprep.subr.bf16.mxu0 0
        %946 = vmatpush1.bf16.msra.mxu0 0
        %947 = vmatprep.subr.bf16.mxu0 0
        %948 = vmatpush1.bf16.msra.mxu0 0
        %949 = vmatprep.subr.bf16.mxu0 0
        %950 = vmatpush1.bf16.msra.mxu0 0
        %951 = vmatprep.subr.bf16.mxu0 0
        %952 = vmatpush1.bf16.msra.mxu0 0
        %953 = vmatprep.subr.bf16.mxu0 0
        %954 = vmatpush1.bf16.msra.mxu0 0
        %955 = vmatprep.mubr.bf16.mxu0 0
        %956 = vmatmul.mubr.bf16.gmra.mrb[0].mxu0 %v918
        %v957 = vpop.f32.mrb[0].mxu0
        %v958 = vadd.f32 0.0, %v957
        %v959 = vpop.f32.mrb[0].mxu0
        %v960 = vpop.f32.mrb[0].mxu0
        %v961 = vpop.f32.mrb[0].mxu0
        %962 = vdwg.mxu0
        %v963 = vrcp.pop %v913
        %v964 = vmul.f32 %v958, %v963
        %v965 = vpack.c.bf16 %v964, %v964
        %s966 = scalar_lea.vmem %s5, 8
        %v967 = vld [vmem:[%s966] sm:$0xf]
        %v969 = vsel %vm540, %v965, 0
        %v972 = vsel %vm602, %v967, 0
        %974 = vmatprep.subr.bf16.mxu0 0
        %975 = vmatpush1.bf16.msra.mxu0 %v972
        %976 = vmatprep.subr.bf16.mxu0 0
        %977 = vmatpush1.bf16.msra.mxu0 0
        %978 = vmatprep.subr.bf16.mxu0 0
        %979 = vmatpush1.bf16.msra.mxu0 0
        %980 = vmatprep.subr.bf16.mxu0 0
        %981 = vmatpush1.bf16.msra.mxu0 0
        %982 = vmatprep.subr.bf16.mxu0 0
        %983 = vmatpush1.bf16.msra.mxu0 0
        %984 = vmatprep.subr.bf16.mxu0 0
        %985 = vmatpush1.bf16.msra.mxu0 0
        %986 = vmatprep.subr.bf16.mxu0 0
        %987 = vmatpush1.bf16.msra.mxu0 0
        %988 = vmatprep.subr.bf16.mxu0 0
        %989 = vmatpush1.bf16.msra.mxu0 0
        %990 = vmatprep.subr.bf16.mxu0 0
        %991 = vmatpush1.bf16.msra.mxu0 0
        %992 = vmatprep.subr.bf16.mxu0 0
        %993 = vmatpush1.bf16.msra.mxu0 0
        %994 = vmatprep.subr.bf16.mxu0 0
        %995 = vmatpush1.bf16.msra.mxu0 0
        %996 = vmatprep.subr.bf16.mxu0 0
        %997 = vmatpush1.bf16.msra.mxu0 0
        %998 = vmatprep.subr.bf16.mxu0 0
        %999 = vmatpush1.bf16.msra.mxu0 0
        %1000 = vmatprep.subr.bf16.mxu0 0
        %1001 = vmatpush1.bf16.msra.mxu0 0
        %1002 = vmatprep.subr.bf16.mxu0 0
        %1003 = vmatpush1.bf16.msra.mxu0 0
        %1004 = vmatprep.subr.bf16.mxu0 0
        %1005 = vmatpush1.bf16.msra.mxu0 0
        %1006 = vmatprep.mubr.bf16.mxu0 0
        %1007 = vmatmul.mubr.bf16.gmra.mrb[0].mxu0 %v969
        %v1008 = vpop.f32.mrb[0].mxu0
        %v1009 = vadd.f32 0.0, %v1008
        %v1010 = vpop.f32.mrb[0].mxu0
        %v1011 = vpop.f32.mrb[0].mxu0
        %v1012 = vpop.f32.mrb[0].mxu0
        %1013 = vdwg.mxu0
        %v1014 = vadd.f32 %v850, %v1009
        %1015 = vrot.lane.b32.xlu0 %v536, 104
        %v1016 = vpop.permute.xlu0 %1015
        %1017 = vrot.lane.b32.xlu0 %v536, 72
        %v1018 = vpop.permute.xlu0 %1017
        %v1020 = vsel %vm540, %v1016, 0
        %v1023 = vsel %vm540, %v1018, 0
        %1025 = vmatprep.subr.bf16.mxu0 0
        %1026 = vmatpush1.bf16.xpose.msra.mxu0 %v1023
        %1027 = vmatprep.subr.bf16.mxu0 0
        %1028 = vmatpush1.bf16.xpose.msra.mxu0 0
        %1029 = vmatprep.subr.bf16.mxu0 0
        %1030 = vmatpush1.bf16.xpose.msra.mxu0 0
        %1031 = vmatprep.subr.bf16.mxu0 0
        %1032 = vmatpush1.bf16.xpose.msra.mxu0 0
        %1033 = vmatprep.subr.bf16.mxu0 0
        %1034 = vmatpush1.bf16.xpose.msra.mxu0 0
        %1035 = vmatprep.subr.bf16.mxu0 0
        %1036 = vmatpush1.bf16.xpose.msra.mxu0 0
        %1037 = vmatprep.subr.bf16.mxu0 0
        %1038 = vmatpush1.bf16.xpose.msra.mxu0 0
        %1039 = vmatprep.subr.bf16.mxu0 0
        %1040 = vmatpush1.bf16.xpose.msra.mxu0 0
        %1041 = vmatprep.subr.bf16.mxu0 0
        %1042 = vmatpush1.bf16.xpose.msra.mxu0 0
        %1043 = vmatprep.subr.bf16.mxu0 0
        %1044 = vmatpush1.bf16.xpose.msra.mxu0 0
        %1045 = vmatprep.subr.bf16.mxu0 0
        %1046 = vmatpush1.bf16.xpose.msra.mxu0 0
        %1047 = vmatprep.subr.bf16.mxu0 0
        %1048 = vmatpush1.bf16.xpose.msra.mxu0 0
        %1049 = vmatprep.subr.bf16.mxu0 0
        %1050 = vmatpush1.bf16.xpose.msra.mxu0 0
        %1051 = vmatprep.subr.bf16.mxu0 0
        %1052 = vmatpush1.bf16.xpose.msra.mxu0 0
        %1053 = vmatprep.subr.bf16.mxu0 0
        %1054 = vmatpush1.bf16.xpose.msra.mxu0 0
        %1055 = vmatprep.subr.bf16.mxu0 0
        %1056 = vmatpush1.bf16.xpose.msra.mxu0 0
        %1057 = vmatprep.mubr.bf16.mxu0 0
        %1058 = vmatmul.mubr.bf16.gmra.mrb[0].mxu0 %v1020
        %v1059 = vpop.f32.mrb[0].mxu0
        %v1060 = vadd.f32 0.0, %v1059
        %v1061 = vpop.f32.mrb[0].mxu0
        %v1062 = vpop.f32.mrb[0].mxu0
        %v1063 = vpop.f32.mrb[0].mxu0
        %1064 = vdwg.mxu0
        %v1065 = vsel %vm540, %v1060, -inf
        %1066 = vmax.xlane.f32.xlu0 %v1065
        %v1067 = vpop.xlane.xlu0 %1066
        %v1068 = vsub.f32 %v1060, %v1067
        %v1069 = vmul.f32 %v1068, 1.442695
        %v1070 = vpow.pop %v1069
        %v1071 = vsel %vm540, %v1070, 0.0
        %1072 = vadd.xlane.f32.xlu0 %v1071
        %v1073 = vpop.xlane.xlu0 %1072
        %v1074 = vpack.c.bf16 %v1070, %v1070
        %1075 = vrot.lane.b32.xlu0 %v536, 40
        %v1076 = vpop.permute.xlu0 %1075
        %v1078 = vsel %vm540, %v1074, 0
        %v1081 = vsel %vm602, %v1076, 0
        %1083 = vmatprep.subr.bf16.mxu0 0
        %1084 = vmatpush1.bf16.msra.mxu0 %v1081
        %1085 = vmatprep.subr.bf16.mxu0 0
        %1086 = vmatpush1.bf16.msra.mxu0 0
        %1087 = vmatprep.subr.bf16.mxu0 0
        %1088 = vmatpush1.bf16.msra.mxu0 0
        %1089 = vmatprep.subr.bf16.mxu0 0
        %1090 = vmatpush1.bf16.msra.mxu0 0
        %1091 = vmatprep.subr.bf16.mxu0 0
        %1092 = vmatpush1.bf16.msra.mxu0 0
        %1093 = vmatprep.subr.bf16.mxu0 0
        %1094 = vmatpush1.bf16.msra.mxu0 0
        %1095 = vmatprep.subr.bf16.mxu0 0
        %1096 = vmatpush1.bf16.msra.mxu0 0
        %1097 = vmatprep.subr.bf16.mxu0 0
        %1098 = vmatpush1.bf16.msra.mxu0 0
        %1099 = vmatprep.subr.bf16.mxu0 0
        %1100 = vmatpush1.bf16.msra.mxu0 0
        %1101 = vmatprep.subr.bf16.mxu0 0
        %1102 = vmatpush1.bf16.msra.mxu0 0
        %1103 = vmatprep.subr.bf16.mxu0 0
        %1104 = vmatpush1.bf16.msra.mxu0 0
        %1105 = vmatprep.subr.bf16.mxu0 0
        %1106 = vmatpush1.bf16.msra.mxu0 0
        %1107 = vmatprep.subr.bf16.mxu0 0
        %1108 = vmatpush1.bf16.msra.mxu0 0
        %1109 = vmatprep.subr.bf16.mxu0 0
        %1110 = vmatpush1.bf16.msra.mxu0 0
        %1111 = vmatprep.subr.bf16.mxu0 0
        %1112 = vmatpush1.bf16.msra.mxu0 0
        %1113 = vmatprep.subr.bf16.mxu0 0
        %1114 = vmatpush1.bf16.msra.mxu0 0
        %1115 = vmatprep.mubr.bf16.mxu0 0
        %1116 = vmatmul.mubr.bf16.gmra.mrb[0].mxu0 %v1078
        %v1117 = vpop.f32.mrb[0].mxu0
        %v1118 = vadd.f32 0.0, %v1117
        %v1119 = vpop.f32.mrb[0].mxu0
        %v1120 = vpop.f32.mrb[0].mxu0
        %v1121 = vpop.f32.mrb[0].mxu0
        %1122 = vdwg.mxu0
        %v1123 = vrcp.pop %v1073
        %v1124 = vmul.f32 %v1118, %v1123
        %v1125 = vpack.c.bf16 %v1124, %v1124
        %s1126 = scalar_lea.vmem %s5, 12
        %v1127 = vld [vmem:[%s1126] sm:$0xf]
        %v1129 = vsel %vm540, %v1125, 0
        %v1132 = vsel %vm602, %v1127, 0
        %1134 = vmatprep.subr.bf16.mxu0 0
        %1135 = vmatpush1.bf16.msra.mxu0 %v1132
        %1136 = vmatprep.subr.bf16.mxu0 0
        %1137 = vmatpush1.bf16.msra.mxu0 0
        %1138 = vmatprep.subr.bf16.mxu0 0
        %1139 = vmatpush1.bf16.msra.mxu0 0
        %1140 = vmatprep.subr.bf16.mxu0 0
        %1141 = vmatpush1.bf16.msra.mxu0 0
        %1142 = vmatprep.subr.bf16.mxu0 0
        %1143 = vmatpush1.bf16.msra.mxu0 0
        %1144 = vmatprep.subr.bf16.mxu0 0
        %1145 = vmatpush1.bf16.msra.mxu0 0
        %1146 = vmatprep.subr.bf16.mxu0 0
        %1147 = vmatpush1.bf16.msra.mxu0 0
        %1148 = vmatprep.subr.bf16.mxu0 0
        %1149 = vmatpush1.bf16.msra.mxu0 0
        %1150 = vmatprep.subr.bf16.mxu0 0
        %1151 = vmatpush1.bf16.msra.mxu0 0
        %1152 = vmatprep.subr.bf16.mxu0 0
        %1153 = vmatpush1.bf16.msra.mxu0 0
        %1154 = vmatprep.subr.bf16.mxu0 0
        %1155 = vmatpush1.bf16.msra.mxu0 0
        %1156 = vmatprep.subr.bf16.mxu0 0
        %1157 = vmatpush1.bf16.msra.mxu0 0
        %1158 = vmatprep.subr.bf16.mxu0 0
        %1159 = vmatpush1.bf16.msra.mxu0 0
        %1160 = vmatprep.subr.bf16.mxu0 0
        %1161 = vmatpush1.bf16.msra.mxu0 0
        %1162 = vmatprep.subr.bf16.mxu0 0
        %1163 = vmatpush1.bf16.msra.mxu0 0
        %1164 = vmatprep.subr.bf16.mxu0 0
        %1165 = vmatpush1.bf16.msra.mxu0 0
        %1166 = vmatprep.mubr.bf16.mxu0 0
        %1167 = vmatmul.mubr.bf16.gmra.mrb[0].mxu0 %v1129
        %v1168 = vpop.f32.mrb[0].mxu0
        %v1169 = vadd.f32 0.0, %v1168
        %v1170 = vpop.f32.mrb[0].mxu0
        %v1171 = vpop.f32.mrb[0].mxu0
        %v1172 = vpop.f32.mrb[0].mxu0
        %1173 = vdwg.mxu0
        %v1174 = vadd.f32 %v1014, %v1169
        %v1175 = vadd.f32 %v437, %v1174
        %v1176 = vld [vmem:[%s6] sm:$0x1]
        %v1178 = vlaneseq
        %v1179 = vshrl.u32 %v1178, 7
        %v1180 = vsub.s32 0, %v1179
        %v1181 = vrot.slane %v1176, %v1180
        %v1183 = vadd.f32 %v1175, %v1181
        %v1184 = vld [vmem:[%s7] sm:$0x1]
        %v1185 = vld [vmem:[%s8] sm:$0x1]
        %v1186 = vsel %vm440, %v1183, 0.0
        %1187 = vadd.xlane.f32.xlu0 %v1186
        %v1188 = vpop.xlane.xlu0 %1187
        %v1189 = vmul.f32 %v1188, %v444
        %v1190 = vsub.f32 %v1183, %v1189
        %v1191 = vmul.f32 %v1190, %v1190
        %v1192 = vsel %vm440, %v1191, 0.0
        %1193 = vadd.xlane.f32.xlu0 %v1192
        %v1194 = vpop.xlane.xlu0 %1193
        %v1195 = vmul.f32 %v1194, %v444
        %v1196 = vadd.f32 %v1195, 1e-05
        %v1197 = vrsqrt.pop %v1196
        %v1198 = vmul.f32 %v1190, %v1197
        %v1200 = vlaneseq
        %v1201 = vshrl.u32 %v1200, 7
        %v1202 = vsub.s32 0, %v1201
        %v1203 = vrot.slane %v1184, %v1202
        %v1205 = vmul.f32 %v1198, %v1203
        %v1207 = vlaneseq
        %v1208 = vshrl.u32 %v1207, 7
        %v1209 = vsub.s32 0, %v1208
        %v1210 = vrot.slane %v1185, %v1209
        %v1212 = vadd.f32 %v1205, %v1210
        %v1213 = vpack.c.bf16 %v1212, %v1212
        %v1214 = vld [vmem:[%s9] sm:$0xf]
        %v1215 = vld [vmem:[%s9 + $0x4] sm:$0xf]
        %v1216 = vld [vmem:[%s9 + $0x8] sm:$0xf]
        %v1217 = vld [vmem:[%s9 + $0xc] sm:$0xf]
        %v1218 = vld [vmem:[%s10] sm:$0x1]
        %v1220 = vlaneseq
        %v1221 = vshrl.u32 %v1220, 7
        %v1222 = vsub.s32 0, %v1221
        %v1223 = vrot.slane %v1218, %v1222
        %v1229 = vunpack.c.l.b16 %v1214
        %v1230 = vunpack.c.l.b16 %v1215
        %v1231 = vunpack.c.l.b16 %v1216
        %v1232 = vunpack.c.l.b16 %v1217
        %v1233 = vpack.c.b16 %v1230, %v1229
        %v1234 = vpack.c.b16 %v1232, %v1231
        %v1238 = vsel %vm440, %v1213, 0
        %1240 = vmatprep.subr.bf16.mxu0 0
        %1241 = vmatpush1.bf16.msra.mxu0 %v1233
        %1242 = vmatprep.subr.bf16.mxu0 0
        %1243 = vmatpush1.bf16.msra.mxu0 %v1234
        %1244 = vmatprep.subr.bf16.mxu0 0
        %1245 = vmatpush1.bf16.msra.mxu0 0
        %1246 = vmatprep.subr.bf16.mxu0 0
        %1247 = vmatpush1.bf16.msra.mxu0 0
        %1248 = vmatprep.subr.bf16.mxu0 0
        %1249 = vmatpush1.bf16.msra.mxu0 0
        %1250 = vmatprep.subr.bf16.mxu0 0
        %1251 = vmatpush1.bf16.msra.mxu0 0
        %1252 = vmatprep.subr.bf16.mxu0 0
        %1253 = vmatpush1.bf16.msra.mxu0 0
        %1254 = vmatprep.subr.bf16.mxu0 0
        %1255 = vmatpush1.bf16.msra.mxu0 0
        %1256 = vmatprep.subr.bf16.mxu0 0
        %1257 = vmatpush1.bf16.msra.mxu0 0
        %1258 = vmatprep.subr.bf16.mxu0 0
        %1259 = vmatpush1.bf16.msra.mxu0 0
        %1260 = vmatprep.subr.bf16.mxu0 0
        %1261 = vmatpush1.bf16.msra.mxu0 0
        %1262 = vmatprep.subr.bf16.mxu0 0
        %1263 = vmatpush1.bf16.msra.mxu0 0
        %1264 = vmatprep.subr.bf16.mxu0 0
        %1265 = vmatpush1.bf16.msra.mxu0 0
        %1266 = vmatprep.subr.bf16.mxu0 0
        %1267 = vmatpush1.bf16.msra.mxu0 0
        %1268 = vmatprep.subr.bf16.mxu0 0
        %1269 = vmatpush1.bf16.msra.mxu0 0
        %1270 = vmatprep.subr.bf16.mxu0 0
        %1271 = vmatpush1.bf16.msra.mxu0 0
        %1272 = vmatprep.mubr.bf16.mxu0 0
        %1273 = vmatmul.mubr.bf16.gmra.mrb[0].mxu0 %v1238
        %v1274 = vpop.f32.mrb[0].mxu0
        %v1275 = vadd.f32 %v1223, %v1274
        %v1276 = vpop.f32.mrb[0].mxu0
        %v1277 = vpop.f32.mrb[0].mxu0
        %v1278 = vpop.f32.mrb[0].mxu0
        %1279 = vdwg.mxu0
        %v1280 = vmul.f32 %v1275, -1.702
        %v1281 = vmul.f32 %v1280, 1.442695
        %v1282 = vpow.pop %v1281
        %v1283 = vadd.f32 %v1282, 1.0
        %v1284 = vrcp.pop %v1283
        %v1285 = vmul.f32 %v1275, %v1284
        %v1286 = vpack.c.bf16 %v1285, %v1285
        %v1287 = vld [vmem:[%s11] sm:$0xf]
        %v1288 = vld [vmem:[%s11 + $0x4] sm:$0xf]
        %v1289 = vld [vmem:[%s11 + $0x8] sm:$0xf]
        %v1290 = vld [vmem:[%s11 + $0xc] sm:$0xf]
        %v1291 = vld [vmem:[%s11 + $0x10] sm:$0xf]
        %v1292 = vld [vmem:[%s11 + $0x14] sm:$0xf]
        %v1293 = vld [vmem:[%s11 + $0x18] sm:$0xf]
        %v1294 = vld [vmem:[%s11 + $0x1c] sm:$0xf]
        %v1295 = vld [vmem:[%s11 + $0x20] sm:$0xf]
        %v1296 = vld [vmem:[%s11 + $0x24] sm:$0xf]
        %v1297 = vld [vmem:[%s11 + $0x28] sm:$0xf]
        %v1298 = vld [vmem:[%s11 + $0x2c] sm:$0xf]
        %v1299 = vld [vmem:[%s11 + $0x30] sm:$0xf]
        %v1300 = vld [vmem:[%s11 + $0x34] sm:$0xf]
        %v1301 = vld [vmem:[%s11 + $0x38] sm:$0xf]
        %v1302 = vld [vmem:[%s11 + $0x3c] sm:$0xf]
        %v1303 = vld [vmem:[%s12] sm:$0x1]
        %v1305 = vlaneseq
        %v1306 = vshrl.u32 %v1305, 7
        %v1307 = vsub.s32 0, %v1306
        %v1308 = vrot.slane %v1303, %v1307
        %v1326 = vunpack.c.l.b16 %v1287
        %v1327 = vunpack.c.l.b16 %v1288
        %v1328 = vunpack.c.l.b16 %v1289
        %v1329 = vunpack.c.l.b16 %v1290
        %v1330 = vunpack.c.l.b16 %v1291
        %v1331 = vunpack.c.l.b16 %v1292
        %v1332 = vunpack.c.l.b16 %v1293
        %v1333 = vunpack.c.l.b16 %v1294
        %v1334 = vunpack.c.l.b16 %v1295
        %v1335 = vunpack.c.l.b16 %v1296
        %v1336 = vunpack.c.l.b16 %v1297
        %v1337 = vunpack.c.l.b16 %v1298
        %v1338 = vunpack.c.l.b16 %v1299
        %v1339 = vunpack.c.l.b16 %v1300
        %v1340 = vunpack.c.l.b16 %v1301
        %v1341 = vunpack.c.l.b16 %v1302
        %v1342 = vpack.c.b16 %v1327, %v1326
        %v1343 = vpack.c.b16 %v1329, %v1328
        %v1344 = vpack.c.b16 %v1331, %v1330
        %v1345 = vpack.c.b16 %v1333, %v1332
        %v1346 = vpack.c.b16 %v1335, %v1334
        %v1347 = vpack.c.b16 %v1337, %v1336
        %v1348 = vpack.c.b16 %v1339, %v1338
        %v1349 = vpack.c.b16 %v1341, %v1340
        %1358 = vmatprep.subr.bf16.mxu0 0
        %1359 = vmatpush1.bf16.msra.mxu0 %v1342
        %1360 = vmatprep.subr.bf16.mxu0 0
        %1361 = vmatpush1.bf16.msra.mxu0 %v1343
        %1362 = vmatprep.subr.bf16.mxu0 0
        %1363 = vmatpush1.bf16.msra.mxu0 %v1344
        %1364 = vmatprep.subr.bf16.mxu0 0
        %1365 = vmatpush1.bf16.msra.mxu0 %v1345
        %1366 = vmatprep.subr.bf16.mxu0 0
        %1367 = vmatpush1.bf16.msra.mxu0 %v1346
        %1368 = vmatprep.subr.bf16.mxu0 0
        %1369 = vmatpush1.bf16.msra.mxu0 %v1347
        %1370 = vmatprep.subr.bf16.mxu0 0
        %1371 = vmatpush1.bf16.msra.mxu0 %v1348
        %1372 = vmatprep.subr.bf16.mxu0 0
        %1373 = vmatpush1.bf16.msra.mxu0 %v1349
        %1374 = vmatprep.subr.bf16.mxu0 0
        %1375 = vmatpush1.bf16.msra.mxu0 0
        %1376 = vmatprep.subr.bf16.mxu0 0
        %1377 = vmatpush1.bf16.msra.mxu0 0
        %1378 = vmatprep.subr.bf16.mxu0 0
        %1379 = vmatpush1.bf16.msra.mxu0 0
        %1380 = vmatprep.subr.bf16.mxu0 0
        %1381 = vmatpush1.bf16.msra.mxu0 0
        %1382 = vmatprep.subr.bf16.mxu0 0
        %1383 = vmatpush1.bf16.msra.mxu0 0
        %1384 = vmatprep.subr.bf16.mxu0 0
        %1385 = vmatpush1.bf16.msra.mxu0 0
        %1386 = vmatprep.subr.bf16.mxu0 0
        %1387 = vmatpush1.bf16.msra.mxu0 0
        %1388 = vmatprep.subr.bf16.mxu0 0
        %1389 = vmatpush1.bf16.msra.mxu0 0
        %1390 = vmatprep.mubr.bf16.mxu0 0
        %1391 = vmatmul.mubr.bf16.gmra.mrb[0].mxu0 %v1286
        %v1392 = vpop.f32.mrb[0].mxu0
        %v1393 = vadd.f32 %v1308, %v1392
        %v1394 = vpop.f32.mrb[0].mxu0
        %v1395 = vpop.f32.mrb[0].mxu0
        %v1396 = vpop.f32.mrb[0].mxu0
        %1397 = vdwg.mxu0
        %v1398 = vadd.f32 %v1183, %v1393
        %1399 = vst.msk [vmem:[%s431] sm:$0xff] %vm440, %v1398
        %s1400 = sand.u32 %s313, 1
        %s1401 = scalar_lea.sflag [#allocation3], %s1400
        %s1402 = sand.u32 %s313, 1
        %s1403 = smul.addr %s1402, 8
        %s1404 = scalar_lea.vmem [#allocation2], %s1403
        // Predicated region
        $region73: #{tpu_custom_call.1} parent=71 // pred_check
          %p1405 = pneg %p323
        $region74: #{tpu_custom_call.1} parent=71 // pred_check_branch
          %1407 = sbr.rel (%p1405) target = $region76
        $region75: #{tpu_custom_call.1} parent=71 // pred_region
          %s1409 = ssub.s32 128, 128
          %1410 = vsyncadd %s1401, %s1409
          %s1411 = smul.addr %s27, 128
          %s1412 = scalar_lea.hbm %s13, %s1411
          %s1414 = sshll.u32 %s1404, 4
          %s1415 = int_to_ptr.vmem [resolvable:$true] %s1414
          %1417 = dma.vmem_to_hbm [thread:$0]  %s1415, 128, %s1412, %s1401
        $region76: #{tpu_custom_call.1} parent=71 // pred_fallthru
          _
      $region72: #{tpu_custom_call.1} parent=5 // pred_fallthru
        _
      %p1418 = scmp.le.s32.totalorder 2, %s22
      // Predicated region
      $region77: #{tpu_custom_call.1} parent=5 // pred_check
        %p1419 = pneg %p1418
      $region78: #{tpu_custom_call.1} parent=5 // pred_check_branch
        %1421 = sbr.rel (%p1419) target = $region80
      $region79: #{tpu_custom_call.1} parent=5 // pred_region
        %s1422 = ssub.s32 %s22, 2
        // Predicated region
        $region81: #{tpu_custom_call.1} parent=79 // pred_check
          %p1423 = pneg %p329
        $region82: #{tpu_custom_call.1} parent=79 // pred_check_branch
          %1425 = sbr.rel (%p1423) target = $region84
        $region83: #{tpu_custom_call.1} parent=79 // pred_region
          %s1426 = sand.u32 %s314, 1
          %s1427 = scalar_lea.sflag [#allocation3], %s1426
          %s1428 = sand.u32 %s314, 1
          %s1429 = smul.addr %s1428, 8
          %s1430 = scalar_lea.vmem [#allocation2], %s1429
          %1431 = dma.done %s1427, 128
        $region84: #{tpu_custom_call.1} parent=79 // pred_fallthru
          _
      $region80: #{tpu_custom_call.1} parent=5 // pred_fallthru
        _
    $region6: #{tpu_custom_call.1} parent=1 // loop_footer
      %s26 = sadd.s32 1, %s22
    $region7: #{tpu_custom_call.1} parent=1 // loop_footer_branch
      %21 = sbr.rel target = $region3
    $region8: #{tpu_custom_call.1} parent=1 // loop_exit
      _
    %1432 = vsyncpa [#allocation3], 1
    %s1433 = scalar_lea.sflag [#allocation3], 1
    %1434 = vsyncpa %s1433, 1

// kernel: tpu_custom_call.1
$region0: #{tpu_custom_call.1}
  #allocation0 [shape = 'u32[]', space=smem, size = 0x4, offset = 0x4, fixed_abs, tag = 'smem constant byte address 0x4 - core index']
  #allocation1 [shape = 'u32[144,128]{1,0:T(1,128)}', space=vmem, size = 0x12000, scoped, tag = 'internal scratch']
  %s0 = inlined_call_operand.vmem [shape: f32[2,8,32], index: 0, kind: input, shape index: {}]
  %s1 = inlined_call_operand.vmem [shape: f32[1,32], index: 1, kind: input, shape index: {}]
  %s2 = inlined_call_operand.vmem [shape: f32[1,32], index: 2, kind: input, shape index: {}]
  %s3 = inlined_call_operand.vmem [shape: bf16[32,96], index: 3, kind: input, shape index: {}]
  %s4 = inlined_call_operand.vmem [shape: f32[1,96], index: 4, kind: input, shape index: {}]
  %s5 = inlined_call_operand.vmem [shape: bf16[4,8,32], index: 5, kind: input, shape index: {}]
  %s6 = inlined_call_operand.vmem [shape: f32[1,32], index: 6, kind: input, shape index: {}]
  %s7 = inlined_call_operand.vmem [shape: f32[1,32], index: 7, kind: input, shape index: {}]
  %s8 = inlined_call_operand.vmem [shape: f32[1,32], index: 8, kind: input, shape index: {}]
  %s9 = inlined_call_operand.vmem [shape: bf16[32,128], index: 9, kind: input, shape index: {}]
  %s10 = inlined_call_operand.vmem [shape: f32[1,128], index: 10, kind: input, shape index: {}]
  %s11 = inlined_call_operand.vmem [shape: bf16[128,32], index: 11, kind: input, shape index: {}]
  %s12 = inlined_call_operand.vmem [shape: f32[1,32], index: 12, kind: input, shape index: {}]
  %s13 = inlined_call_operand.hbm [shape: f32[2,8,32], index: 13, kind: output, shape index: {}]
  %s14 = sld [smem:[#allocation0]]
  $region85: #{tpu_custom_call.1} parent=0
    _
  %s16 = ssub.s32 1, %s14
  %s17 = scalar_select 0, %s16, %s14
  $region1: #{tpu_custom_call.1} parent=0
    #allocation2 [shape = 'u8[8192]{0}', space=vmem, size = 0x2000, scoped, tag = 'output window, operand 0']
    #allocation3 [shape = 's32[2]{0}', space=sflag, size = 0x8, scoped, tag = 'scoped memory for tpu_custom_call.1']
    %18 = vsyncpa [#allocation3], 0
    %s19 = scalar_lea.sflag [#allocation3], 1
    %20 = vsyncpa %s19, 0
    loop: start=0, step=1, limit=4
    $region2: #{tpu_custom_call.1} parent=1 // loop_pre_header
      _
    $region3: #{tpu_custom_call.1} parent=1 // loop_header
      %s22 = sphi 0, %s26
      %p23 = scmp.ge.s32.totalorder %s22, 4
      %s32 = sphi 0, %s34
      %s35 = sphi 0, %s32
      %s36 = sphi 0, %s35
      %s52 = sphi 0, %s36
      %s56 = sphi 0, %s56
      %s58 = sphi 0, %s56
      %s59 = sphi 0, %s58
      %s73 = sphi 0, %s59
      %s77 = sphi 0, %s77
      %s79 = sphi 0, %s77
      %s80 = sphi 0, %s79
      %s94 = sphi 0, %s80
      %s98 = sphi 0, %s98
      %s100 = sphi 0, %s98
      %s101 = sphi 0, %s100
      %s115 = sphi 0, %s101
      %s119 = sphi 0, %s119
      %s121 = sphi 0, %s119
      %s122 = sphi 0, %s121
      %s136 = sphi 0, %s122
      %s140 = sphi 0, %s140
      %s142 = sphi 0, %s140
      %s143 = sphi 0, %s142
      %s157 = sphi 0, %s143
      %s161 = sphi 0, %s161
      %s163 = sphi 0, %s161
      %s164 = sphi 0, %s163
      %s178 = sphi 0, %s164
      %s182 = sphi 0, %s182
      %s184 = sphi 0, %s182
      %s185 = sphi 0, %s184
      %s199 = sphi 0, %s185
      %s203 = sphi 0, %s203
      %s205 = sphi 0, %s203
      %s206 = sphi 0, %s205
      %s220 = sphi 0, %s206
      %s224 = sphi 0, %s224
      %s226 = sphi 0, %s224
      %s227 = sphi 0, %s226
      %s241 = sphi 0, %s227
      %s245 = sphi 0, %s245
      %s247 = sphi 0, %s245
      %s248 = sphi 0, %s247
      %s262 = sphi 0, %s248
      %s266 = sphi 0, %s266
      %s268 = sphi 0, %s266
      %s269 = sphi 0, %s268
      %s283 = sphi 0, %s269
      %s287 = sphi 0, %s287
      %s289 = sphi 0, %s287
      %s290 = sphi 0, %s289
      %s304 = sphi 0, %s290
      %s310 = sphi 0, %s312
      %s313 = sphi 0, %s310
      %s314 = sphi 0, %s313
      %s330 = sphi 0, %s314
    $region4: #{tpu_custom_call.1} parent=1 // loop_header_branch
      %25 = sbr.rel (%p23) target = $region8
    $region5: #{tpu_custom_call.1} parent=1 // loop_body
      %s27 = ssub.s32 %s22, 1
      %s28 = ssub.s32 %s22, 2
      %s29 = sadd.s32 %s22, 1
      %s30 = ssub.s32 %s22, %s29
      %p31 = scmp.eq.s32.totalorder %s30, 0
      %s33 = sadd.s32 %s32, 1
      %s34 = scalar_select %p31, %s32, %s33
      %p37 = pneg %p31
      %p38 = scmp.eq.s32.totalorder %s22, 1
      %p39 = por %p37, %p38
      %p40 = scmp.ne.s32.totalorder %s32, %s35
      %p41 = scmp.eq.s32.totalorder %s22, 0
      %p42 = por %p40, %p41
      %p43 = scmp.ne.s32.totalorder %s32, %s35
      %p44 = scmp.eq.s32.totalorder %s27, 1
      %p45 = por %p43, %p44
      %p46 = scmp.ne.s32.totalorder %s35, %s36
      %p47 = scmp.eq.s32.totalorder %s27, 0
      %p48 = por %p46, %p47
      %p49 = scmp.ne.s32.totalorder %s35, %s36
      %p50 = scmp.eq.s32.totalorder %s28, 1
      %p51 = por %p49, %p50
      %p53 = scmp.ne.s32.totalorder %s36, %s52
      %p54 = scmp.eq.s32.totalorder %s28, 0
      %p55 = por %p53, %p54
      %s57 = sadd.s32 %s56, 1
      %p60 = scmp.eq.s32.totalorder %s22, 1
      %p61 = scmp.ne.s32.totalorder %s56, %s58
      %p62 = scmp.eq.s32.totalorder %s22, 0
      %p63 = por %p61, %p62
      %p64 = scmp.ne.s32.totalorder %s56, %s58
      %p65 = scmp.eq.s32.totalorder %s27, 1
      %p66 = por %p64, %p65
      %p67 = scmp.ne.s32.totalorder %s58, %s59
      %p68 = scmp.eq.s32.totalorder %s27, 0
      %p69 = por %p67, %p68
      %p70 = scmp.ne.s32.totalorder %s58, %s59
      %p71 = scmp.eq.s32.totalorder %s28, 1
      %p72 = por %p70, %p71
      %p74 = scmp.ne.s32.totalorder %s59, %s73
      %p75 = scmp.eq.s32.totalorder %s28, 0
      %p76 = por %p74, %p75
      %s78 = sadd.s32 %s77, 1
      %p81 = scmp.eq.s32.totalorder %s22, 1
      %p82 = scmp.ne.s32.totalorder %s77, %s79
      %p83 = scmp.eq.s32.totalorder %s22, 0
      %p84 = por %p82, %p83
      %p85 = scmp.ne.s32.totalorder %s77, %s79
      %p86 = scmp.eq.s32.totalorder %s27, 1
      %p87 = por %p85, %p86
      %p88 = scmp.ne.s32.totalorder %s79, %s80
      %p89 = scmp.eq.s32.totalorder %s27, 0
      %p90 = por %p88, %p89
      %p91 = scmp.ne.s32.totalorder %s79, %s80
      %p92 = scmp.eq.s32.totalorder %s28, 1
      %p93 = por %p91, %p92
      %p95 = scmp.ne.s32.totalorder %s80, %s94
      %p96 = scmp.eq.s32.totalorder %s28, 0
      %p97 = por %p95, %p96
      %s99 = sadd.s32 %s98, 1
      %p102 = scmp.eq.s32.totalorder %s22, 1
      %p103 = scmp.ne.s32.totalorder %s98, %s100
      %p104 = scmp.eq.s32.totalorder %s22, 0
      %p105 = por %p103, %p104
      %p106 = scmp.ne.s32.totalorder %s98, %s100
      %p107 = scmp.eq.s32.totalorder %s27, 1
      %p108 = por %p106, %p107
      %p109 = scmp.ne.s32.totalorder %s100, %s101
      %p110 = scmp.eq.s32.totalorder %s27, 0
      %p111 = por %p109, %p110
      %p112 = scmp.ne.s32.totalorder %s100, %s101
      %p113 = scmp.eq.s32.totalorder %s28, 1
      %p114 = por %p112, %p113
      %p116 = scmp.ne.s32.totalorder %s101, %s115
      %p117 = scmp.eq.s32.totalorder %s28, 0
      %p118 = por %p116, %p117
      %s120 = sadd.s32 %s119, 1
      %p123 = scmp.eq.s32.totalorder %s22, 1
      %p124 = scmp.ne.s32.totalorder %s119, %s121
      %p125 = scmp.eq.s32.totalorder %s22, 0
      %p126 = por %p124, %p125
      %p127 = scmp.ne.s32.totalorder %s119, %s121
      %p128 = scmp.eq.s32.totalorder %s27, 1
      %p129 = por %p127, %p128
      %p130 = scmp.ne.s32.totalorder %s121, %s122
      %p131 = scmp.eq.s32.totalorder %s27, 0
      %p132 = por %p130, %p131
      %p133 = scmp.ne.s32.totalorder %s121, %s122
      %p134 = scmp.eq.s32.totalorder %s28, 1
      %p135 = por %p133, %p134
      %p137 = scmp.ne.s32.totalorder %s122, %s136
      %p138 = scmp.eq.s32.totalorder %s28, 0
      %p139 = por %p137, %p138
      %s141 = sadd.s32 %s140, 1
      %p144 = scmp.eq.s32.totalorder %s22, 1
      %p145 = scmp.ne.s32.totalorder %s140, %s142
      %p146 = scmp.eq.s32.totalorder %s22, 0
      %p147 = por %p145, %p146
      %p148 = scmp.ne.s32.totalorder %s140, %s142
      %p149 = scmp.eq.s32.totalorder %s27, 1
      %p150 = por %p148, %p149
      %p151 = scmp.ne.s32.totalorder %s142, %s143
      %p152 = scmp.eq.s32.totalorder %s27, 0
      %p153 = por %p151, %p152
      %p154 = scmp.ne.s32.totalorder %s142, %s143
      %p155 = scmp.eq.s32.totalorder %s28, 1
      %p156 = por %p154, %p155
      %p158 = scmp.ne.s32.totalorder %s143, %s157
      %p159 = scmp.eq.s32.totalorder %s28, 0
      %p160 = por %p158, %p159
      %s162 = sadd.s32 %s161, 1
      %p165 = scmp.eq.s32.totalorder %s22, 1
      %p166 = scmp.ne.s32.totalorder %s161, %s163
      %p167 = scmp.eq.s32.totalorder %s22, 0
      %p168 = por %p166, %p167
      %p169 = scmp.ne.s32.totalorder %s161, %s163
      %p170 = scmp.eq.s32.totalorder %s27, 1
      %p171 = por %p169, %p170
      %p172 = scmp.ne.s32.totalorder %s163, %s164
      %p173 = scmp.eq.s32.totalorder %s27, 0
      %p174 = por %p172, %p173
      %p175 = scmp.ne.s32.totalorder %s163, %s164
      %p176 = scmp.eq.s32.totalorder %s28, 1
      %p177 = por %p175, %p176
      %p179 = scmp.ne.s32.totalorder %s164, %s178
      %p180 = scmp.eq.s32.totalorder %s28, 0
      %p181 = por %p179, %p180
      %s183 = sadd.s32 %s182, 1
      %p186 = scmp.eq.s32.totalorder %s22, 1
      %p187 = scmp.ne.s32.totalorder %s182, %s184
      %p188 = scmp.eq.s32.totalorder %s22, 0
      %p189 = por %p187, %p188
      %p190 = scmp.ne.s32.totalorder %s182, %s184
      %p191 = scmp.eq.s32.totalorder %s27, 1
      %p192 = por %p190, %p191
      %p193 = scmp.ne.s32.totalorder %s184, %s185
      %p194 = scmp.eq.s32.totalorder %s27, 0
      %p195 = por %p193, %p194
      %p196 = scmp.ne.s32.totalorder %s184, %s185
      %p197 = scmp.eq.s32.totalorder %s28, 1
      %p198 = por %p196, %p197
      %p200 = scmp.ne.s32.totalorder %s185, %s199
      %p201 = scmp.eq.s32.totalorder %s28, 0
      %p202 = por %p200, %p201
      %s204 = sadd.s32 %s203, 1
      %p207 = scmp.eq.s32.totalorder %s22, 1
      %p208 = scmp.ne.s32.totalorder %s203, %s205
      %p209 = scmp.eq.s32.totalorder %s22, 0
      %p210 = por %p208, %p209
      %p211 = scmp.ne.s32.totalorder %s203, %s205
      %p212 = scmp.eq.s32.totalorder %s27, 1
      %p213 = por %p211, %p212
      %p214 = scmp.ne.s32.totalorder %s205, %s206
      %p215 = scmp.eq.s32.totalorder %s27, 0
      %p216 = por %p214, %p215
      %p217 = scmp.ne.s32.totalorder %s205, %s206
      %p218 = scmp.eq.s32.totalorder %s28, 1
      %p219 = por %p217, %p218
      %p221 = scmp.ne.s32.totalorder %s206, %s220
      %p222 = scmp.eq.s32.totalorder %s28, 0
      %p223 = por %p221, %p222
      %s225 = sadd.s32 %s224, 1
      %p228 = scmp.eq.s32.totalorder %s22, 1
      %p229 = scmp.ne.s32.totalorder %s224, %s226
      %p230 = scmp.eq.s32.totalorder %s22, 0
      %p231 = por %p229, %p230
      %p232 = scmp.ne.s32.totalorder %s224, %s226
      %p233 = scmp.eq.s32.totalorder %s27, 1
      %p234 = por %p232, %p233
      %p235 = scmp.ne.s32.totalorder %s226, %s227
      %p236 = scmp.eq.s32.totalorder %s27, 0
      %p237 = por %p235, %p236
      %p238 = scmp.ne.s32.totalorder %s226, %s227
      %p239 = scmp.eq.s32.totalorder %s28, 1
      %p240 = por %p238, %p239
      %p242 = scmp.ne.s32.totalorder %s227, %s241
      %p243 = scmp.eq.s32.totalorder %s28, 0
      %p244 = por %p242, %p243
      %s246 = sadd.s32 %s245, 1
      %p249 = scmp.eq.s32.totalorder %s22, 1
      %p250 = scmp.ne.s32.totalorder %s245, %s247
      %p251 = scmp.eq.s32.totalorder %s22, 0
      %p252 = por %p250, %p251
      %p253 = scmp.ne.s32.totalorder %s245, %s247
      %p254 = scmp.eq.s32.totalorder %s27, 1
      %p255 = por %p253, %p254
      %p256 = scmp.ne.s32.totalorder %s247, %s248
      %p257 = scmp.eq.s32.totalorder %s27, 0
      %p258 = por %p256, %p257
      %p259 = scmp.ne.s32.totalorder %s247, %s248
      %p260 = scmp.eq.s32.totalorder %s28, 1
      %p261 = por %p259, %p260
      %p263 = scmp.ne.s32.totalorder %s248, %s262
      %p264 = scmp.eq.s32.totalorder %s28, 0
      %p265 = por %p263, %p264
      %s267 = sadd.s32 %s266, 1
      %p270 = scmp.eq.s32.totalorder %s22, 1
      %p271 = scmp.ne.s32.totalorder %s266, %s268
      %p272 = scmp.eq.s32.totalorder %s22, 0
      %p273 = por %p271, %p272
      %p274 = scmp.ne.s32.totalorder %s266, %s268
      %p275 = scmp.eq.s32.totalorder %s27, 1
      %p276 = por %p274, %p275
      %p277 = scmp.ne.s32.totalorder %s268, %s269
      %p278 = scmp.eq.s32.totalorder %s27, 0
      %p279 = por %p277, %p278
      %p280 = scmp.ne.s32.totalorder %s268, %s269
      %p281 = scmp.eq.s32.totalorder %s28, 1
      %p282 = por %p280, %p281
      %p284 = scmp.ne.s32.totalorder %s269, %s283
      %p285 = scmp.eq.s32.totalorder %s28, 0
      %p286 = por %p284, %p285
      %s288 = sadd.s32 %s287, 1
      %p291 = scmp.eq.s32.totalorder %s22, 1
      %p292 = scmp.ne.s32.totalorder %s287, %s289
      %p293 = scmp.eq.s32.totalorder %s22, 0
      %p294 = por %p292, %p293
      %p295 = scmp.ne.s32.totalorder %s287, %s289
      %p296 = scmp.eq.s32.totalorder %s27, 1
      %p297 = por %p295, %p296
      %p298 = scmp.ne.s32.totalorder %s289, %s290
      %p299 = scmp.eq.s32.totalorder %s27, 0
      %p300 = por %p298, %p299
      %p301 = scmp.ne.s32.totalorder %s289, %s290
      %p302 = scmp.eq.s32.totalorder %s28, 1
      %p303 = por %p301, %p302
      %p305 = scmp.ne.s32.totalorder %s290, %s304
      %p306 = scmp.eq.s32.totalorder %s28, 0
      %p307 = por %p305, %p306
      %s308 = ssub.s32 %s22, %s29
      %p309 = scmp.eq.s32.totalorder %s308, 0
      %s311 = sadd.s32 %s310, 1
      %s312 = scalar_select %p309, %s310, %s311
      %p315 = pneg %p309
      %p316 = scmp.eq.s32.totalorder %s22, 1
      %p317 = por %p315, %p316
      %p318 = scmp.ne.s32.totalorder %s310, %s313
      %p319 = scmp.eq.s32.totalorder %s22, 0
      %p320 = por %p318, %p319
      %p321 = scmp.ne.s32.totalorder %s310, %s313
      %p322 = scmp.eq.s32.totalorder %s27, 1
      %p323 = por %p321, %p322
      %p324 = scmp.ne.s32.totalorder %s313, %s314
      %p325 = scmp.eq.s32.totalorder %s27, 0
      %p326 = por %p324, %p325
      %p327 = scmp.ne.s32.totalorder %s313, %s314
      %p328 = scmp.eq.s32.totalorder %s28, 1
      %p329 = por %p327, %p328
      %p331 = scmp.ne.s32.totalorder %s314, %s330
      %p332 = scmp.eq.s32.totalorder %s28, 0
      %p333 = por %p331, %p332
      %p334 = scmp.le.s32.totalorder 1, %s22
      %p335 = scmp.lt.s32.totalorder %s22, 3
      %p336 = pnand %p334, %p335
      %p337 = pneg %p336
      // Predicated region
      $region9: #{tpu_custom_call.1} parent=5 // pred_check
        _
      $region10: #{tpu_custom_call.1} parent=5 // pred_check_branch
        %339 = sbr.rel (%p336) target = $region12
      $region11: #{tpu_custom_call.1} parent=5 // pred_region
        %s340 = ssub.s32 %s22, 1
        // Predicated region
        $region13: #{tpu_custom_call.1} parent=11 // pred_check
          %p341 = pneg %p69
        $region14: #{tpu_custom_call.1} parent=11 // pred_check_branch
          %343 = sbr.rel (%p341) target = $region16
        $region15: #{tpu_custom_call.1} parent=11 // pred_region
          _
        $region16: #{tpu_custom_call.1} parent=11 // pred_fallthru
          _
        // Predicated region
        $region17: #{tpu_custom_call.1} parent=11 // pred_check
          %p344 = pneg %p90
        $region18: #{tpu_custom_call.1} parent=11 // pred_check_branch
          %346 = sbr.rel (%p344) target = $region20
        $region19: #{tpu_custom_call.1} parent=11 // pred_region
          _
        $region20: #{tpu_custom_call.1} parent=11 // pred_fallthru
          _
        // Predicated region
        $region21: #{tpu_custom_call.1} parent=11 // pred_check
          %p347 = pneg %p111
        $region22: #{tpu_custom_call.1} parent=11 // pred_check_branch
          %349 = sbr.rel (%p347) target = $region24
        $region23: #{tpu_custom_call.1} parent=11 // pred_region
          _
        $region24: #{tpu_custom_call.1} parent=11 // pred_fallthru
          _
        // Predicated region
        $region25: #{tpu_custom_call.1} parent=11 // pred_check
          %p350 = pneg %p132
        $region26: #{tpu_custom_call.1} parent=11 // pred_check_branch
          %352 = sbr.rel (%p350) target = $region28
        $region27: #{tpu_custom_call.1} parent=11 // pred_region
          _
        $region28: #{tpu_custom_call.1} parent=11 // pred_fallthru
          _
        // Predicated region
        $region29: #{tpu_custom_call.1} parent=11 // pred_check
          %p353 = pneg %p153
        $region30: #{tpu_custom_call.1} parent=11 // pred_check_branch
          %355 = sbr.rel (%p353) target = $region32
        $region31: #{tpu_custom_call.1} parent=11 // pred_region
          _
        $region32: #{tpu_custom_call.1} parent=11 // pred_fallthru
          _
        // Predicated region
        $region33: #{tpu_custom_call.1} parent=11 // pred_check
          %p356 = pneg %p174
        $region34: #{tpu_custom_call.1} parent=11 // pred_check_branch
          %358 = sbr.rel (%p356) target = $region36
        $region35: #{tpu_custom_call.1} parent=11 // pred_region
          _
        $region36: #{tpu_custom_call.1} parent=11 // pred_fallthru
          _
        // Predicated region
        $region37: #{tpu_custom_call.1} parent=11 // pred_check
          %p359 = pneg %p195
        $region38: #{tpu_custom_call.1} parent=11 // pred_check_branch
          %361 = sbr.rel (%p359) target = $region40
        $region39: #{tpu_custom_call.1} parent=11 // pred_region
          _
        $region40: #{tpu_custom_call.1} parent=11 // pred_fallthru
          _
        // Predicated region
        $region41: #{tpu_custom_call.1} parent=11 // pred_check
          %p362 = pneg %p216
        $region42: #{tpu_custom_call.1} parent=11 // pred_check_branch
          %364 = sbr.rel (%p362) target = $region44
        $region43: #{tpu_custom_call.1} parent=11 // pred_region
          _
        $region44: #{tpu_custom_call.1} parent=11 // pred_fallthru
          _
        // Predicated region
        $region45: #{tpu_custom_call.1} parent=11 // pred_check
          %p365 = pneg %p237
        $region46: #{tpu_custom_call.1} parent=11 // pred_check_branch
          %367 = sbr.rel (%p365) target = $region48
        $region47: #{tpu_custom_call.1} parent=11 // pred_region
          _
        $region48: #{tpu_custom_call.1} parent=11 // pred_fallthru
          _
        // Predicated region
        $region49: #{tpu_custom_call.1} parent=11 // pred_check
          %p368 = pneg %p258
        $region50: #{tpu_custom_call.1} parent=11 // pred_check_branch
          %370 = sbr.rel (%p368) target = $region52
        $region51: #{tpu_custom_call.1} parent=11 // pred_region
          _
        $region52: #{tpu_custom_call.1} parent=11 // pred_fallthru
          _
        // Predicated region
        $region53: #{tpu_custom_call.1} parent=11 // pred_check
          %p371 = pneg %p279
        $region54: #{tpu_custom_call.1} parent=11 // pred_check_branch
          %373 = sbr.rel (%p371) target = $region56
        $region55: #{tpu_custom_call.1} parent=11 // pred_region
          _
        $region56: #{tpu_custom_call.1} parent=11 // pred_fallthru
          _
        // Predicated region
        $region57: #{tpu_custom_call.1} parent=11 // pred_check
          %p374 = pneg %p300
        $region58: #{tpu_custom_call.1} parent=11 // pred_check_branch
          %376 = sbr.rel (%p374) target = $region60
        $region59: #{tpu_custom_call.1} parent=11 // pred_region
          _
        $region60: #{tpu_custom_call.1} parent=11 // pred_fallthru
          _
      $region12: #{tpu_custom_call.1} parent=5 // pred_fallthru
        _
      %p377 = scmp.lt.s32.totalorder %s22, 2
      // Predicated region
      $region61: #{tpu_custom_call.1} parent=5 // pred_check
        %p378 = pneg %p377
      $region62: #{tpu_custom_call.1} parent=5 // pred_check_branch
        %380 = sbr.rel (%p378) target = $region64
      $region63: #{tpu_custom_call.1} parent=5 // pred_region
        // Predicated region
        $region65: #{tpu_custom_call.1} parent=63 // pred_check
          %p381 = pneg %p42
        $region66: #{tpu_custom_call.1} parent=63 // pred_check_branch
          %383 = sbr.rel (%p381) target = $region68
        $region67: #{tpu_custom_call.1} parent=63 // pred_region
          %p384 = scmp.lt.s32.totalorder %s22, 1
          %s385 = scalar_select %p384, %s22, 1
          %s386 = smul.addr %s385, 8
          %s387 = scalar_lea.vmem %s0, %s386
        $region68: #{tpu_custom_call.1} parent=63 // pred_fallthru
          _
      $region64: #{tpu_custom_call.1} parent=5 // pred_fallthru
        _
      %p388 = scmp.le.s32.totalorder 1, %s22
      %p389 = scmp.lt.s32.totalorder %s22, 3
      %p390 = pnand %p388, %p389
      %p391 = pneg %p390
      // Predicated region
      $region69: #{tpu_custom_call.1} parent=5 // pred_check
        _
      $region70: #{tpu_custom_call.1} parent=5 // pred_check_branch
        %393 = sbr.rel (%p390) target = $region72
      $region71: #{tpu_custom_call.1} parent=5 // pred_region
        %s394 = ssub.s32 %s22, 1
        %p395 = scmp.lt.s32.totalorder %s27, 1
        %s396 = scalar_select %p395, %s27, 1
        %s397 = smul.addr %s396, 8
        %s398 = scalar_lea.vmem %s0, %s397
        %p399 = pneg %p48
        %p400 = pneg %p45
        %p401 = pneg %p69
        %p402 = pneg %p66
        %p403 = pneg %p90
        %p404 = pneg %p87
        %p405 = pneg %p111
        %p406 = pneg %p108
        %p407 = pneg %p132
        %p408 = pneg %p129
        %p409 = pneg %p153
        %p410 = pneg %p150
        %p411 = pneg %p174
        %p412 = pneg %p171
        %p413 = pneg %p195
        %p414 = pneg %p192
        %p415 = pneg %p216
        %p416 = pneg %p213
        %p417 = pneg %p237
        %p418 = pneg %p234
        %p419 = pneg %p258
        %p420 = pneg %p255
        %p421 = pneg %p279
        %p422 = pneg %p276
        %p423 = pneg %p300
        %p424 = pneg %p297
        %p425 = pneg %p326
        %p426 = pneg %p323
        %s427 = sand.u32 %s313, 1
        %s428 = scalar_lea.sflag [#allocation3], %s427
        %s429 = sand.u32 %s313, 1
        %s430 = smul.addr %s429, 8
        %s431 = scalar_lea.vmem [#allocation2], %s430
        %p432 = scmp.lt.s32.totalorder %s27, 1
        %s433 = scalar_select %p432, %s27, 1
        %s434 = smul.addr %s433, 8
        %s435 = scalar_lea.vmem %s0, %s434
        %v437 = vld [vmem:[%s435] sm:$0xff]
        %v438 = vld [vmem:[%s1] sm:$0x1]
        %v439 = vld [vmem:[%s2] sm:$0x1]
        %vm440 = vcmask 261120
        %v441 = vsel %vm440, %v437, 0.0
        %442 = vadd.xlane.f32.xlu0 %v441
        %v443 = vpop.xlane.xlu0 %442
        %v444 = vrcp.pop 32.0
        %v445 = vmul.f32 %v443, %v444
        %v446 = vsub.f32 %v437, %v445
        %v447 = vmul.f32 %v446, %v446
        %v448 = vsel %vm440, %v447, 0.0
        %449 = vadd.xlane.f32.xlu0 %v448
        %v450 = vpop.xlane.xlu0 %449
        %v451 = vmul.f32 %v450, %v444
        %v452 = vadd.f32 %v451, 1e-05
        %v453 = vrsqrt.pop %v452
        %v454 = vmul.f32 %v446, %v453
        %v456 = vlaneseq
        %v457 = vshrl.u32 %v456, 7
        %v458 = vsub.s32 0, %v457
        %v459 = vrot.slane %v438, %v458
        %v461 = vmul.f32 %v454, %v459
        %v463 = vlaneseq
        %v464 = vshrl.u32 %v463, 7
        %v465 = vsub.s32 0, %v464
        %v466 = vrot.slane %v439, %v465
        %v468 = vadd.f32 %v461, %v466
        %v469 = vpack.c.bf16 %v468, %v468
        %v470 = vld [vmem:[%s3] sm:$0xf]
        %v471 = vld [vmem:[%s3 + $0x4] sm:$0xf]
        %v472 = vld [vmem:[%s3 + $0x8] sm:$0xf]
        %v473 = vld [vmem:[%s3 + $0xc] sm:$0xf]
        %v474 = vld [vmem:[%s4] sm:$0x1]
        %v476 = vlaneseq
        %v477 = vshrl.u32 %v476, 7
        %v478 = vsub.s32 0, %v477
        %v479 = vrot.slane %v474, %v478
        %v485 = vunpack.c.l.b16 %v470
        %v486 = vunpack.c.l.b16 %v471
        %v487 = vunpack.c.l.b16 %v472
        %v488 = vunpack.c.l.b16 %v473
        %v489 = vpack.c.b16 %v486, %v485
        %v490 = vpack.c.b16 %v488, %v487
        %v494 = vsel %vm440, %v469, 0
        %496 = vmatprep.subr.bf16.mxu0 0
        %497 = vmatpush1.bf16.msra.mxu0 %v489
        %498 = vmatprep.subr.bf16.mxu0 0
        %499 = vmatpush1.bf16.msra.mxu0 %v490
        %500 = vmatprep.subr.bf16.mxu0 0
        %501 = vmatpush1.bf16.msra.mxu0 0
        %502 = vmatprep.subr.bf16.mxu0 0
        %503 = vmatpush1.bf16.msra.mxu0 0
        %504 = vmatprep.subr.bf16.mxu0 0
        %505 = vmatpush1.bf16.msra.mxu0 0
        %506 = vmatprep.subr.bf16.mxu0 0
        %507 = vmatpush1.bf16.msra.mxu0 0
        %508 = vmatprep.subr.bf16.mxu0 0
        %509 = vmatpush1.bf16.msra.mxu0 0
        %510 = vmatprep.subr.bf16.mxu0 0
        %511 = vmatpush1.bf16.msra.mxu0 0
        %512 = vmatprep.subr.bf16.mxu0 0
        %513 = vmatpush1.bf16.msra.mxu0 0
        %514 = vmatprep.subr.bf16.mxu0 0
        %515 = vmatpush1.bf16.msra.mxu0 0
        %516 = vmatprep.subr.bf16.mxu0 0
        %517 = vmatpush1.bf16.msra.mxu0 0
        %518 = vmatprep.subr.bf16.mxu0 0
        %519 = vmatpush1.bf16.msra.mxu0 0
        %520 = vmatprep.subr.bf16.mxu0 0
        %521 = vmatpush1.bf16.msra.mxu0 0
        %522 = vmatprep.subr.bf16.mxu0 0
        %523 = vmatpush1.bf16.msra.mxu0 0
        %524 = vmatprep.subr.bf16.mxu0 0
        %525 = vmatpush1.bf16.msra.mxu0 0
        %526 = vmatprep.subr.bf16.mxu0 0
        %527 = vmatpush1.bf16.msra.mxu0 0
        %528 = vmatprep.mubr.bf16.mxu0 0
        %529 = vmatmul.mubr.bf16.gmra.mrb[0].mxu0 %v494
        %v530 = vpop.f32.mrb[0].mxu0
        %v531 = vadd.f32 %v479, %v530
        %v532 = vpop.f32.mrb[0].mxu0
        %v533 = vpop.f32.mrb[0].mxu0
        %v534 = vpop.f32.mrb[0].mxu0
        %535 = vdwg.mxu0
        %v536 = vpack.c.bf16 %v531, %v531
        %538 = vrot.lane.b32.xlu0 %v536, 96
        %v539 = vpop.permute.xlu0 %538
        %vm540 = vcmask 64512
        %v542 = vsel %vm540, %v536, 0
        %v545 = vsel %vm540, %v539, 0
        %547 = vmatprep.subr.bf16.mxu0 0
        %548 = vmatpush1.bf16.xpose.msra.mxu0 %v545
        %549 = vmatprep.subr.bf16.mxu0 0
        %550 = vmatpush1.bf16.xpose.msra.mxu0 0
        %551 = vmatprep.subr.bf16.mxu0 0
        %552 = vmatpush1.bf16.xpose.msra.mxu0 0
        %553 = vmatprep.subr.bf16.mxu0 0
        %554 = vmatpush1.bf16.xpose.msra.mxu0 0
        %555 = vmatprep.subr.bf16.mxu0 0
        %556 = vmatpush1.bf16.xpose.msra.mxu0 0
        %557 = vmatprep.subr.bf16.mxu0 0
        %558 = vmatpush1.bf16.xpose.msra.mxu0 0
        %559 = vmatprep.subr.bf16.mxu0 0
        %560 = vmatpush1.bf16.xpose.msra.mxu0 0
        %561 = vmatprep.subr.bf16.mxu0 0
        %562 = vmatpush1.bf16.xpose.msra.mxu0 0
        %563 = vmatprep.subr.bf16.mxu0 0
        %564 = vmatpush1.bf16.xpose.msra.mxu0 0
        %565 = vmatprep.subr.bf16.mxu0 0
        %566 = vmatpush1.bf16.xpose.msra.mxu0 0
        %567 = vmatprep.subr.bf16.mxu0 0
        %568 = vmatpush1.bf16.xpose.msra.mxu0 0
        %569 = vmatprep.subr.bf16.mxu0 0
        %570 = vmatpush1.bf16.xpose.msra.mxu0 0
        %571 = vmatprep.subr.bf16.mxu0 0
        %572 = vmatpush1.bf16.xpose.msra.mxu0 0
        %573 = vmatprep.subr.bf16.mxu0 0
        %574 = vmatpush1.bf16.xpose.msra.mxu0 0
        %575 = vmatprep.subr.bf16.mxu0 0
        %576 = vmatpush1.bf16.xpose.msra.mxu0 0
        %577 = vmatprep.subr.bf16.mxu0 0
        %578 = vmatpush1.bf16.xpose.msra.mxu0 0
        %579 = vmatprep.mubr.bf16.mxu0 0
        %580 = vmatmul.mubr.bf16.gmra.mrb[0].mxu0 %v542
        %v581 = vpop.f32.mrb[0].mxu0
        %v582 = vadd.f32 0.0, %v581
        %v583 = vpop.f32.mrb[0].mxu0
        %v584 = vpop.f32.mrb[0].mxu0
        %v585 = vpop.f32.mrb[0].mxu0
        %586 = vdwg.mxu0
        %v587 = vsel %vm540, %v582, -inf
        %588 = vmax.xlane.f32.xlu0 %v587
        %v589 = vpop.xlane.xlu0 %588
        %v590 = vsub.f32 %v582, %v589
        %v591 = vmul.f32 %v590, 1.442695
        %v592 = vpow.pop %v591
        %v593 = vsel %vm540, %v592, 0.0
        %594 = vadd.xlane.f32.xlu0 %v593
        %v595 = vpop.xlane.xlu0 %594
        %v596 = vpack.c.bf16 %v592, %v592
        %597 = vrot.lane.b32.xlu0 %v536, 64
        %v598 = vpop.permute.xlu0 %597
        %v600 = vsel %vm540, %v596, 0
        %vm602 = vcmask 1043456
        %v604 = vsel %vm602, %v598, 0
        %606 = vmatprep.subr.bf16.mxu0 0
        %607 = vmatpush1.bf16.msra.mxu0 %v604
        %608 = vmatprep.subr.bf16.mxu0 0
        %609 = vmatpush1.bf16.msra.mxu0 0
        %610 = vmatprep.subr.bf16.mxu0 0
        %611 = vmatpush1.bf16.msra.mxu0 0
        %612 = vmatprep.subr.bf16.mxu0 0
        %613 = vmatpush1.bf16.msra.mxu0 0
        %614 = vmatprep.subr.bf16.mxu0 0
        %615 = vmatpush1.bf16.msra.mxu0 0
        %616 = vmatprep.subr.bf16.mxu0 0
        %617 = vmatpush1.bf16.msra.mxu0 0
        %618 = vmatprep.subr.bf16.mxu0 0
        %619 = vmatpush1.bf16.msra.mxu0 0
        %620 = vmatprep.subr.bf16.mxu0 0
        %621 = vmatpush1.bf16.msra.mxu0 0
        %622 = vmatprep.subr.bf16.mxu0 0
        %623 = vmatpush1.bf16.msra.mxu0 0
        %624 = vmatprep.subr.bf16.mxu0 0
        %625 = vmatpush1.bf16.msra.mxu0 0
        %626 = vmatprep.subr.bf16.mxu0 0
        %627 = vmatpush1.bf16.msra.mxu0 0
        %628 = vmatprep.subr.bf16.mxu0 0
        %629 = vmatpush1.bf16.msra.mxu0 0
        %630 = vmatprep.subr.bf16.mxu0 0
        %631 = vmatpush1.bf16.msra.mxu0 0
        %632 = vmatprep.subr.bf16.mxu0 0
        %633 = vmatpush1.bf16.msra.mxu0 0
        %634 = vmatprep.subr.bf16.mxu0 0
        %635 = vmatpush1.bf16.msra.mxu0 0
        %636 = vmatprep.subr.bf16.mxu0 0
        %637 = vmatpush1.bf16.msra.mxu0 0
        %638 = vmatprep.mubr.bf16.mxu0 0
        %639 = vmatmul.mubr.bf16.gmra.mrb[0].mxu0 %v600
        %v640 = vpop.f32.mrb[0].mxu0
        %v641 = vadd.f32 0.0, %v640
        %v642 = vpop.f32.mrb[0].mxu0
        %v643 = vpop.f32.mrb[0].mxu0
        %v644 = vpop.f32.mrb[0].mxu0
        %645 = vdwg.mxu0
        %v646 = vrcp.pop %v595
        %v647 = vmul.f32 %v641, %v646
        %v648 = vpack.c.bf16 %v647, %v647
        %v649 = vld [vmem:[%s5] sm:$0xf]
        %650 = vrot.lane.b32.xlu0 %v536, 120
        %v651 = vpop.permute.xlu0 %650
        %652 = vrot.lane.b32.xlu0 %v536, 88
        %v653 = vpop.permute.xlu0 %652
        %v655 = vsel %vm540, %v651, 0
        %v658 = vsel %vm540, %v653, 0
        %660 = vmatprep.subr.bf16.mxu0 0
        %661 = vmatpush1.bf16.xpose.msra.mxu0 %v658
        %662 = vmatprep.subr.bf16.mxu0 0
        %663 = vmatpush1.bf16.xpose.msra.mxu0 0
        %664 = vmatprep.subr.bf16.mxu0 0
        %665 = vmatpush1.bf16.xpose.msra.mxu0 0
        %666 = vmatprep.subr.bf16.mxu0 0
        %667 = vmatpush1.bf16.xpose.msra.mxu0 0
        %668 = vmatprep.subr.bf16.mxu0 0
        %669 = vmatpush1.bf16.xpose.msra.mxu0 0
        %670 = vmatprep.subr.bf16.mxu0 0
        %671 = vmatpush1.bf16.xpose.msra.mxu0 0
        %672 = vmatprep.subr.bf16.mxu0 0
        %673 = vmatpush1.bf16.xpose.msra.mxu0 0
        %674 = vmatprep.subr.bf16.mxu0 0
        %675 = vmatpush1.bf16.xpose.msra.mxu0 0
        %676 = vmatprep.subr.bf16.mxu0 0
        %677 = vmatpush1.bf16.xpose.msra.mxu0 0
        %678 = vmatprep.subr.bf16.mxu0 0
        %679 = vmatpush1.bf16.xpose.msra.mxu0 0
        %680 = vmatprep.subr.bf16.mxu0 0
        %681 = vmatpush1.bf16.xpose.msra.mxu0 0
        %682 = vmatprep.subr.bf16.mxu0 0
        %683 = vmatpush1.bf16.xpose.msra.mxu0 0
        %684 = vmatprep.subr.bf16.mxu0 0
        %685 = vmatpush1.bf16.xpose.msra.mxu0 0
        %686 = vmatprep.subr.bf16.mxu0 0
        %687 = vmatpush1.bf16.xpose.msra.mxu0 0
        %688 = vmatprep.subr.bf16.mxu0 0
        %689 = vmatpush1.bf16.xpose.msra.mxu0 0
        %690 = vmatprep.subr.bf16.mxu0 0
        %691 = vmatpush1.bf16.xpose.msra.mxu0 0
        %692 = vmatprep.mubr.bf16.mxu0 0
        %693 = vmatmul.mubr.bf16.gmra.mrb[0].mxu0 %v655
        %v694 = vpop.f32.mrb[0].mxu0
        %v695 = vadd.f32 0.0, %v694
        %v696 = vpop.f32.mrb[0].mxu0
        %v697 = vpop.f32.mrb[0].mxu0
        %v698 = vpop.f32.mrb[0].mxu0
        %699 = vdwg.mxu0
        %v700 = vsel %vm540, %v695, -inf
        %701 = vmax.xlane.f32.xlu0 %v700
        %v702 = vpop.xlane.xlu0 %701
        %v703 = vsub.f32 %v695, %v702
        %v704 = vmul.f32 %v703, 1.442695
        %v705 = vpow.pop %v704
        %v706 = vsel %vm540, %v705, 0.0
        %707 = vadd.xlane.f32.xlu0 %v706
        %v708 = vpop.xlane.xlu0 %707
        %v709 = vpack.c.bf16 %v705, %v705
        %710 = vrot.lane.b32.xlu0 %v536, 56
        %v711 = vpop.permute.xlu0 %710
        %v713 = vsel %vm540, %v709, 0
        %v716 = vsel %vm602, %v711, 0
        %718 = vmatprep.subr.bf16.mxu0 0
        %719 = vmatpush1.bf16.msra.mxu0 %v716
        %720 = vmatprep.subr.bf16.mxu0 0
        %721 = vmatpush1.bf16.msra.mxu0 0
        %722 = vmatprep.subr.bf16.mxu0 0
        %723 = vmatpush1.bf16.msra.mxu0 0
        %724 = vmatprep.subr.bf16.mxu0 0
        %725 = vmatpush1.bf16.msra.mxu0 0
        %726 = vmatprep.subr.bf16.mxu0 0
        %727 = vmatpush1.bf16.msra.mxu0 0
        %728 = vmatprep.subr.bf16.mxu0 0
        %729 = vmatpush1.bf16.msra.mxu0 0
        %730 = vmatprep.subr.bf16.mxu0 0
        %731 = vmatpush1.bf16.msra.mxu0 0
        %732 = vmatprep.subr.bf16.mxu0 0
        %733 = vmatpush1.bf16.msra.mxu0 0
        %734 = vmatprep.subr.bf16.mxu0 0
        %735 = vmatpush1.bf16.msra.mxu0 0
        %736 = vmatprep.subr.bf16.mxu0 0
        %737 = vmatpush1.bf16.msra.mxu0 0
        %738 = vmatprep.subr.bf16.mxu0 0
        %739 = vmatpush1.bf16.msra.mxu0 0
        %740 = vmatprep.subr.bf16.mxu0 0
        %741 = vmatpush1.bf16.msra.mxu0 0
        %742 = vmatprep.subr.bf16.mxu0 0
        %743 = vmatpush1.bf16.msra.mxu0 0
        %744 = vmatprep.subr.bf16.mxu0 0
        %745 = vmatpush1.bf16.msra.mxu0 0
        %746 = vmatprep.subr.bf16.mxu0 0
        %747 = vmatpush1.bf16.msra.mxu0 0
        %748 = vmatprep.subr.bf16.mxu0 0
        %749 = vmatpush1.bf16.msra.mxu0 0
        %750 = vmatprep.mubr.bf16.mxu0 0
        %751 = vmatmul.mubr.bf16.gmra.mrb[0].mxu0 %v713
        %v752 = vpop.f32.mrb[0].mxu0
        %v753 = vadd.f32 0.0, %v752
        %v754 = vpop.f32.mrb[0].mxu0
        %v755 = vpop.f32.mrb[0].mxu0
        %v756 = vpop.f32.mrb[0].mxu0
        %757 = vdwg.mxu0
        %v758 = vrcp.pop %v708
        %v759 = vmul.f32 %v753, %v758
        %v760 = vpack.c.bf16 %v759, %v759
        %s761 = scalar_lea.vmem %s5, 4
        %v762 = vld [vmem:[%s761] sm:$0xf]
        %v764 = vsel %vm540, %v760, 0
        %v767 = vsel %vm602, %v762, 0
        %769 = vmatprep.subr.bf16.mxu0 0
        %770 = vmatpush1.bf16.msra.mxu0 %v767
        %771 = vmatprep.subr.bf16.mxu0 0
        %772 = vmatpush1.bf16.msra.mxu0 0
        %773 = vmatprep.subr.bf16.mxu0 0
        %774 = vmatpush1.bf16.msra.mxu0 0
        %775 = vmatprep.subr.bf16.mxu0 0
        %776 = vmatpush1.bf16.msra.mxu0 0
        %777 = vmatprep.subr.bf16.mxu0 0
        %778 = vmatpush1.bf16.msra.mxu0 0
        %779 = vmatprep.subr.bf16.mxu0 0
        %780 = vmatpush1.bf16.msra.mxu0 0
        %781 = vmatprep.subr.bf16.mxu0 0
        %782 = vmatpush1.bf16.msra.mxu0 0
        %783 = vmatprep.subr.bf16.mxu0 0
        %784 = vmatpush1.bf16.msra.mxu0 0
        %785 = vmatprep.subr.bf16.mxu0 0
        %786 = vmatpush1.bf16.msra.mxu0 0
        %787 = vmatprep.subr.bf16.mxu0 0
        %788 = vmatpush1.bf16.msra.mxu0 0
        %789 = vmatprep.subr.bf16.mxu0 0
        %790 = vmatpush1.bf16.msra.mxu0 0
        %791 = vmatprep.subr.bf16.mxu0 0
        %792 = vmatpush1.bf16.msra.mxu0 0
        %793 = vmatprep.subr.bf16.mxu0 0
        %794 = vmatpush1.bf16.msra.mxu0 0
        %795 = vmatprep.subr.bf16.mxu0 0
        %796 = vmatpush1.bf16.msra.mxu0 0
        %797 = vmatprep.subr.bf16.mxu0 0
        %798 = vmatpush1.bf16.msra.mxu0 0
        %799 = vmatprep.subr.bf16.mxu0 0
        %800 = vmatpush1.bf16.msra.mxu0 0
        %801 = vmatprep.mubr.bf16.mxu0 0
        %802 = vmatmul.mubr.bf16.gmra.mrb[0].mxu0 %v764
        %v803 = vpop.f32.mrb[0].mxu0
        %v804 = vadd.f32 0.0, %v803
        %v805 = vpop.f32.mrb[0].mxu0
        %v806 = vpop.f32.mrb[0].mxu0
        %v807 = vpop.f32.mrb[0].mxu0
        %808 = vdwg.mxu0
        %v810 = vsel %vm540, %v648, 0
        %v813 = vsel %vm602, %v649, 0
        %815 = vmatprep.subr.bf16.mxu0 0
        %816 = vmatpush1.bf16.msra.mxu0 %v813
        %817 = vmatprep.subr.bf16.mxu0 0
        %818 = vmatpush1.bf16.msra.mxu0 0
        %819 = vmatprep.subr.bf16.mxu0 0
        %820 = vmatpush1.bf16.msra.mxu0 0
        %821 = vmatprep.subr.bf16.mxu0 0
        %822 = vmatpush1.bf16.msra.mxu0 0
        %823 = vmatprep.subr.bf16.mxu0 0
        %824 = vmatpush1.bf16.msra.mxu0 0
        %825 = vmatprep.subr.bf16.mxu0 0
        %826 = vmatpush1.bf16.msra.mxu0 0
        %827 = vmatprep.subr.bf16.mxu0 0
        %828 = vmatpush1.bf16.msra.mxu0 0
        %829 = vmatprep.subr.bf16.mxu0 0
        %830 = vmatpush1.bf16.msra.mxu0 0
        %831 = vmatprep.subr.bf16.mxu0 0
        %832 = vmatpush1.bf16.msra.mxu0 0
        %833 = vmatprep.subr.bf16.mxu0 0
        %834 = vmatpush1.bf16.msra.mxu0 0
        %835 = vmatprep.subr.bf16.mxu0 0
        %836 = vmatpush1.bf16.msra.mxu0 0
        %837 = vmatprep.subr.bf16.mxu0 0
        %838 = vmatpush1.bf16.msra.mxu0 0
        %839 = vmatprep.subr.bf16.mxu0 0
        %840 = vmatpush1.bf16.msra.mxu0 0
        %841 = vmatprep.subr.bf16.mxu0 0
        %842 = vmatpush1.bf16.msra.mxu0 0
        %843 = vmatprep.subr.bf16.mxu0 0
        %844 = vmatpush1.bf16.msra.mxu0 0
        %845 = vmatprep.subr.bf16.mxu0 0
        %846 = vmatpush1.bf16.msra.mxu0 0
        %847 = vmatprep.mubr.bf16.mxu0 0
        %848 = vmatmul.mubr.bf16.gmra.mrb[0].mxu0 %v810
        %v849 = vpop.f32.mrb[0].mxu0
        %v850 = vadd.f32 %v804, %v849
        %v851 = vpop.f32.mrb[0].mxu0
        %v852 = vpop.f32.mrb[0].mxu0
        %v853 = vpop.f32.mrb[0].mxu0
        %854 = vdwg.mxu0
        %855 = vrot.lane.b32.xlu0 %v536, 112
        %v856 = vpop.permute.xlu0 %855
        %857 = vrot.lane.b32.xlu0 %v536, 80
        %v858 = vpop.permute.xlu0 %857
        %v860 = vsel %vm540, %v856, 0
        %v863 = vsel %vm540, %v858, 0
        %865 = vmatprep.subr.bf16.mxu0 0
        %866 = vmatpush1.bf16.xpose.msra.mxu0 %v863
        %867 = vmatprep.subr.bf16.mxu0 0
        %868 = vmatpush1.bf16.xpose.msra.mxu0 0
        %869 = vmatprep.subr.bf16.mxu0 0
        %870 = vmatpush1.bf16.xpose.msra.mxu0 0
        %871 = vmatprep.subr.bf16.mxu0 0
        %872 = vmatpush1.bf16.xpose.msra.mxu0 0
        %873 = vmatprep.subr.bf16.mxu0 0
        %874 = vmatpush1.bf16.xpose.msra.mxu0 0
        %875 = vmatprep.subr.bf16.mxu0 0
        %876 = vmatpush1.bf16.xpose.msra.mxu0 0
        %877 = vmatprep.subr.bf16.mxu0 0
        %878 = vmatpush1.bf16.xpose.msra.mxu0 0
        %879 = vmatprep.subr.bf16.mxu0 0
        %880 = vmatpush1.bf16.xpose.msra.mxu0 0
        %881 = vmatprep.subr.bf16.mxu0 0
        %882 = vmatpush1.bf16.xpose.msra.mxu0 0
        %883 = vmatprep.subr.bf16.mxu0 0
        %884 = vmatpush1.bf16.xpose.msra.mxu0 0
        %885 = vmatprep.subr.bf16.mxu0 0
        %886 = vmatpush1.bf16.xpose.msra.mxu0 0
        %887 = vmatprep.subr.bf16.mxu0 0
        %888 = vmatpush1.bf16.xpose.msra.mxu0 0
        %889 = vmatprep.subr.bf16.mxu0 0
        %890 = vmatpush1.bf16.xpose.msra.mxu0 0
        %891 = vmatprep.subr.bf16.mxu0 0
        %892 = vmatpush1.bf16.xpose.msra.mxu0 0
        %893 = vmatprep.subr.bf16.mxu0 0
        %894 = vmatpush1.bf16.xpose.msra.mxu0 0
        %895 = vmatprep.subr.bf16.mxu0 0
        %896 = vmatpush1.bf16.xpose.msra.mxu0 0
        %897 = vmatprep.mubr.bf16.mxu0 0
        %898 = vmatmul.mubr.bf16.gmra.mrb[0].mxu0 %v860
        %v899 = vpop.f32.mrb[0].mxu0
        %v900 = vadd.f32 0.0, %v899
        %v901 = vpop.f32.mrb[0].mxu0
        %v902 = vpop.f32.mrb[0].mxu0
        %v903 = vpop.f32.mrb[0].mxu0
        %904 = vdwg.mxu0
        %v905 = vsel %vm540, %v900, -inf
        %906 = vmax.xlane.f32.xlu0 %v905
        %v907 = vpop.xlane.xlu0 %906
        %v908 = vsub.f32 %v900, %v907
        %v909 = vmul.f32 %v908, 1.442695
        %v910 = vpow.pop %v909
        %v911 = vsel %vm540, %v910, 0.0
        %912 = vadd.xlane.f32.xlu0 %v911
        %v913 = vpop.xlane.xlu0 %912
        %v914 = vpack.c.bf16 %v910, %v910
        %915 = vrot.lane.b32.xlu0 %v536, 48
        %v916 = vpop.permute.xlu0 %915
        %v918 = vsel %vm540, %v914, 0
        %v921 = vsel %vm602, %v916, 0
        %923 = vmatprep.subr.bf16.mxu0 0
        %924 = vmatpush1.bf16.msra.mxu0 %v921
        %925 = vmatprep.subr.bf16.mxu0 0
        %926 = vmatpush1.bf16.msra.mxu0 0
        %927 = vmatprep.subr.bf16.mxu0 0
        %928 = vmatpush1.bf16.msra.mxu0 0
        %929 = vmatprep.subr.bf16.mxu0 0
        %930 = vmatpush1.bf16.msra.mxu0 0
        %931 = vmatprep.subr.bf16.mxu0 0
        %932 = vmatpush1.bf16.msra.mxu0 0
        %933 = vmatprep.subr.bf16.mxu0 0
        %934 = vmatpush1.bf16.msra.mxu0 0
        %935 = vmatprep.subr.bf16.mxu0 0
        %936 = vmatpush1.bf16.msra.mxu0 0
        %937 = vmatprep.subr.bf16.mxu0 0
        %938 = vmatpush1.bf16.msra.mxu0 0
        %939 = vmatprep.subr.bf16.mxu0 0
        %940 = vmatpush1.bf16.msra.mxu0 0
        %941 = vmatprep.subr.bf16.mxu0 0
        %942 = vmatpush1.bf16.msra.mxu0 0
        %943 = vmatprep.subr.bf16.mxu0 0
        %944 = vmatpush1.bf16.msra.mxu0 0
        %945 = vmatprep.subr.bf16.mxu0 0
        %946 = vmatpush1.bf16.msra.mxu0 0
        %947 = vmatprep.subr.bf16.mxu0 0
        %948 = vmatpush1.bf16.msra.mxu0 0
        %949 = vmatprep.subr.bf16.mxu0 0
        %950 = vmatpush1.bf16.msra.mxu0 0
        %951 = vmatprep.subr.bf16.mxu0 0
        %952 = vmatpush1.bf16.msra.mxu0 0
        %953 = vmatprep.subr.bf16.mxu0 0
        %954 = vmatpush1.bf16.msra.mxu0 0
        %955 = vmatprep.mubr.bf16.mxu0 0
        %956 = vmatmul.mubr.bf16.gmra.mrb[0].mxu0 %v918
        %v957 = vpop.f32.mrb[0].mxu0
        %v958 = vadd.f32 0.0, %v957
        %v959 = vpop.f32.mrb[0].mxu0
        %v960 = vpop.f32.mrb[0].mxu0
        %v961 = vpop.f32.mrb[0].mxu0
        %962 = vdwg.mxu0
        %v963 = vrcp.pop %v913
        %v964 = vmul.f32 %v958, %v963
        %v965 = vpack.c.bf16 %v964, %v964
        %s966 = scalar_lea.vmem %s5, 8
        %v967 = vld [vmem:[%s966] sm:$0xf]
        %v969 = vsel %vm540, %v965, 0
        %v972 = vsel %vm602, %v967, 0
        %974 = vmatprep.subr.bf16.mxu0 0
        %975 = vmatpush1.bf16.msra.mxu0 %v972
        %976 = vmatprep.subr.bf16.mxu0 0
        %977 = vmatpush1.bf16.msra.mxu0 0
        %978 = vmatprep.subr.bf16.mxu0 0
        %979 = vmatpush1.bf16.msra.mxu0 0
        %980 = vmatprep.subr.bf16.mxu0 0
        %981 = vmatpush1.bf16.msra.mxu0 0
        %982 = vmatprep.subr.bf16.mxu0 0
        %983 = vmatpush1.bf16.msra.mxu0 0
        %984 = vmatprep.subr.bf16.mxu0 0
        %985 = vmatpush1.bf16.msra.mxu0 0
        %986 = vmatprep.subr.bf16.mxu0 0
        %987 = vmatpush1.bf16.msra.mxu0 0
        %988 = vmatprep.subr.bf16.mxu0 0
        %989 = vmatpush1.bf16.msra.mxu0 0
        %990 = vmatprep.subr.bf16.mxu0 0
        %991 = vmatpush1.bf16.msra.mxu0 0
        %992 = vmatprep.subr.bf16.mxu0 0
        %993 = vmatpush1.bf16.msra.mxu0 0
        %994 = vmatprep.subr.bf16.mxu0 0
        %995 = vmatpush1.bf16.msra.mxu0 0
        %996 = vmatprep.subr.bf16.mxu0 0
        %997 = vmatpush1.bf16.msra.mxu0 0
        %998 = vmatprep.subr.bf16.mxu0 0
        %999 = vmatpush1.bf16.msra.mxu0 0
        %1000 = vmatprep.subr.bf16.mxu0 0
        %1001 = vmatpush1.bf16.msra.mxu0 0
        %1002 = vmatprep.subr.bf16.mxu0 0
        %1003 = vmatpush1.bf16.msra.mxu0 0
        %1004 = vmatprep.subr.bf16.mxu0 0
        %1005 = vmatpush1.bf16.msra.mxu0 0
        %1006 = vmatprep.mubr.bf16.mxu0 0
        %1007 = vmatmul.mubr.bf16.gmra.mrb[0].mxu0 %v969
        %v1008 = vpop.f32.mrb[0].mxu0
        %v1009 = vadd.f32 0.0, %v1008
        %v1010 = vpop.f32.mrb[0].mxu0
        %v1011 = vpop.f32.mrb[0].mxu0
        %v1012 = vpop.f32.mrb[0].mxu0
        %1013 = vdwg.mxu0
        %v1014 = vadd.f32 %v850, %v1009
        %1015 = vrot.lane.b32.xlu0 %v536, 104
        %v1016 = vpop.permute.xlu0 %1015
        %1017 = vrot.lane.b32.xlu0 %v536, 72
        %v1018 = vpop.permute.xlu0 %1017
        %v1020 = vsel %vm540, %v1016, 0
        %v1023 = vsel %vm540, %v1018, 0
        %1025 = vmatprep.subr.bf16.mxu0 0
        %1026 = vmatpush1.bf16.xpose.msra.mxu0 %v1023
        %1027 = vmatprep.subr.bf16.mxu0 0
        %1028 = vmatpush1.bf16.xpose.msra.mxu0 0
        %1029 = vmatprep.subr.bf16.mxu0 0
        %1030 = vmatpush1.bf16.xpose.msra.mxu0 0
        %1031 = vmatprep.subr.bf16.mxu0 0
        %1032 = vmatpush1.bf16.xpose.msra.mxu0 0
        %1033 = vmatprep.subr.bf16.mxu0 0
        %1034 = vmatpush1.bf16.xpose.msra.mxu0 0
        %1035 = vmatprep.subr.bf16.mxu0 0
        %1036 = vmatpush1.bf16.xpose.msra.mxu0 0
        %1037 = vmatprep.subr.bf16.mxu0 0
        %1038 = vmatpush1.bf16.xpose.msra.mxu0 0
        %1039 = vmatprep.subr.bf16.mxu0 0
        %1040 = vmatpush1.bf16.xpose.msra.mxu0 0
        %1041 = vmatprep.subr.bf16.mxu0 0
        %1042 = vmatpush1.bf16.xpose.msra.mxu0 0
        %1043 = vmatprep.subr.bf16.mxu0 0
        %1044 = vmatpush1.bf16.xpose.msra.mxu0 0
        %1045 = vmatprep.subr.bf16.mxu0 0
        %1046 = vmatpush1.bf16.xpose.msra.mxu0 0
        %1047 = vmatprep.subr.bf16.mxu0 0
        %1048 = vmatpush1.bf16.xpose.msra.mxu0 0
        %1049 = vmatprep.subr.bf16.mxu0 0
        %1050 = vmatpush1.bf16.xpose.msra.mxu0 0
        %1051 = vmatprep.subr.bf16.mxu0 0
        %1052 = vmatpush1.bf16.xpose.msra.mxu0 0
        %1053 = vmatprep.subr.bf16.mxu0 0
        %1054 = vmatpush1.bf16.xpose.msra.mxu0 0
        %1055 = vmatprep.subr.bf16.mxu0 0
        %1056 = vmatpush1.bf16.xpose.msra.mxu0 0
        %1057 = vmatprep.mubr.bf16.mxu0 0
        %1058 = vmatmul.mubr.bf16.gmra.mrb[0].mxu0 %v1020
        %v1059 = vpop.f32.mrb[0].mxu0
        %v1060 = vadd.f32 0.0, %v1059
        %v1061 = vpop.f32.mrb[0].mxu0
        %v1062 = vpop.f32.mrb[0].mxu0
        %v1063 = vpop.f32.mrb[0].mxu0
        %1064 = vdwg.mxu0
        %v1065 = vsel %vm540, %v1060, -inf
        %1066 = vmax.xlane.f32.xlu0 %v1065
        %v1067 = vpop.xlane.xlu0 %1066
        %v1068 = vsub.f32 %v1060, %v1067
        %v1069 = vmul.f32 %v1068, 1.442695
        %v1070 = vpow.pop %v1069
        %v1071 = vsel %vm540, %v1070, 0.0
        %1072 = vadd.xlane.f32.xlu0 %v1071
        %v1073 = vpop.xlane.xlu0 %1072
        %v1074 = vpack.c.bf16 %v1070, %v1070
        %1075 = vrot.lane.b32.xlu0 %v536, 40
        %v1076 = vpop.permute.xlu0 %1075
        %v1078 = vsel %vm540, %v1074, 0
        %v1081 = vsel %vm602, %v1076, 0
        %1083 = vmatprep.subr.bf16.mxu0 0
        %1084 = vmatpush1.bf16.msra.mxu0 %v1081
        %1085 = vmatprep.subr.bf16.mxu0 0
        %1086 = vmatpush1.bf16.msra.mxu0 0
        %1087 = vmatprep.subr.bf16.mxu0 0
        %1088 = vmatpush1.bf16.msra.mxu0 0
        %1089 = vmatprep.subr.bf16.mxu0 0
        %1090 = vmatpush1.bf16.msra.mxu0 0
        %1091 = vmatprep.subr.bf16.mxu0 0
        %1092 = vmatpush1.bf16.msra.mxu0 0
        %1093 = vmatprep.subr.bf16.mxu0 0
        %1094 = vmatpush1.bf16.msra.mxu0 0
        %1095 = vmatprep.subr.bf16.mxu0 0
        %1096 = vmatpush1.bf16.msra.mxu0 0
        %1097 = vmatprep.subr.bf16.mxu0 0
        %1098 = vmatpush1.bf16.msra.mxu0 0
        %1099 = vmatprep.subr.bf16.mxu0 0
        %1100 = vmatpush1.bf16.msra.mxu0 0
        %1101 = vmatprep.subr.bf16.mxu0 0
        %1102 = vmatpush1.bf16.msra.mxu0 0
        %1103 = vmatprep.subr.bf16.mxu0 0
        %1104 = vmatpush1.bf16.msra.mxu0 0
        %1105 = vmatprep.subr.bf16.mxu0 0
        %1106 = vmatpush1.bf16.msra.mxu0 0
        %1107 = vmatprep.subr.bf16.mxu0 0
        %1108 = vmatpush1.bf16.msra.mxu0 0
        %1109 = vmatprep.subr.bf16.mxu0 0
        %1110 = vmatpush1.bf16.msra.mxu0 0
        %1111 = vmatprep.subr.bf16.mxu0 0
        %1112 = vmatpush1.bf16.msra.mxu0 0
        %1113 = vmatprep.subr.bf16.mxu0 0
        %1114 = vmatpush1.bf16.msra.mxu0 0
        %1115 = vmatprep.mubr.bf16.mxu0 0
        %1116 = vmatmul.mubr.bf16.gmra.mrb[0].mxu0 %v1078
        %v1117 = vpop.f32.mrb[0].mxu0
        %v1118 = vadd.f32 0.0, %v1117
        %v1119 = vpop.f32.mrb[0].mxu0
        %v1120 = vpop.f32.mrb[0].mxu0
        %v1121 = vpop.f32.mrb[0].mxu0
        %1122 = vdwg.mxu0
        %v1123 = vrcp.pop %v1073
        %v1124 = vmul.f32 %v1118, %v1123
        %v1125 = vpack.c.bf16 %v1124, %v1124
        %s1126 = scalar_lea.vmem %s5, 12
        %v1127 = vld [vmem:[%s1126] sm:$0xf]
        %v1129 = vsel %vm540, %v1125, 0
        %v1132 = vsel %vm602, %v1127, 0
        %1134 = vmatprep.subr.bf16.mxu0 0
        %1135 = vmatpush1.bf16.msra.mxu0 %v1132
        %1136 = vmatprep.subr.bf16.mxu0 0
        %1137 = vmatpush1.bf16.msra.mxu0 0
        %1138 = vmatprep.subr.bf16.mxu0 0
        %1139 = vmatpush1.bf16.msra.mxu0 0
        %1140 = vmatprep.subr.bf16.mxu0 0
        %1141 = vmatpush1.bf16.msra.mxu0 0
        %1142 = vmatprep.subr.bf16.mxu0 0
        %1143 = vmatpush1.bf16.msra.mxu0 0
        %1144 = vmatprep.subr.bf16.mxu0 0
        %1145 = vmatpush1.bf16.msra.mxu0 0
        %1146 = vmatprep.subr.bf16.mxu0 0
        %1147 = vmatpush1.bf16.msra.mxu0 0
        %1148 = vmatprep.subr.bf16.mxu0 0
        %1149 = vmatpush1.bf16.msra.mxu0 0
        %1150 = vmatprep.subr.bf16.mxu0 0
        %1151 = vmatpush1.bf16.msra.mxu0 0
        %1152 = vmatprep.subr.bf16.mxu0 0
        %1153 = vmatpush1.bf16.msra.mxu0 0
        %1154 = vmatprep.subr.bf16.mxu0 0
        %1155 = vmatpush1.bf16.msra.mxu0 0
        %1156 = vmatprep.subr.bf16.mxu0 0
        %1157 = vmatpush1.bf16.msra.mxu0 0
        %1158 = vmatprep.subr.bf16.mxu0 0
        %1159 = vmatpush1.bf16.msra.mxu0 0
        %1160 = vmatprep.subr.bf16.mxu0 0
        %1161 = vmatpush1.bf16.msra.mxu0 0
        %1162 = vmatprep.subr.bf16.mxu0 0
        %1163 = vmatpush1.bf16.msra.mxu0 0
        %1164 = vmatprep.subr.bf16.mxu0 0
        %1165 = vmatpush1.bf16.msra.mxu0 0
        %1166 = vmatprep.mubr.bf16.mxu0 0
        %1167 = vmatmul.mubr.bf16.gmra.mrb[0].mxu0 %v1129
        %v1168 = vpop.f32.mrb[0].mxu0
        %v1169 = vadd.f32 0.0, %v1168
        %v1170 = vpop.f32.mrb[0].mxu0
        %v1171 = vpop.f32.mrb[0].mxu0
        %v1172 = vpop.f32.mrb[0].mxu0
        %1173 = vdwg.mxu0
        %v1174 = vadd.f32 %v1014, %v1169
        %v1175 = vadd.f32 %v437, %v1174
        %v1176 = vld [vmem:[%s6] sm:$0x1]
        %v1178 = vlaneseq
        %v1179 = vshrl.u32 %v1178, 7
        %v1180 = vsub.s32 0, %v1179
        %v1181 = vrot.slane %v1176, %v1180
        %v1183 = vadd.f32 %v1175, %v1181
        %v1184 = vld [vmem:[%s7] sm:$0x1]
        %v1185 = vld [vmem:[%s8] sm:$0x1]
        %v1186 = vsel %vm440, %v1183, 0.0
        %1187 = vadd.xlane.f32.xlu0 %v1186
        %v1188 = vpop.xlane.xlu0 %1187
        %v1189 = vmul.f32 %v1188, %v444
        %v1190 = vsub.f32 %v1183, %v1189
        %v1191 = vmul.f32 %v1190, %v1190
        %v1192 = vsel %vm440, %v1191, 0.0
        %1193 = vadd.xlane.f32.xlu0 %v1192
        %v1194 = vpop.xlane.xlu0 %1193
        %v1195 = vmul.f32 %v1194, %v444
        %v1196 = vadd.f32 %v1195, 1e-05
        %v1197 = vrsqrt.pop %v1196
        %v1198 = vmul.f32 %v1190, %v1197
        %v1200 = vlaneseq
        %v1201 = vshrl.u32 %v1200, 7
        %v1202 = vsub.s32 0, %v1201
        %v1203 = vrot.slane %v1184, %v1202
        %v1205 = vmul.f32 %v1198, %v1203
        %v1207 = vlaneseq
        %v1208 = vshrl.u32 %v1207, 7
        %v1209 = vsub.s32 0, %v1208
        %v1210 = vrot.slane %v1185, %v1209
        %v1212 = vadd.f32 %v1205, %v1210
        %v1213 = vpack.c.bf16 %v1212, %v1212
        %v1214 = vld [vmem:[%s9] sm:$0xf]
        %v1215 = vld [vmem:[%s9 + $0x4] sm:$0xf]
        %v1216 = vld [vmem:[%s9 + $0x8] sm:$0xf]
        %v1217 = vld [vmem:[%s9 + $0xc] sm:$0xf]
        %v1218 = vld [vmem:[%s10] sm:$0x1]
        %v1220 = vlaneseq
        %v1221 = vshrl.u32 %v1220, 7
        %v1222 = vsub.s32 0, %v1221
        %v1223 = vrot.slane %v1218, %v1222
        %v1229 = vunpack.c.l.b16 %v1214
        %v1230 = vunpack.c.l.b16 %v1215
        %v1231 = vunpack.c.l.b16 %v1216
        %v1232 = vunpack.c.l.b16 %v1217
        %v1233 = vpack.c.b16 %v1230, %v1229
        %v1234 = vpack.c.b16 %v1232, %v1231
        %v1238 = vsel %vm440, %v1213, 0
        %1240 = vmatprep.subr.bf16.mxu0 0
        %1241 = vmatpush1.bf16.msra.mxu0 %v1233
        %1242 = vmatprep.subr.bf16.mxu0 0
        %1243 = vmatpush1.bf16.msra.mxu0 %v1234
        %1244 = vmatprep.subr.bf16.mxu0 0
        %1245 = vmatpush1.bf16.msra.mxu0 0
        %1246 = vmatprep.subr.bf16.mxu0 0
        %1247 = vmatpush1.bf16.msra.mxu0 0
        %1248 = vmatprep.subr.bf16.mxu0 0
        %1249 = vmatpush1.bf16.msra.mxu0 0
        %1250 = vmatprep.subr.bf16.mxu0 0
        %1251 = vmatpush1.bf16.msra.mxu0 0
        %1252 = vmatprep.subr.bf16.mxu0 0
        %1253 = vmatpush1.bf16.msra.mxu0 0
        %1254 = vmatprep.subr.bf16.mxu0 0
        %1255 = vmatpush1.bf16.msra.mxu0 0
        %1256 = vmatprep.subr.bf16.mxu0 0
        %1257 = vmatpush1.bf16.msra.mxu0 0
        %1258 = vmatprep.subr.bf16.mxu0 0
        %1259 = vmatpush1.bf16.msra.mxu0 0
        %1260 = vmatprep.subr.bf16.mxu0 0
        %1261 = vmatpush1.bf16.msra.mxu0 0
        %1262 = vmatprep.subr.bf16.mxu0 0
        %1263 = vmatpush1.bf16.msra.mxu0 0
        %1264 = vmatprep.subr.bf16.mxu0 0
        %1265 = vmatpush1.bf16.msra.mxu0 0
        %1266 = vmatprep.subr.bf16.mxu0 0
        %1267 = vmatpush1.bf16.msra.mxu0 0
        %1268 = vmatprep.subr.bf16.mxu0 0
        %1269 = vmatpush1.bf16.msra.mxu0 0
        %1270 = vmatprep.subr.bf16.mxu0 0
        %1271 = vmatpush1.bf16.msra.mxu0 0
        %1272 = vmatprep.mubr.bf16.mxu0 0
        %1273 = vmatmul.mubr.bf16.gmra.mrb[0].mxu0 %v1238
        %v1274 = vpop.f32.mrb[0].mxu0
        %v1275 = vadd.f32 %v1223, %v1274
        %v1276 = vpop.f32.mrb[0].mxu0
        %v1277 = vpop.f32.mrb[0].mxu0
        %v1278 = vpop.f32.mrb[0].mxu0
        %1279 = vdwg.mxu0
        %v1280 = vmul.f32 %v1275, -1.702
        %v1281 = vmul.f32 %v1280, 1.442695
        %v1282 = vpow.pop %v1281
        %v1283 = vadd.f32 %v1282, 1.0
        %v1284 = vrcp.pop %v1283
        %v1285 = vmul.f32 %v1275, %v1284
        %v1286 = vpack.c.bf16 %v1285, %v1285
        %v1287 = vld [vmem:[%s11] sm:$0xf]
        %v1288 = vld [vmem:[%s11 + $0x4] sm:$0xf]
        %v1289 = vld [vmem:[%s11 + $0x8] sm:$0xf]
        %v1290 = vld [vmem:[%s11 + $0xc] sm:$0xf]
        %v1291 = vld [vmem:[%s11 + $0x10] sm:$0xf]
        %v1292 = vld [vmem:[%s11 + $0x14] sm:$0xf]
        %v1293 = vld [vmem:[%s11 + $0x18] sm:$0xf]
        %v1294 = vld [vmem:[%s11 + $0x1c] sm:$0xf]
        %v1295 = vld [vmem:[%s11 + $0x20] sm:$0xf]
        %v1296 = vld [vmem:[%s11 + $0x24] sm:$0xf]
        %v1297 = vld [vmem:[%s11 + $0x28] sm:$0xf]
        %v1298 = vld [vmem:[%s11 + $0x2c] sm:$0xf]
        %v1299 = vld [vmem:[%s11 + $0x30] sm:$0xf]
        %v1300 = vld [vmem:[%s11 + $0x34] sm:$0xf]
        %v1301 = vld [vmem:[%s11 + $0x38] sm:$0xf]
        %v1302 = vld [vmem:[%s11 + $0x3c] sm:$0xf]
        %v1303 = vld [vmem:[%s12] sm:$0x1]
        %v1305 = vlaneseq
        %v1306 = vshrl.u32 %v1305, 7
        %v1307 = vsub.s32 0, %v1306
        %v1308 = vrot.slane %v1303, %v1307
        %v1326 = vunpack.c.l.b16 %v1287
        %v1327 = vunpack.c.l.b16 %v1288
        %v1328 = vunpack.c.l.b16 %v1289
        %v1329 = vunpack.c.l.b16 %v1290
        %v1330 = vunpack.c.l.b16 %v1291
        %v1331 = vunpack.c.l.b16 %v1292
        %v1332 = vunpack.c.l.b16 %v1293
        %v1333 = vunpack.c.l.b16 %v1294
        %v1334 = vunpack.c.l.b16 %v1295
        %v1335 = vunpack.c.l.b16 %v1296
        %v1336 = vunpack.c.l.b16 %v1297
        %v1337 = vunpack.c.l.b16 %v1298
        %v1338 = vunpack.c.l.b16 %v1299
        %v1339 = vunpack.c.l.b16 %v1300
        %v1340 = vunpack.c.l.b16 %v1301
        %v1341 = vunpack.c.l.b16 %v1302
        %v1342 = vpack.c.b16 %v1327, %v1326
        %v1343 = vpack.c.b16 %v1329, %v1328
        %v1344 = vpack.c.b16 %v1331, %v1330
        %v1345 = vpack.c.b16 %v1333, %v1332
        %v1346 = vpack.c.b16 %v1335, %v1334
        %v1347 = vpack.c.b16 %v1337, %v1336
        %v1348 = vpack.c.b16 %v1339, %v1338
        %v1349 = vpack.c.b16 %v1341, %v1340
        %1358 = vmatprep.subr.bf16.mxu0 0
        %1359 = vmatpush1.bf16.msra.mxu0 %v1342
        %1360 = vmatprep.subr.bf16.mxu0 0
        %1361 = vmatpush1.bf16.msra.mxu0 %v1343
        %1362 = vmatprep.subr.bf16.mxu0 0
        %1363 = vmatpush1.bf16.msra.mxu0 %v1344
        %1364 = vmatprep.subr.bf16.mxu0 0
        %1365 = vmatpush1.bf16.msra.mxu0 %v1345
        %1366 = vmatprep.subr.bf16.mxu0 0
        %1367 = vmatpush1.bf16.msra.mxu0 %v1346
        %1368 = vmatprep.subr.bf16.mxu0 0
        %1369 = vmatpush1.bf16.msra.mxu0 %v1347
        %1370 = vmatprep.subr.bf16.mxu0 0
        %1371 = vmatpush1.bf16.msra.mxu0 %v1348
        %1372 = vmatprep.subr.bf16.mxu0 0
        %1373 = vmatpush1.bf16.msra.mxu0 %v1349
        %1374 = vmatprep.subr.bf16.mxu0 0
        %1375 = vmatpush1.bf16.msra.mxu0 0
        %1376 = vmatprep.subr.bf16.mxu0 0
        %1377 = vmatpush1.bf16.msra.mxu0 0
        %1378 = vmatprep.subr.bf16.mxu0 0
        %1379 = vmatpush1.bf16.msra.mxu0 0
        %1380 = vmatprep.subr.bf16.mxu0 0
        %1381 = vmatpush1.bf16.msra.mxu0 0
        %1382 = vmatprep.subr.bf16.mxu0 0
        %1383 = vmatpush1.bf16.msra.mxu0 0
        %1384 = vmatprep.subr.bf16.mxu0 0
        %1385 = vmatpush1.bf16.msra.mxu0 0
        %1386 = vmatprep.subr.bf16.mxu0 0
        %1387 = vmatpush1.bf16.msra.mxu0 0
        %1388 = vmatprep.subr.bf16.mxu0 0
        %1389 = vmatpush1.bf16.msra.mxu0 0
        %1390 = vmatprep.mubr.bf16.mxu0 0
        %1391 = vmatmul.mubr.bf16.gmra.mrb[0].mxu0 %v1286
        %v1392 = vpop.f32.mrb[0].mxu0
        %v1393 = vadd.f32 %v1308, %v1392
        %v1394 = vpop.f32.mrb[0].mxu0
        %v1395 = vpop.f32.mrb[0].mxu0
        %v1396 = vpop.f32.mrb[0].mxu0
        %1397 = vdwg.mxu0
        %v1398 = vadd.f32 %v1183, %v1393
        %1399 = vst.msk [vmem:[%s431] sm:$0xff] %vm440, %v1398
        %s1400 = sand.u32 %s313, 1
        %s1401 = scalar_lea.sflag [#allocation3], %s1400
        %s1402 = sand.u32 %s313, 1
        %s1403 = smul.addr %s1402, 8
        %s1404 = scalar_lea.vmem [#allocation2], %s1403
        // Predicated region
        $region73: #{tpu_custom_call.1} parent=71 // pred_check
          %p1405 = pneg %p323
        $region74: #{tpu_custom_call.1} parent=71 // pred_check_branch
          %1407 = sbr.rel (%p1405) target = $region76
        $region75: #{tpu_custom_call.1} parent=71 // pred_region
          %s1409 = ssub.s32 128, 128
          %1410 = vsyncadd %s1401, %s1409
          %s1411 = smul.addr %s27, 128
          %s1412 = scalar_lea.hbm %s13, %s1411
          %s1414 = sshll.u32 %s1404, 4
          %s1415 = int_to_ptr.vmem [resolvable:$true] %s1414
          %1417 = dma.vmem_to_hbm [thread:$0]  %s1415, 128, %s1412, %s1401
        $region76: #{tpu_custom_call.1} parent=71 // pred_fallthru
          _
      $region72: #{tpu_custom_call.1} parent=5 // pred_fallthru
        _
      %p1418 = scmp.le.s32.totalorder 2, %s22
      // Predicated region
      $region77: #{tpu_custom_call.1} parent=5 // pred_check
        %p1419 = pneg %p1418
      $region78: #{tpu_custom_call.1} parent=5 // pred_check_branch
        %1421 = sbr.rel (%p1419) target = $region80
      $region79: #{tpu_custom_call.1} parent=5 // pred_region
        %s1422 = ssub.s32 %s22, 2
        // Predicated region
        $region81: #{tpu_custom_call.1} parent=79 // pred_check
          %p1423 = pneg %p329
        $region82: #{tpu_custom_call.1} parent=79 // pred_check_branch
          %1425 = sbr.rel (%p1423) target = $region84
        $region83: #{tpu_custom_call.1} parent=79 // pred_region
          %s1426 = sand.u32 %s314, 1
          %s1427 = scalar_lea.sflag [#allocation3], %s1426
          %s1428 = sand.u32 %s314, 1
          %s1429 = smul.addr %s1428, 8
          %s1430 = scalar_lea.vmem [#allocation2], %s1429
          %1431 = dma.done %s1427, 128
        $region84: #{tpu_custom_call.1} parent=79 // pred_fallthru
          _
      $region80: #{tpu_custom_call.1} parent=5 // pred_fallthru
        _
    $region6: #{tpu_custom_call.1} parent=1 // loop_footer
      %s26 = sadd.s32 1, %s22
    $region7: #{tpu_custom_call.1} parent=1 // loop_footer_branch
      %21 = sbr.rel target = $region3
    $region8: #{tpu_custom_call.1} parent=1 // loop_exit
      _
    %1432 = vsyncpa [#allocation3], 1
    %s1433 = scalar_lea.sflag [#allocation3], 1
    %1434 = vsyncpa %s1433, 1

</llo_original>
